<compile_context>
chip_gen: v5e
topology: v5e:2x2
jax: 0.10.0
libtpu: 0.0.40
codegen_flags: <defaults>
</compile_context>

<pallas_src>
import functools

import jax
import jax.numpy as jnp
from jax.experimental import pallas as pl
from jax.experimental.pallas import tpu as pltpu


def _round_up(x, m):
    return (x + m - 1) // m * m


def _wide_basic_kernel(Nb, H, W, Gh, Gw, Cin, Cmid, Cpad,
                       x_ref, mask_ref, w1_ref, b1_ref, w2_ref, ws_ref, bo_ref,
                       out_ref):
    HW = H * W
    GG = Gh * Gw
    xe = x_ref[...]                                   # (Nb, Gh+2, Gw+2, Cin) f32

    # ---- 1x1 shortcut first: depends only on x, overlaps the conv2 chain. ----
    xc = xe[:, 2:2 + H, 2:2 + W, :].reshape(Nb * HW, Cin)       # original (non-relu'd) x
    sc = jnp.dot(xc.astype(jnp.bfloat16), ws_ref[...],
                 preferred_element_type=jnp.float32)            # (Nb*HW, Cpad)

    # ---- conv1: one im2col matmul over the expanded (Gh x Gw) grid. ----------
    xr = jnp.maximum(xe, 0.0)                         # relu(x); zero padding stays zero
    p1 = jnp.concatenate(
        [xr[:, kh:kh + Gh, kw:kw + Gw, :].reshape(Nb * GG, Cin)
         for kh in range(3) for kw in range(3)], axis=-1)       # (Nb*GG, 9*Cin)
    a1 = jnp.dot(p1.astype(jnp.bfloat16), w1_ref[...],
                 preferred_element_type=jnp.float32) + b1_ref[...]
    # TODO(synk): dropout_rate=0.0 here; a nonzero rate would need pltpu.prng_* masking.
    a1 = jnp.maximum(a1, 0.0)                                   # (Nb*GG, Cmid)

    # Static border mask zeroes everything outside [1, H] x [1, W]; this *is*
    # conv2's zero padding of the intermediate, kept fully in registers.
    mid = a1.reshape(Nb, Gh, Gw, Cmid) * mask_ref[...]

    # ---- conv2: one im2col matmul over the (H x W) output grid. --------------
    p2 = jnp.concatenate(
        [mid[:, kh:kh + H, kw:kw + W, :].reshape(Nb * HW, Cmid)
         for kh in range(3) for kw in range(3)], axis=-1)       # (Nb*HW, 9*Cmid)
    a2 = jnp.dot(p2.astype(jnp.bfloat16), w2_ref[...],
                 preferred_element_type=jnp.float32)            # (Nb*HW, Cpad)

    out = a2 + sc + bo_ref[...]                       # fused bias (b2 + bs), padded
    out_ref[...] = out.reshape(Nb, H, W, Cpad)        # lane-dense (Cpad=128) store


def wide_basic_forward(x_nchw, w1, b1, w2, b2, ws=None, bs=None):
    """x_nchw: (N, Cin, H, W).  Weights are HWIO-style:
       w1: (3,3,Cin,Cmid), w2: (3,3,Cmid,Cout), ws: (Cin,Cout) 1x1 shortcut; biases (C,)."""
    N, Cin, H, W = x_nchw.shape
    Cmid = w1.shape[-1]
    Cout = w2.shape[-1]
    assert Cmid == Cout, "wide_basic uses the same planes for conv1 and conv2"
    assert W % 8 == 0, "W must be sublane-aligned for the in-kernel reshapes"

    if ws is None:                       # identity shortcut (stride=1, Cin == Cout)
        ws = jnp.eye(Cin, Cout, dtype=jnp.float32)
    if bs is None:
        bs = jnp.zeros((Cout,), jnp.float32)

    Gh = _round_up(H + 2, 8)             # expanded conv1 grid (sublane aligned)
    Gw = _round_up(W + 2, 8)
    Cpad = _round_up(Cout, 128)          # lane-dense output channels

    # NCHW -> NHWC; zero-pad so the kernel's conv1 tap slices line up with the
    # expanded grid (x_ext[u, v] == x[u-2, v-2], zero outside).
    x = jnp.transpose(x_nchw, (0, 2, 3, 1)).astype(jnp.float32)
    x_ext = jnp.pad(x, ((0, 0), (2, Gh - H), (2, Gw - W), (0, 0)))

    # Static interior mask for the conv1 output on the expanded grid.
    row_ok = (jnp.arange(Gh) >= 1) & (jnp.arange(Gh) <= H)
    col_ok = (jnp.arange(Gw) >= 1) & (jnp.arange(Gw) <= W)
    mask = (row_ok[:, None] & col_ok[None, :]).astype(jnp.float32)
    mask = jnp.broadcast_to(mask[:, :, None], (Gh, Gw, Cmid))

    # bf16 matmul operands (f32 accumulation inside the kernel); conv2 / shortcut
    # weight columns zero-padded to Cpad so the final stores are lane-dense.
    w1k = w1.reshape(9 * Cin, Cmid).astype(jnp.bfloat16)
    w2k = jnp.zeros((9 * Cmid, Cpad), jnp.bfloat16)
    w2k = w2k.at[:, :Cout].set(w2.reshape(9 * Cmid, Cout).astype(jnp.bfloat16))
    wsk = jnp.zeros((Cin, Cpad), jnp.bfloat16).at[:, :Cout].set(ws.astype(jnp.bfloat16))
    b1k = b1.reshape(1, Cmid).astype(jnp.float32)
    bok = jnp.zeros((1, Cpad), jnp.float32).at[:, :Cout].set(
        (b2 + bs).astype(jnp.float32).reshape(1, Cout))

    # Two "parallel" batch blocks (one per TensorCore on v7x); each block carries
    # Nb images so per-step overhead stays amortized as N grows.
    if N >= 2 and N % 2 == 0:
        num_blocks, Nb = 2, N // 2
    else:
        num_blocks, Nb = N, 1

    kernel = functools.partial(_wide_basic_kernel,
                               Nb, H, W, Gh, Gw, Cin, Cmid, Cpad)

    out_padded = pl.pallas_call(
        kernel,
        out_shape=jax.ShapeDtypeStruct((N, H, W, Cpad), jnp.float32),
        grid_spec=pltpu.PrefetchScalarGridSpec(
            num_scalar_prefetch=0,
            grid=(num_blocks,),
            in_specs=[
                pl.BlockSpec((Nb, Gh + 2, Gw + 2, Cin), lambda n: (n, 0, 0, 0)),
                pl.BlockSpec((Gh, Gw, Cmid), lambda n: (0, 0, 0)),
                pl.BlockSpec((9 * Cin, Cmid), lambda n: (0, 0)),
                pl.BlockSpec((1, Cmid), lambda n: (0, 0)),
                pl.BlockSpec((9 * Cmid, Cpad), lambda n: (0, 0)),
                pl.BlockSpec((Cin, Cpad), lambda n: (0, 0)),
                pl.BlockSpec((1, Cpad), lambda n: (0, 0)),
            ],
            out_specs=pl.BlockSpec((Nb, H, W, Cpad), lambda n: (n, 0, 0, 0)),
        ),
        compiler_params=pltpu.CompilerParams(dimension_semantics=("parallel",)),
    )(x_ext, mask, w1k, b1k, w2k, wsk, bok)

    # Drop the channel padding and return PyTorch's NCHW layout.
    return jnp.transpose(out_padded[..., :Cout], (0, 3, 1, 2))


def reference_forward(x_nchw, w1, b1, w2, b2, ws, bs):
    """Pure-JAX reference (lax.conv, f32) matching the PyTorch forward semantics."""
    Cin, Cout = w1.shape[2], w2.shape[3]
    x = jnp.transpose(x_nchw, (0, 2, 3, 1)).astype(jnp.float32)
    dn = ("NHWC", "HWIO", "NHWC")
    out = jax.lax.conv_general_dilated(jnp.maximum(x, 0.0), w1, (1, 1), "SAME",
                                       dimension_numbers=dn) + b1
    out = jax.lax.conv_general_dilated(jnp.maximum(out, 0.0), w2, (1, 1), "SAME",
                                       dimension_numbers=dn) + b2
    sc = jax.lax.conv_general_dilated(x, ws.reshape(1, 1, Cin, Cout), (1, 1), "SAME",
                                      dimension_numbers=dn) + bs
    return jnp.transpose(out + sc, (0, 3, 1, 2))


if __name__ == "__main__":
    # Small shapes consistent with the module: batch=2, in_planes=4, planes=8,
    # spatial 16x16, stride=1, dropout_rate=0.0, use_bn=False.
    N, Cin, H, W = 2, 4, 16, 16
    Cout = 8

    key = jax.random.PRNGKey(0)
    k = jax.random.split(key, 7)
    x = jax.random.normal(k[0], (N, Cin, H, W), jnp.float32)
    w1 = 0.1 * jax.random.normal(k[1], (3, 3, Cin, Cout), jnp.float32)
    b1 = 0.1 * jax.random.normal(k[2], (Cout,), jnp.float32)
    w2 = 0.1 * jax.random.normal(k[3], (3, 3, Cout, Cout), jnp.float32)
    b2 = 0.1 * jax.random.normal(k[4], (Cout,), jnp.float32)
    ws = 0.1 * jax.random.normal(k[5], (Cin, Cout), jnp.float32)   # 1x1 shortcut conv
    bs = 0.1 * jax.random.normal(k[6], (Cout,), jnp.float32)

    out = wide_basic_forward(x, w1, b1, w2, b2, ws, bs)
    out = jax.block_until_ready(out)

    ref = reference_forward(x, w1, b1, w2, b2, ws, bs)
    assert out.shape == (N, Cout, H, W), out.shape
    # bf16 matmul inputs (f32 accumulation) -> looser tolerance than a pure-f32 path.
    err = float(jnp.max(jnp.abs(out - ref)))
    assert err < 5e-2, err

    print("KERNEL_OK")
</pallas_src>

<mosaic_0001>
module attributes {stable_mosaic.version = 11 : i64} {
  func.func @_wide_basic_kernel(%arg0: i32, %arg1: memref<1x26x26x4xf32, #tpu.memory_space<vmem>>, %arg2: memref<24x24x8xf32, #tpu.memory_space<vmem>>, %arg3: memref<36x8xbf16, #tpu.memory_space<vmem>>, %arg4: memref<1x8xf32, #tpu.memory_space<vmem>>, %arg5: memref<72x128xbf16, #tpu.memory_space<vmem>>, %arg6: memref<4x128xbf16, #tpu.memory_space<vmem>>, %arg7: memref<1x128xf32, #tpu.memory_space<vmem>>, %arg8: memref<1x16x16x128xf32, #tpu.memory_space<vmem>>) attributes {dimension_semantics = [#tpu.dimension_semantics<parallel>], iteration_bounds = array<i64: 2>, scalar_prefetch = 0 : i64, scratch_operands = 0 : i64, tpu.core_type = #tpu.core_type<tc>, window_params = [{transform_indices = @transform_0, window_bounds = array<i64: 1, 26, 26, 4>}, {pipeline_mode = #tpu.pipeline_mode<synchronous>, transform_indices = @transform_1, window_bounds = array<i64: 24, 24, 8>}, {pipeline_mode = #tpu.pipeline_mode<synchronous>, transform_indices = @transform_2, window_bounds = array<i64: 36, 8>}, {pipeline_mode = #tpu.pipeline_mode<synchronous>, transform_indices = @transform_3, window_bounds = array<i64: 1, 8>}, {pipeline_mode = #tpu.pipeline_mode<synchronous>, transform_indices = @transform_4, window_bounds = array<i64: 72, 128>}, {pipeline_mode = #tpu.pipeline_mode<synchronous>, transform_indices = @transform_5, window_bounds = array<i64: 4, 128>}, {pipeline_mode = #tpu.pipeline_mode<synchronous>, transform_indices = @transform_6, window_bounds = array<i64: 1, 128>}, {transform_indices = @transform_7, window_bounds = array<i64: 1, 16, 16, 128>}]} {
    %c0 = arith.constant 0 : index
    %c0_0 = arith.constant 0 : index
    %c0_1 = arith.constant 0 : index
    %c0_2 = arith.constant 0 : index
    %0 = vector.load %arg1[%c0, %c0_0, %c0_1, %c0_2] : memref<1x26x26x4xf32, #tpu.memory_space<vmem>>, vector<1x26x26x4xf32>
    %1 = vector.extract_strided_slice %0 {offsets = [0, 2, 2, 0], sizes = [1, 16, 16, 4], strides = [1, 1, 1, 1]} : vector<1x26x26x4xf32> to vector<1x16x16x4xf32>
    %2 = vector.shape_cast %1 : vector<1x16x16x4xf32> to vector<256x4xf32>
    %3 = arith.truncf %2 : vector<256x4xf32> to vector<256x4xbf16>
    %c0_3 = arith.constant 0 : index
    %c0_4 = arith.constant 0 : index
    %4 = vector.load %arg6[%c0_3, %c0_4] : memref<4x128xbf16, #tpu.memory_space<vmem>>, vector<4x128xbf16>
    %cst = arith.constant dense<0.000000e+00> : vector<256x128xf32>
    %5 = tpu.matmul %3, %4, %cst {dimension_numbers = #tpu.dot_dimension_numbers<[1], [0], [0], [1], [0, 0, 1, 1], [], []>} : vector<256x4xbf16>, vector<4x128xbf16>, vector<256x128xf32> -> vector<256x128xf32>
    %cst_5 = arith.constant 0.000000e+00 : f32
    %6 = vector.broadcast %cst_5 : f32 to vector<1x26x26x4xf32>
    %7 = arith.maximumf %0, %6 : vector<1x26x26x4xf32>
    %8 = vector.extract_strided_slice %7 {offsets = [0, 0, 0, 0], sizes = [1, 24, 24, 4], strides = [1, 1, 1, 1]} : vector<1x26x26x4xf32> to vector<1x24x24x4xf32>
    %9 = vector.shape_cast %8 : vector<1x24x24x4xf32> to vector<576x4xf32>
    %10 = vector.extract_strided_slice %7 {offsets = [0, 0, 1, 0], sizes = [1, 24, 24, 4], strides = [1, 1, 1, 1]} : vector<1x26x26x4xf32> to vector<1x24x24x4xf32>
    %11 = vector.shape_cast %10 : vector<1x24x24x4xf32> to vector<576x4xf32>
    %12 = vector.extract_strided_slice %7 {offsets = [0, 0, 2, 0], sizes = [1, 24, 24, 4], strides = [1, 1, 1, 1]} : vector<1x26x26x4xf32> to vector<1x24x24x4xf32>
    %13 = vector.shape_cast %12 : vector<1x24x24x4xf32> to vector<576x4xf32>
    %14 = vector.extract_strided_slice %7 {offsets = [0, 1, 0, 0], sizes = [1, 24, 24, 4], strides = [1, 1, 1, 1]} : vector<1x26x26x4xf32> to vector<1x24x24x4xf32>
    %15 = vector.shape_cast %14 : vector<1x24x24x4xf32> to vector<576x4xf32>
    %16 = vector.extract_strided_slice %7 {offsets = [0, 1, 1, 0], sizes = [1, 24, 24, 4], strides = [1, 1, 1, 1]} : vector<1x26x26x4xf32> to vector<1x24x24x4xf32>
    %17 = vector.shape_cast %16 : vector<1x24x24x4xf32> to vector<576x4xf32>
    %18 = vector.extract_strided_slice %7 {offsets = [0, 1, 2, 0], sizes = [1, 24, 24, 4], strides = [1, 1, 1, 1]} : vector<1x26x26x4xf32> to vector<1x24x24x4xf32>
    %19 = vector.shape_cast %18 : vector<1x24x24x4xf32> to vector<576x4xf32>
    %20 = vector.extract_strided_slice %7 {offsets = [0, 2, 0, 0], sizes = [1, 24, 24, 4], strides = [1, 1, 1, 1]} : vector<1x26x26x4xf32> to vector<1x24x24x4xf32>
    %21 = vector.shape_cast %20 : vector<1x24x24x4xf32> to vector<576x4xf32>
    %22 = vector.extract_strided_slice %7 {offsets = [0, 2, 1, 0], sizes = [1, 24, 24, 4], strides = [1, 1, 1, 1]} : vector<1x26x26x4xf32> to vector<1x24x24x4xf32>
    %23 = vector.shape_cast %22 : vector<1x24x24x4xf32> to vector<576x4xf32>
    %24 = vector.extract_strided_slice %7 {offsets = [0, 2, 2, 0], sizes = [1, 24, 24, 4], strides = [1, 1, 1, 1]} : vector<1x26x26x4xf32> to vector<1x24x24x4xf32>
    %25 = vector.shape_cast %24 : vector<1x24x24x4xf32> to vector<576x4xf32>
    %26 = tpu.concatenate %9, %11, %13, %15, %17, %19, %21, %23, %25 in 1 : vector<576x4xf32>, vector<576x4xf32>, vector<576x4xf32>, vector<576x4xf32>, vector<576x4xf32>, vector<576x4xf32>, vector<576x4xf32>, vector<576x4xf32>, vector<576x4xf32> -> vector<576x36xf32>
    %27 = arith.truncf %26 : vector<576x36xf32> to vector<576x36xbf16>
    %c0_6 = arith.constant 0 : index
    %c0_7 = arith.constant 0 : index
    %28 = vector.load %arg3[%c0_6, %c0_7] : memref<36x8xbf16, #tpu.memory_space<vmem>>, vector<36x8xbf16>
    %cst_8 = arith.constant dense<0.000000e+00> : vector<576x8xf32>
    %29 = tpu.matmul %27, %28, %cst_8 {dimension_numbers = #tpu.dot_dimension_numbers<[1], [0], [0], [1], [0, 0, 1, 1], [], []>} : vector<576x36xbf16>, vector<36x8xbf16>, vector<576x8xf32> -> vector<576x8xf32>
    %c0_9 = arith.constant 0 : index
    %c0_10 = arith.constant 0 : index
    %30 = vector.load %arg4[%c0_9, %c0_10] : memref<1x8xf32, #tpu.memory_space<vmem>>, vector<1x8xf32>
    %31 = vector.broadcast %30 : vector<1x8xf32> to vector<576x8xf32>
    %32 = arith.addf %29, %31 : vector<576x8xf32>
    %cst_11 = arith.constant 0.000000e+00 : f32
    %33 = vector.broadcast %cst_11 : f32 to vector<576x8xf32>
    %34 = arith.maximumf %32, %33 : vector<576x8xf32>
    %35 = vector.shape_cast %34 : vector<576x8xf32> to vector<1x24x24x8xf32>
    %c0_12 = arith.constant 0 : index
    %c0_13 = arith.constant 0 : index
    %c0_14 = arith.constant 0 : index
    %36 = vector.load %arg2[%c0_12, %c0_13, %c0_14] : memref<24x24x8xf32, #tpu.memory_space<vmem>>, vector<24x24x8xf32>
    %37 = vector.shape_cast %36 : vector<24x24x8xf32> to vector<1x24x24x8xf32>
    %38 = arith.mulf %35, %37 : vector<1x24x24x8xf32>
    %39 = vector.extract_strided_slice %38 {offsets = [0, 0, 0, 0], sizes = [1, 16, 16, 8], strides = [1, 1, 1, 1]} : vector<1x24x24x8xf32> to vector<1x16x16x8xf32>
    %40 = vector.shape_cast %39 : vector<1x16x16x8xf32> to vector<256x8xf32>
    %41 = vector.extract_strided_slice %38 {offsets = [0, 0, 1, 0], sizes = [1, 16, 16, 8], strides = [1, 1, 1, 1]} : vector<1x24x24x8xf32> to vector<1x16x16x8xf32>
    %42 = vector.shape_cast %41 : vector<1x16x16x8xf32> to vector<256x8xf32>
    %43 = vector.extract_strided_slice %38 {offsets = [0, 0, 2, 0], sizes = [1, 16, 16, 8], strides = [1, 1, 1, 1]} : vector<1x24x24x8xf32> to vector<1x16x16x8xf32>
    %44 = vector.shape_cast %43 : vector<1x16x16x8xf32> to vector<256x8xf32>
    %45 = vector.extract_strided_slice %38 {offsets = [0, 1, 0, 0], sizes = [1, 16, 16, 8], strides = [1, 1, 1, 1]} : vector<1x24x24x8xf32> to vector<1x16x16x8xf32>
    %46 = vector.shape_cast %45 : vector<1x16x16x8xf32> to vector<256x8xf32>
    %47 = vector.extract_strided_slice %38 {offsets = [0, 1, 1, 0], sizes = [1, 16, 16, 8], strides = [1, 1, 1, 1]} : vector<1x24x24x8xf32> to vector<1x16x16x8xf32>
    %48 = vector.shape_cast %47 : vector<1x16x16x8xf32> to vector<256x8xf32>
    %49 = vector.extract_strided_slice %38 {offsets = [0, 1, 2, 0], sizes = [1, 16, 16, 8], strides = [1, 1, 1, 1]} : vector<1x24x24x8xf32> to vector<1x16x16x8xf32>
    %50 = vector.shape_cast %49 : vector<1x16x16x8xf32> to vector<256x8xf32>
    %51 = vector.extract_strided_slice %38 {offsets = [0, 2, 0, 0], sizes = [1, 16, 16, 8], strides = [1, 1, 1, 1]} : vector<1x24x24x8xf32> to vector<1x16x16x8xf32>
    %52 = vector.shape_cast %51 : vector<1x16x16x8xf32> to vector<256x8xf32>
    %53 = vector.extract_strided_slice %38 {offsets = [0, 2, 1, 0], sizes = [1, 16, 16, 8], strides = [1, 1, 1, 1]} : vector<1x24x24x8xf32> to vector<1x16x16x8xf32>
    %54 = vector.shape_cast %53 : vector<1x16x16x8xf32> to vector<256x8xf32>
    %55 = vector.extract_strided_slice %38 {offsets = [0, 2, 2, 0], sizes = [1, 16, 16, 8], strides = [1, 1, 1, 1]} : vector<1x24x24x8xf32> to vector<1x16x16x8xf32>
    %56 = vector.shape_cast %55 : vector<1x16x16x8xf32> to vector<256x8xf32>
    %57 = tpu.concatenate %40, %42, %44, %46, %48, %50, %52, %54, %56 in 1 : vector<256x8xf32>, vector<256x8xf32>, vector<256x8xf32>, vector<256x8xf32>, vector<256x8xf32>, vector<256x8xf32>, vector<256x8xf32>, vector<256x8xf32>, vector<256x8xf32> -> vector<256x72xf32>
    %58 = arith.truncf %57 : vector<256x72xf32> to vector<256x72xbf16>
    %c0_15 = arith.constant 0 : index
    %c0_16 = arith.constant 0 : index
    %59 = vector.load %arg5[%c0_15, %c0_16] : memref<72x128xbf16, #tpu.memory_space<vmem>>, vector<72x128xbf16>
    %cst_17 = arith.constant dense<0.000000e+00> : vector<256x128xf32>
    %60 = tpu.matmul %58, %59, %cst_17 {dimension_numbers = #tpu.dot_dimension_numbers<[1], [0], [0], [1], [0, 0, 1, 1], [], []>} : vector<256x72xbf16>, vector<72x128xbf16>, vector<256x128xf32> -> vector<256x128xf32>
    %61 = arith.addf %60, %5 : vector<256x128xf32>
    %c0_18 = arith.constant 0 : index
    %c0_19 = arith.constant 0 : index
    %62 = vector.load %arg7[%c0_18, %c0_19] : memref<1x128xf32, #tpu.memory_space<vmem>>, vector<1x128xf32>
    %63 = vector.broadcast %62 : vector<1x128xf32> to vector<256x128xf32>
    %64 = arith.addf %61, %63 : vector<256x128xf32>
    %65 = vector.shape_cast %64 : vector<256x128xf32> to vector<1x16x16x128xf32>
    %c0_20 = arith.constant 0 : index
    %c0_21 = arith.constant 0 : index
    %c0_22 = arith.constant 0 : index
    %c0_23 = arith.constant 0 : index
    %66 = vector.load %arg8[%c0_20, %c0_21, %c0_22, %c0_23] : memref<1x16x16x128xf32, #tpu.memory_space<vmem>>, vector<1x16x16x128xf32>
    tpu.vector_store %arg8[%c0_20, %c0_21, %c0_22, %c0_23], %65 {strides = array<i32>} : memref<1x16x16x128xf32, #tpu.memory_space<vmem>>, vector<1x16x16x128xf32>,
    return
  }
  func.func @transform_0(%arg0: i32) -> (i32, i32, i32, i32) {
    %c0_i32 = arith.constant 0 : i32
    %c0_i32_0 = arith.constant 0 : i32
    %c0_i32_1 = arith.constant 0 : i32
    %c0_i32_2 = arith.constant 0 : i32
    return %arg0, %c0_i32, %c0_i32_0, %c0_i32_1 : i32, i32, i32, i32
  }
  func.func @transform_1(%arg0: i32) -> (i32, i32, i32) {
    %c0_i32 = arith.constant 0 : i32
    %c0_i32_0 = arith.constant 0 : i32
    %c0_i32_1 = arith.constant 0 : i32
    %c0_i32_2 = arith.constant 0 : i32
    return %c0_i32, %c0_i32_0, %c0_i32_1 : i32, i32, i32
  }
  func.func @transform_2(%arg0: i32) -> (i32, i32) {
    %c0_i32 = arith.constant 0 : i32
    %c0_i32_0 = arith.constant 0 : i32
    %c0_i32_1 = arith.constant 0 : i32
    return %c0_i32, %c0_i32_0 : i32, i32
  }
  func.func @transform_3(%arg0: i32) -> (i32, i32) {
    %c0_i32 = arith.constant 0 : i32
    %c0_i32_0 = arith.constant 0 : i32
    %c0_i32_1 = arith.constant 0 : i32
    return %c0_i32, %c0_i32_0 : i32, i32
  }
  func.func @transform_4(%arg0: i32) -> (i32, i32) {
    %c0_i32 = arith.constant 0 : i32
    %c0_i32_0 = arith.constant 0 : i32
    %c0_i32_1 = arith.constant 0 : i32
    return %c0_i32, %c0_i32_0 : i32, i32
  }
  func.func @transform_5(%arg0: i32) -> (i32, i32) {
    %c0_i32 = arith.constant 0 : i32
    %c0_i32_0 = arith.constant 0 : i32
    %c0_i32_1 = arith.constant 0 : i32
    return %c0_i32, %c0_i32_0 : i32, i32
  }
  func.func @transform_6(%arg0: i32) -> (i32, i32) {
    %c0_i32 = arith.constant 0 : i32
    %c0_i32_0 = arith.constant 0 : i32
    %c0_i32_1 = arith.constant 0 : i32
    return %c0_i32, %c0_i32_0 : i32, i32
  }
  func.func @transform_7(%arg0: i32) -> (i32, i32, i32, i32) {
    %c0_i32 = arith.constant 0 : i32
    %c0_i32_0 = arith.constant 0 : i32
    %c0_i32_1 = arith.constant 0 : i32
    %c0_i32_2 = arith.constant 0 : i32
    return %arg0, %c0_i32, %c0_i32_0, %c0_i32_1 : i32, i32, i32, i32
  }
}

</mosaic_0001>

<llo_original>
// kernel: tpu_custom_call.1
$region0: #{tpu_custom_call.1}
  #allocation0 [shape = 'u32[]', space=smem, size = 0x4, offset = 0x4, fixed_abs, tag = 'smem constant byte address 0x4 - core index']
  #allocation1 [shape = 'u32[72,128]{1,0:T(1,128)}', space=vmem, size = 0x9000, scoped, tag = 'internal scratch']
  %s0 = inlined_call_operand.vmem [shape: f32[2,26,26,4], index: 0, kind: input, shape index: {}]
  %s1 = inlined_call_operand.vmem [shape: f32[24,24,8], index: 1, kind: input, shape index: {}]
  %s2 = inlined_call_operand.vmem [shape: bf16[36,8], index: 2, kind: input, shape index: {}]
  %s3 = inlined_call_operand.vmem [shape: f32[1,8], index: 3, kind: input, shape index: {}]
  %s4 = inlined_call_operand.vmem [shape: bf16[72,128], index: 4, kind: input, shape index: {}]
  %s5 = inlined_call_operand.vmem [shape: bf16[4,128], index: 5, kind: input, shape index: {}]
  %s6 = inlined_call_operand.vmem [shape: f32[1,128], index: 6, kind: input, shape index: {}]
  %s7 = inlined_call_operand.hbm [shape: f32[2,16,16,128], index: 7, kind: output, shape index: {}]
  %s8 = sld [smem:[#allocation0]]
  $region61: #{tpu_custom_call.1} parent=0
    _
  %s10 = ssub.s32 1, %s8
  %s11 = scalar_select 0, %s10, %s8
  $region1: #{tpu_custom_call.1} parent=0
    #allocation2 [shape = 'u8[262144]{0}', space=vmem, size = 0x40000, scoped, tag = 'output window, operand 0']
    #allocation3 [shape = 's32[2]{0}', space=sflag, size = 0x8, scoped, tag = 'scoped memory for tpu_custom_call.1']
    %12 = vsyncpa [#allocation3], 0
    %s13 = scalar_lea.sflag [#allocation3], 1
    %14 = vsyncpa %s13, 0
    loop: start=0, step=1, limit=4
    $region2: #{tpu_custom_call.1} parent=1 // loop_pre_header
      _
    $region3: #{tpu_custom_call.1} parent=1 // loop_header
      %s16 = sphi 0, %s20
      %p17 = scmp.ge.s32.totalorder %s16, 4
      %s26 = sphi 0, %s28
      %s29 = sphi 0, %s26
      %s30 = sphi 0, %s29
      %s46 = sphi 0, %s30
      %s50 = sphi 0, %s50
      %s52 = sphi 0, %s50
      %s53 = sphi 0, %s52
      %s67 = sphi 0, %s53
      %s71 = sphi 0, %s71
      %s73 = sphi 0, %s71
      %s74 = sphi 0, %s73
      %s88 = sphi 0, %s74
      %s92 = sphi 0, %s92
      %s94 = sphi 0, %s92
      %s95 = sphi 0, %s94
      %s109 = sphi 0, %s95
      %s113 = sphi 0, %s113
      %s115 = sphi 0, %s113
      %s116 = sphi 0, %s115
      %s130 = sphi 0, %s116
      %s134 = sphi 0, %s134
      %s136 = sphi 0, %s134
      %s137 = sphi 0, %s136
      %s151 = sphi 0, %s137
      %s155 = sphi 0, %s155
      %s157 = sphi 0, %s155
      %s158 = sphi 0, %s157
      %s172 = sphi 0, %s158
      %s178 = sphi 0, %s180
      %s181 = sphi 0, %s178
      %s182 = sphi 0, %s181
      %s198 = sphi 0, %s182
    $region4: #{tpu_custom_call.1} parent=1 // loop_header_branch
      %19 = sbr.rel (%p17) target = $region8
    $region5: #{tpu_custom_call.1} parent=1 // loop_body
      %s21 = ssub.s32 %s16, 1
      %s22 = ssub.s32 %s16, 2
      %s23 = sadd.s32 %s16, 1
      %s24 = ssub.s32 %s16, %s23
      %p25 = scmp.eq.s32.totalorder %s24, 0
      %s27 = sadd.s32 %s26, 1
      %s28 = scalar_select %p25, %s26, %s27
      %p31 = pneg %p25
      %p32 = scmp.eq.s32.totalorder %s16, 1
      %p33 = por %p31, %p32
      %p34 = scmp.ne.s32.totalorder %s26, %s29
      %p35 = scmp.eq.s32.totalorder %s16, 0
      %p36 = por %p34, %p35
      %p37 = scmp.ne.s32.totalorder %s26, %s29
      %p38 = scmp.eq.s32.totalorder %s21, 1
      %p39 = por %p37, %p38
      %p40 = scmp.ne.s32.totalorder %s29, %s30
      %p41 = scmp.eq.s32.totalorder %s21, 0
      %p42 = por %p40, %p41
      %p43 = scmp.ne.s32.totalorder %s29, %s30
      %p44 = scmp.eq.s32.totalorder %s22, 1
      %p45 = por %p43, %p44
      %p47 = scmp.ne.s32.totalorder %s30, %s46
      %p48 = scmp.eq.s32.totalorder %s22, 0
      %p49 = por %p47, %p48
      %s51 = sadd.s32 %s50, 1
      %p54 = scmp.eq.s32.totalorder %s16, 1
      %p55 = scmp.ne.s32.totalorder %s50, %s52
      %p56 = scmp.eq.s32.totalorder %s16, 0
      %p57 = por %p55, %p56
      %p58 = scmp.ne.s32.totalorder %s50, %s52
      %p59 = scmp.eq.s32.totalorder %s21, 1
      %p60 = por %p58, %p59
      %p61 = scmp.ne.s32.totalorder %s52, %s53
      %p62 = scmp.eq.s32.totalorder %s21, 0
      %p63 = por %p61, %p62
      %p64 = scmp.ne.s32.totalorder %s52, %s53
      %p65 = scmp.eq.s32.totalorder %s22, 1
      %p66 = por %p64, %p65
      %p68 = scmp.ne.s32.totalorder %s53, %s67
      %p69 = scmp.eq.s32.totalorder %s22, 0
      %p70 = por %p68, %p69
      %s72 = sadd.s32 %s71, 1
      %p75 = scmp.eq.s32.totalorder %s16, 1
      %p76 = scmp.ne.s32.totalorder %s71, %s73
      %p77 = scmp.eq.s32.totalorder %s16, 0
      %p78 = por %p76, %p77
      %p79 = scmp.ne.s32.totalorder %s71, %s73
      %p80 = scmp.eq.s32.totalorder %s21, 1
      %p81 = por %p79, %p80
      %p82 = scmp.ne.s32.totalorder %s73, %s74
      %p83 = scmp.eq.s32.totalorder %s21, 0
      %p84 = por %p82, %p83
      %p85 = scmp.ne.s32.totalorder %s73, %s74
      %p86 = scmp.eq.s32.totalorder %s22, 1
      %p87 = por %p85, %p86
      %p89 = scmp.ne.s32.totalorder %s74, %s88
      %p90 = scmp.eq.s32.totalorder %s22, 0
      %p91 = por %p89, %p90
      %s93 = sadd.s32 %s92, 1
      %p96 = scmp.eq.s32.totalorder %s16, 1
      %p97 = scmp.ne.s32.totalorder %s92, %s94
      %p98 = scmp.eq.s32.totalorder %s16, 0
      %p99 = por %p97, %p98
      %p100 = scmp.ne.s32.totalorder %s92, %s94
      %p101 = scmp.eq.s32.totalorder %s21, 1
      %p102 = por %p100, %p101
      %p103 = scmp.ne.s32.totalorder %s94, %s95
      %p104 = scmp.eq.s32.totalorder %s21, 0
      %p105 = por %p103, %p104
      %p106 = scmp.ne.s32.totalorder %s94, %s95
      %p107 = scmp.eq.s32.totalorder %s22, 1
      %p108 = por %p106, %p107
      %p110 = scmp.ne.s32.totalorder %s95, %s109
      %p111 = scmp.eq.s32.totalorder %s22, 0
      %p112 = por %p110, %p111
      %s114 = sadd.s32 %s113, 1
      %p117 = scmp.eq.s32.totalorder %s16, 1
      %p118 = scmp.ne.s32.totalorder %s113, %s115
      %p119 = scmp.eq.s32.totalorder %s16, 0
      %p120 = por %p118, %p119
      %p121 = scmp.ne.s32.totalorder %s113, %s115
      %p122 = scmp.eq.s32.totalorder %s21, 1
      %p123 = por %p121, %p122
      %p124 = scmp.ne.s32.totalorder %s115, %s116
      %p125 = scmp.eq.s32.totalorder %s21, 0
      %p126 = por %p124, %p125
      %p127 = scmp.ne.s32.totalorder %s115, %s116
      %p128 = scmp.eq.s32.totalorder %s22, 1
      %p129 = por %p127, %p128
      %p131 = scmp.ne.s32.totalorder %s116, %s130
      %p132 = scmp.eq.s32.totalorder %s22, 0
      %p133 = por %p131, %p132
      %s135 = sadd.s32 %s134, 1
      %p138 = scmp.eq.s32.totalorder %s16, 1
      %p139 = scmp.ne.s32.totalorder %s134, %s136
      %p140 = scmp.eq.s32.totalorder %s16, 0
      %p141 = por %p139, %p140
      %p142 = scmp.ne.s32.totalorder %s134, %s136
      %p143 = scmp.eq.s32.totalorder %s21, 1
      %p144 = por %p142, %p143
      %p145 = scmp.ne.s32.totalorder %s136, %s137
      %p146 = scmp.eq.s32.totalorder %s21, 0
      %p147 = por %p145, %p146
      %p148 = scmp.ne.s32.totalorder %s136, %s137
      %p149 = scmp.eq.s32.totalorder %s22, 1
      %p150 = por %p148, %p149
      %p152 = scmp.ne.s32.totalorder %s137, %s151
      %p153 = scmp.eq.s32.totalorder %s22, 0
      %p154 = por %p152, %p153
      %s156 = sadd.s32 %s155, 1
      %p159 = scmp.eq.s32.totalorder %s16, 1
      %p160 = scmp.ne.s32.totalorder %s155, %s157
      %p161 = scmp.eq.s32.totalorder %s16, 0
      %p162 = por %p160, %p161
      %p163 = scmp.ne.s32.totalorder %s155, %s157
      %p164 = scmp.eq.s32.totalorder %s21, 1
      %p165 = por %p163, %p164
      %p166 = scmp.ne.s32.totalorder %s157, %s158
      %p167 = scmp.eq.s32.totalorder %s21, 0
      %p168 = por %p166, %p167
      %p169 = scmp.ne.s32.totalorder %s157, %s158
      %p170 = scmp.eq.s32.totalorder %s22, 1
      %p171 = por %p169, %p170
      %p173 = scmp.ne.s32.totalorder %s158, %s172
      %p174 = scmp.eq.s32.totalorder %s22, 0
      %p175 = por %p173, %p174
      %s176 = ssub.s32 %s16, %s23
      %p177 = scmp.eq.s32.totalorder %s176, 0
      %s179 = sadd.s32 %s178, 1
      %s180 = scalar_select %p177, %s178, %s179
      %p183 = pneg %p177
      %p184 = scmp.eq.s32.totalorder %s16, 1
      %p185 = por %p183, %p184
      %p186 = scmp.ne.s32.totalorder %s178, %s181
      %p187 = scmp.eq.s32.totalorder %s16, 0
      %p188 = por %p186, %p187
      %p189 = scmp.ne.s32.totalorder %s178, %s181
      %p190 = scmp.eq.s32.totalorder %s21, 1
      %p191 = por %p189, %p190
      %p192 = scmp.ne.s32.totalorder %s181, %s182
      %p193 = scmp.eq.s32.totalorder %s21, 0
      %p194 = por %p192, %p193
      %p195 = scmp.ne.s32.totalorder %s181, %s182
      %p196 = scmp.eq.s32.totalorder %s22, 1
      %p197 = por %p195, %p196
      %p199 = scmp.ne.s32.totalorder %s182, %s198
      %p200 = scmp.eq.s32.totalorder %s22, 0
      %p201 = por %p199, %p200
      %p202 = scmp.le.s32.totalorder 1, %s16
      %p203 = scmp.lt.s32.totalorder %s16, 3
      %p204 = pnand %p202, %p203
      %p205 = pneg %p204
      // Predicated region
      $region9: #{tpu_custom_call.1} parent=5 // pred_check
        _
      $region10: #{tpu_custom_call.1} parent=5 // pred_check_branch
        %207 = sbr.rel (%p204) target = $region12
      $region11: #{tpu_custom_call.1} parent=5 // pred_region
        %s208 = ssub.s32 %s16, 1
        // Predicated region
        $region13: #{tpu_custom_call.1} parent=11 // pred_check
          %p209 = pneg %p63
        $region14: #{tpu_custom_call.1} parent=11 // pred_check_branch
          %211 = sbr.rel (%p209) target = $region16
        $region15: #{tpu_custom_call.1} parent=11 // pred_region
          _
        $region16: #{tpu_custom_call.1} parent=11 // pred_fallthru
          _
        // Predicated region
        $region17: #{tpu_custom_call.1} parent=11 // pred_check
          %p212 = pneg %p84
        $region18: #{tpu_custom_call.1} parent=11 // pred_check_branch
          %214 = sbr.rel (%p212) target = $region20
        $region19: #{tpu_custom_call.1} parent=11 // pred_region
          _
        $region20: #{tpu_custom_call.1} parent=11 // pred_fallthru
          _
        // Predicated region
        $region21: #{tpu_custom_call.1} parent=11 // pred_check
          %p215 = pneg %p105
        $region22: #{tpu_custom_call.1} parent=11 // pred_check_branch
          %217 = sbr.rel (%p215) target = $region24
        $region23: #{tpu_custom_call.1} parent=11 // pred_region
          _
        $region24: #{tpu_custom_call.1} parent=11 // pred_fallthru
          _
        // Predicated region
        $region25: #{tpu_custom_call.1} parent=11 // pred_check
          %p218 = pneg %p126
        $region26: #{tpu_custom_call.1} parent=11 // pred_check_branch
          %220 = sbr.rel (%p218) target = $region28
        $region27: #{tpu_custom_call.1} parent=11 // pred_region
          _
        $region28: #{tpu_custom_call.1} parent=11 // pred_fallthru
          _
        // Predicated region
        $region29: #{tpu_custom_call.1} parent=11 // pred_check
          %p221 = pneg %p147
        $region30: #{tpu_custom_call.1} parent=11 // pred_check_branch
          %223 = sbr.rel (%p221) target = $region32
        $region31: #{tpu_custom_call.1} parent=11 // pred_region
          _
        $region32: #{tpu_custom_call.1} parent=11 // pred_fallthru
          _
        // Predicated region
        $region33: #{tpu_custom_call.1} parent=11 // pred_check
          %p224 = pneg %p168
        $region34: #{tpu_custom_call.1} parent=11 // pred_check_branch
          %226 = sbr.rel (%p224) target = $region36
        $region35: #{tpu_custom_call.1} parent=11 // pred_region
          _
        $region36: #{tpu_custom_call.1} parent=11 // pred_fallthru
          _
      $region12: #{tpu_custom_call.1} parent=5 // pred_fallthru
        _
      %p227 = scmp.lt.s32.totalorder %s16, 2
      // Predicated region
      $region37: #{tpu_custom_call.1} parent=5 // pred_check
        %p228 = pneg %p227
      $region38: #{tpu_custom_call.1} parent=5 // pred_check_branch
        %230 = sbr.rel (%p228) target = $region40
      $region39: #{tpu_custom_call.1} parent=5 // pred_region
        // Predicated region
        $region41: #{tpu_custom_call.1} parent=39 // pred_check
          %p231 = pneg %p36
        $region42: #{tpu_custom_call.1} parent=39 // pred_check_branch
          %233 = sbr.rel (%p231) target = $region44
        $region43: #{tpu_custom_call.1} parent=39 // pred_region
          %p234 = scmp.lt.s32.totalorder %s16, 1
          %s235 = scalar_select %p234, %s16, 1
          %s236 = smul.addr %s235, 104
          %s237 = smul.addr %s236, 8
          %s238 = scalar_lea.vmem %s0, %s237
        $region44: #{tpu_custom_call.1} parent=39 // pred_fallthru
          _
      $region40: #{tpu_custom_call.1} parent=5 // pred_fallthru
        _
      %p239 = scmp.le.s32.totalorder 1, %s16
      %p240 = scmp.lt.s32.totalorder %s16, 3
      %p241 = pnand %p239, %p240
      %p242 = pneg %p241
      // Predicated region
      $region45: #{tpu_custom_call.1} parent=5 // pred_check
        _
      $region46: #{tpu_custom_call.1} parent=5 // pred_check_branch
        %244 = sbr.rel (%p241) target = $region48
      $region47: #{tpu_custom_call.1} parent=5 // pred_region
        %s245 = ssub.s32 %s16, 1
        %p246 = scmp.lt.s32.totalorder %s21, 1
        %s247 = scalar_select %p246, %s21, 1
        %s248 = smul.addr %s247, 104
        %s249 = smul.addr %s248, 8
        %s250 = scalar_lea.vmem %s0, %s249
        %p251 = pneg %p42
        %p252 = pneg %p39
        %p253 = pneg %p63
        %p254 = pneg %p60
        %p255 = pneg %p84
        %p256 = pneg %p81
        %p257 = pneg %p105
        %p258 = pneg %p102
        %p259 = pneg %p126
        %p260 = pneg %p123
        %p261 = pneg %p147
        %p262 = pneg %p144
        %p263 = pneg %p168
        %p264 = pneg %p165
        %p265 = pneg %p194
        %p266 = pneg %p191
        %s267 = sand.u32 %s181, 1
        %s268 = scalar_lea.sflag [#allocation3], %s267
        %s269 = sand.u32 %s181, 1
        %s270 = smul.addr %s269, 256
        %s271 = scalar_lea.vmem [#allocation2], %s270
        %p272 = scmp.lt.s32.totalorder %s21, 1
        %s273 = scalar_select %p272, %s21, 1
        %s274 = smul.addr %s273, 104
        %s275 = smul.addr %s274, 8
        %s276 = scalar_lea.vmem %s0, %s275
        %v278 = vld [vmem:[%s276] sm:$0xff]
        %v279 = vld [vmem:[%s276 + $0x8] sm:$0xff]
        %v280 = vld [vmem:[%s276 + $0x10] sm:$0xff]
        %v281 = vld [vmem:[%s276 + $0x18] sm:$0x3]
        %v282 = vld [vmem:[%s276 + $0x20] sm:$0xff]
        %v283 = vld [vmem:[%s276 + $0x28] sm:$0xff]
        %v284 = vld [vmem:[%s276 + $0x30] sm:$0xff]
        %v285 = vld [vmem:[%s276 + $0x38] sm:$0x3]
        %v286 = vld [vmem:[%s276 + $0x40] sm:$0xff]
        %v287 = vld [vmem:[%s276 + $0x48] sm:$0xff]
        %v288 = vld [vmem:[%s276 + $0x50] sm:$0xff]
        %v289 = vld [vmem:[%s276 + $0x58] sm:$0x3]
        %v290 = vld [vmem:[%s276 + $0x60] sm:$0xff]
        %v291 = vld [vmem:[%s276 + $0x68] sm:$0xff]
        %v292 = vld [vmem:[%s276 + $0x70] sm:$0xff]
        %v293 = vld [vmem:[%s276 + $0x78] sm:$0x3]
        %v294 = vld [vmem:[%s276 + $0x80] sm:$0xff]
        %v295 = vld [vmem:[%s276 + $0x88] sm:$0xff]
        %v296 = vld [vmem:[%s276 + $0x90] sm:$0xff]
        %v297 = vld [vmem:[%s276 + $0x98] sm:$0x3]
        %v298 = vld [vmem:[%s276 + $0xa0] sm:$0xff]
        %v299 = vld [vmem:[%s276 + $0xa8] sm:$0xff]
        %v300 = vld [vmem:[%s276 + $0xb0] sm:$0xff]
        %v301 = vld [vmem:[%s276 + $0xb8] sm:$0x3]
        %v302 = vld [vmem:[%s276 + $0xc0] sm:$0xff]
        %v303 = vld [vmem:[%s276 + $0xc8] sm:$0xff]
        %v304 = vld [vmem:[%s276 + $0xd0] sm:$0xff]
        %v305 = vld [vmem:[%s276 + $0xd8] sm:$0x3]
        %v306 = vld [vmem:[%s276 + $0xe0] sm:$0xff]
        %v307 = vld [vmem:[%s276 + $0xe8] sm:$0xff]
        %v308 = vld [vmem:[%s276 + $0xf0] sm:$0xff]
        %v309 = vld [vmem:[%s276 + $0xf8] sm:$0x3]
        %v310 = vld [vmem:[%s276 + $0x100] sm:$0xff]
        %v311 = vld [vmem:[%s276 + $0x108] sm:$0xff]
        %v312 = vld [vmem:[%s276 + $0x110] sm:$0xff]
        %v313 = vld [vmem:[%s276 + $0x118] sm:$0x3]
        %v314 = vld [vmem:[%s276 + $0x120] sm:$0xff]
        %v315 = vld [vmem:[%s276 + $0x128] sm:$0xff]
        %v316 = vld [vmem:[%s276 + $0x130] sm:$0xff]
        %v317 = vld [vmem:[%s276 + $0x138] sm:$0x3]
        %v318 = vld [vmem:[%s276 + $0x140] sm:$0xff]
        %v319 = vld [vmem:[%s276 + $0x148] sm:$0xff]
        %v320 = vld [vmem:[%s276 + $0x150] sm:$0xff]
        %v321 = vld [vmem:[%s276 + $0x158] sm:$0x3]
        %v322 = vld [vmem:[%s276 + $0x160] sm:$0xff]
        %v323 = vld [vmem:[%s276 + $0x168] sm:$0xff]
        %v324 = vld [vmem:[%s276 + $0x170] sm:$0xff]
        %v325 = vld [vmem:[%s276 + $0x178] sm:$0x3]
        %v326 = vld [vmem:[%s276 + $0x180] sm:$0xff]
        %v327 = vld [vmem:[%s276 + $0x188] sm:$0xff]
        %v328 = vld [vmem:[%s276 + $0x190] sm:$0xff]
        %v329 = vld [vmem:[%s276 + $0x198] sm:$0x3]
        %v330 = vld [vmem:[%s276 + $0x1a0] sm:$0xff]
        %v331 = vld [vmem:[%s276 + $0x1a8] sm:$0xff]
        %v332 = vld [vmem:[%s276 + $0x1b0] sm:$0xff]
        %v333 = vld [vmem:[%s276 + $0x1b8] sm:$0x3]
        %v334 = vld [vmem:[%s276 + $0x1c0] sm:$0xff]
        %v335 = vld [vmem:[%s276 + $0x1c8] sm:$0xff]
        %v336 = vld [vmem:[%s276 + $0x1d0] sm:$0xff]
        %v337 = vld [vmem:[%s276 + $0x1d8] sm:$0x3]
        %v338 = vld [vmem:[%s276 + $0x1e0] sm:$0xff]
        %v339 = vld [vmem:[%s276 + $0x1e8] sm:$0xff]
        %v340 = vld [vmem:[%s276 + $0x1f0] sm:$0xff]
        %v341 = vld [vmem:[%s276 + $0x1f8] sm:$0x3]
        %v342 = vld [vmem:[%s276 + $0x200] sm:$0xff]
        %v343 = vld [vmem:[%s276 + $0x208] sm:$0xff]
        %v344 = vld [vmem:[%s276 + $0x210] sm:$0xff]
        %v345 = vld [vmem:[%s276 + $0x218] sm:$0x3]
        %v346 = vld [vmem:[%s276 + $0x220] sm:$0xff]
        %v347 = vld [vmem:[%s276 + $0x228] sm:$0xff]
        %v348 = vld [vmem:[%s276 + $0x230] sm:$0xff]
        %v349 = vld [vmem:[%s276 + $0x238] sm:$0x3]
        %v350 = vld [vmem:[%s276 + $0x240] sm:$0xff]
        %v351 = vld [vmem:[%s276 + $0x248] sm:$0xff]
        %v352 = vld [vmem:[%s276 + $0x250] sm:$0xff]
        %v353 = vld [vmem:[%s276 + $0x258] sm:$0x3]
        %v354 = vld [vmem:[%s276 + $0x260] sm:$0xff]
        %v355 = vld [vmem:[%s276 + $0x268] sm:$0xff]
        %v356 = vld [vmem:[%s276 + $0x270] sm:$0xff]
        %v357 = vld [vmem:[%s276 + $0x278] sm:$0x3]
        %v358 = vld [vmem:[%s276 + $0x280] sm:$0xff]
        %v359 = vld [vmem:[%s276 + $0x288] sm:$0xff]
        %v360 = vld [vmem:[%s276 + $0x290] sm:$0xff]
        %v361 = vld [vmem:[%s276 + $0x298] sm:$0x3]
        %v362 = vld [vmem:[%s276 + $0x2a0] sm:$0xff]
        %v363 = vld [vmem:[%s276 + $0x2a8] sm:$0xff]
        %v364 = vld [vmem:[%s276 + $0x2b0] sm:$0xff]
        %v365 = vld [vmem:[%s276 + $0x2b8] sm:$0x3]
        %v366 = vld [vmem:[%s276 + $0x2c0] sm:$0xff]
        %v367 = vld [vmem:[%s276 + $0x2c8] sm:$0xff]
        %v368 = vld [vmem:[%s276 + $0x2d0] sm:$0xff]
        %v369 = vld [vmem:[%s276 + $0x2d8] sm:$0x3]
        %v370 = vld [vmem:[%s276 + $0x2e0] sm:$0xff]
        %v371 = vld [vmem:[%s276 + $0x2e8] sm:$0xff]
        %v372 = vld [vmem:[%s276 + $0x2f0] sm:$0xff]
        %v373 = vld [vmem:[%s276 + $0x2f8] sm:$0x3]
        %v374 = vld [vmem:[%s276 + $0x300] sm:$0xff]
        %v375 = vld [vmem:[%s276 + $0x308] sm:$0xff]
        %v376 = vld [vmem:[%s276 + $0x310] sm:$0xff]
        %v377 = vld [vmem:[%s276 + $0x318] sm:$0x3]
        %v378 = vld [vmem:[%s276 + $0x320] sm:$0xff]
        %v379 = vld [vmem:[%s276 + $0x328] sm:$0xff]
        %v380 = vld [vmem:[%s276 + $0x330] sm:$0xff]
        %v381 = vld [vmem:[%s276 + $0x338] sm:$0x3]
        %vm430 = vcmask 1045504
        %v431 = vrot.slane %v286, 2
        %v432 = vrot.slane %v287, 2
        %v433 = vsel %vm430, %v431, %v432
        %v434 = vrot.slane %v288, 2
        %v435 = vsel %vm430, %v432, %v434
        %v436 = vrot.slane %v290, 2
        %v437 = vrot.slane %v291, 2
        %v438 = vsel %vm430, %v436, %v437
        %v439 = vrot.slane %v292, 2
        %v440 = vsel %vm430, %v437, %v439
        %v441 = vrot.slane %v294, 2
        %v442 = vrot.slane %v295, 2
        %v443 = vsel %vm430, %v441, %v442
        %v444 = vrot.slane %v296, 2
        %v445 = vsel %vm430, %v442, %v444
        %v446 = vrot.slane %v298, 2
        %v447 = vrot.slane %v299, 2
        %v448 = vsel %vm430, %v446, %v447
        %v449 = vrot.slane %v300, 2
        %v450 = vsel %vm430, %v447, %v449
        %v451 = vrot.slane %v302, 2
        %v452 = vrot.slane %v303, 2
        %v453 = vsel %vm430, %v451, %v452
        %v454 = vrot.slane %v304, 2
        %v455 = vsel %vm430, %v452, %v454
        %v456 = vrot.slane %v306, 2
        %v457 = vrot.slane %v307, 2
        %v458 = vsel %vm430, %v456, %v457
        %v459 = vrot.slane %v308, 2
        %v460 = vsel %vm430, %v457, %v459
        %v461 = vrot.slane %v310, 2
        %v462 = vrot.slane %v311, 2
        %v463 = vsel %vm430, %v461, %v462
        %v464 = vrot.slane %v312, 2
        %v465 = vsel %vm430, %v462, %v464
        %v466 = vrot.slane %v314, 2
        %v467 = vrot.slane %v315, 2
        %v468 = vsel %vm430, %v466, %v467
        %v469 = vrot.slane %v316, 2
        %v470 = vsel %vm430, %v467, %v469
        %v471 = vrot.slane %v318, 2
        %v472 = vrot.slane %v319, 2
        %v473 = vsel %vm430, %v471, %v472
        %v474 = vrot.slane %v320, 2
        %v475 = vsel %vm430, %v472, %v474
        %v476 = vrot.slane %v322, 2
        %v477 = vrot.slane %v323, 2
        %v478 = vsel %vm430, %v476, %v477
        %v479 = vrot.slane %v324, 2
        %v480 = vsel %vm430, %v477, %v479
        %v481 = vrot.slane %v326, 2
        %v482 = vrot.slane %v327, 2
        %v483 = vsel %vm430, %v481, %v482
        %v484 = vrot.slane %v328, 2
        %v485 = vsel %vm430, %v482, %v484
        %v486 = vrot.slane %v330, 2
        %v487 = vrot.slane %v331, 2
        %v488 = vsel %vm430, %v486, %v487
        %v489 = vrot.slane %v332, 2
        %v490 = vsel %vm430, %v487, %v489
        %v491 = vrot.slane %v334, 2
        %v492 = vrot.slane %v335, 2
        %v493 = vsel %vm430, %v491, %v492
        %v494 = vrot.slane %v336, 2
        %v495 = vsel %vm430, %v492, %v494
        %v496 = vrot.slane %v338, 2
        %v497 = vrot.slane %v339, 2
        %v498 = vsel %vm430, %v496, %v497
        %v499 = vrot.slane %v340, 2
        %v500 = vsel %vm430, %v497, %v499
        %v501 = vrot.slane %v342, 2
        %v502 = vrot.slane %v343, 2
        %v503 = vsel %vm430, %v501, %v502
        %v504 = vrot.slane %v344, 2
        %v505 = vsel %vm430, %v502, %v504
        %v506 = vrot.slane %v346, 2
        %v507 = vrot.slane %v347, 2
        %v508 = vsel %vm430, %v506, %v507
        %v509 = vrot.slane %v348, 2
        %v510 = vsel %vm430, %v507, %v509
        %v543 = vpack.c.bf16 %v435, %v433
        %v544 = vpack.c.bf16 %v440, %v438
        %v545 = vpack.c.bf16 %v445, %v443
        %v546 = vpack.c.bf16 %v450, %v448
        %v547 = vpack.c.bf16 %v455, %v453
        %v548 = vpack.c.bf16 %v460, %v458
        %v549 = vpack.c.bf16 %v465, %v463
        %v550 = vpack.c.bf16 %v470, %v468
        %v551 = vpack.c.bf16 %v475, %v473
        %v552 = vpack.c.bf16 %v480, %v478
        %v553 = vpack.c.bf16 %v485, %v483
        %v554 = vpack.c.bf16 %v490, %v488
        %v555 = vpack.c.bf16 %v495, %v493
        %v556 = vpack.c.bf16 %v500, %v498
        %v557 = vpack.c.bf16 %v505, %v503
        %v558 = vpack.c.bf16 %v510, %v508
        %v559 = vld [vmem:[%s5] sm:$0x3]
        %vm560 = vcmask 31744
        %v562 = vsel %vm560, %v543, 0
        %v565 = vsel %vm560, %v544, 0
        %v568 = vsel %vm560, %v545, 0
        %v571 = vsel %vm560, %v546, 0
        %v574 = vsel %vm560, %v547, 0
        %v577 = vsel %vm560, %v548, 0
        %v580 = vsel %vm560, %v549, 0
        %v583 = vsel %vm560, %v550, 0
        %v586 = vsel %vm560, %v551, 0
        %v589 = vsel %vm560, %v552, 0
        %v592 = vsel %vm560, %v553, 0
        %v595 = vsel %vm560, %v554, 0
        %v598 = vsel %vm560, %v555, 0
        %v601 = vsel %vm560, %v556, 0
        %v604 = vsel %vm560, %v557, 0
        %v607 = vsel %vm560, %v558, 0
        %vm609 = vcmask 1041408
        %v611 = vsel %vm609, %v559, 0
        %613 = vmatpush.bf16.msra.mxu0 0
        %614 = vmatpush.bf16.msra.mxu0 0
        %615 = vmatpush.bf16.msra.mxu0 0
        %616 = vmatpush.bf16.msra.mxu0 0
        %617 = vmatpush.bf16.msra.mxu0 0
        %618 = vmatpush.bf16.msra.mxu0 0
        %619 = vmatpush.bf16.msra.mxu0 0
        %620 = vmatpush.bf16.msra.mxu0 %v611
        %621 = vmatmul.bf16.gmra.mxu0 %v562
        %v622 = vpop.f32.mrf.mxu0
        %v623 = vadd.f32 0.0, %v622
        %v624 = vpop.f32.mrf.mxu0
        %v625 = vadd.f32 0.0, %v624
        %626 = vmatmul.bf16.gmra.mxu0 %v565
        %v627 = vpop.f32.mrf.mxu0
        %v628 = vadd.f32 0.0, %v627
        %v629 = vpop.f32.mrf.mxu0
        %v630 = vadd.f32 0.0, %v629
        %631 = vmatmul.bf16.gmra.mxu0 %v568
        %v632 = vpop.f32.mrf.mxu0
        %v633 = vadd.f32 0.0, %v632
        %v634 = vpop.f32.mrf.mxu0
        %v635 = vadd.f32 0.0, %v634
        %636 = vmatmul.bf16.gmra.mxu0 %v571
        %v637 = vpop.f32.mrf.mxu0
        %v638 = vadd.f32 0.0, %v637
        %v639 = vpop.f32.mrf.mxu0
        %v640 = vadd.f32 0.0, %v639
        %641 = vmatmul.bf16.gmra.mxu0 %v574
        %v642 = vpop.f32.mrf.mxu0
        %v643 = vadd.f32 0.0, %v642
        %v644 = vpop.f32.mrf.mxu0
        %v645 = vadd.f32 0.0, %v644
        %646 = vmatmul.bf16.gmra.mxu0 %v577
        %v647 = vpop.f32.mrf.mxu0
        %v648 = vadd.f32 0.0, %v647
        %v649 = vpop.f32.mrf.mxu0
        %v650 = vadd.f32 0.0, %v649
        %651 = vmatmul.bf16.gmra.mxu0 %v580
        %v652 = vpop.f32.mrf.mxu0
        %v653 = vadd.f32 0.0, %v652
        %v654 = vpop.f32.mrf.mxu0
        %v655 = vadd.f32 0.0, %v654
        %656 = vmatmul.bf16.gmra.mxu0 %v583
        %v657 = vpop.f32.mrf.mxu0
        %v658 = vadd.f32 0.0, %v657
        %v659 = vpop.f32.mrf.mxu0
        %v660 = vadd.f32 0.0, %v659
        %661 = vmatmul.bf16.gmra.mxu0 %v586
        %v662 = vpop.f32.mrf.mxu0
        %v663 = vadd.f32 0.0, %v662
        %v664 = vpop.f32.mrf.mxu0
        %v665 = vadd.f32 0.0, %v664
        %666 = vmatmul.bf16.gmra.mxu0 %v589
        %v667 = vpop.f32.mrf.mxu0
        %v668 = vadd.f32 0.0, %v667
        %v669 = vpop.f32.mrf.mxu0
        %v670 = vadd.f32 0.0, %v669
        %671 = vmatmul.bf16.gmra.mxu0 %v592
        %v672 = vpop.f32.mrf.mxu0
        %v673 = vadd.f32 0.0, %v672
        %v674 = vpop.f32.mrf.mxu0
        %v675 = vadd.f32 0.0, %v674
        %676 = vmatmul.bf16.gmra.mxu0 %v595
        %v677 = vpop.f32.mrf.mxu0
        %v678 = vadd.f32 0.0, %v677
        %v679 = vpop.f32.mrf.mxu0
        %v680 = vadd.f32 0.0, %v679
        %681 = vmatmul.bf16.gmra.mxu0 %v598
        %v682 = vpop.f32.mrf.mxu0
        %v683 = vadd.f32 0.0, %v682
        %v684 = vpop.f32.mrf.mxu0
        %v685 = vadd.f32 0.0, %v684
        %686 = vmatmul.bf16.gmra.mxu0 %v601
        %v687 = vpop.f32.mrf.mxu0
        %v688 = vadd.f32 0.0, %v687
        %v689 = vpop.f32.mrf.mxu0
        %v690 = vadd.f32 0.0, %v689
        %691 = vmatmul.bf16.gmra.mxu0 %v604
        %v692 = vpop.f32.mrf.mxu0
        %v693 = vadd.f32 0.0, %v692
        %v694 = vpop.f32.mrf.mxu0
        %v695 = vadd.f32 0.0, %v694
        %696 = vmatmul.bf16.gmra.mxu0 %v607
        %v697 = vpop.f32.mrf.mxu0
        %v698 = vadd.f32 0.0, %v697
        %v699 = vpop.f32.mrf.mxu0
        %v700 = vadd.f32 0.0, %v699
        %701 = vdwg.mxu0
        %v702 = vmax.f32 %v278, 0.0
        %v703 = vmax.f32 %v279, 0.0
        %v704 = vmax.f32 %v280, 0.0
        %v705 = vmax.f32 %v281, 0.0
        %v706 = vmax.f32 %v282, 0.0
        %v707 = vmax.f32 %v283, 0.0
        %v708 = vmax.f32 %v284, 0.0
        %v709 = vmax.f32 %v285, 0.0
        %v710 = vmax.f32 %v286, 0.0
        %v711 = vmax.f32 %v287, 0.0
        %v712 = vmax.f32 %v288, 0.0
        %v713 = vmax.f32 %v289, 0.0
        %v714 = vmax.f32 %v290, 0.0
        %v715 = vmax.f32 %v291, 0.0
        %v716 = vmax.f32 %v292, 0.0
        %v717 = vmax.f32 %v293, 0.0
        %v718 = vmax.f32 %v294, 0.0
        %v719 = vmax.f32 %v295, 0.0
        %v720 = vmax.f32 %v296, 0.0
        %v721 = vmax.f32 %v297, 0.0
        %v722 = vmax.f32 %v298, 0.0
        %v723 = vmax.f32 %v299, 0.0
        %v724 = vmax.f32 %v300, 0.0
        %v725 = vmax.f32 %v301, 0.0
        %v726 = vmax.f32 %v302, 0.0
        %v727 = vmax.f32 %v303, 0.0
        %v728 = vmax.f32 %v304, 0.0
        %v729 = vmax.f32 %v305, 0.0
        %v730 = vmax.f32 %v306, 0.0
        %v731 = vmax.f32 %v307, 0.0
        %v732 = vmax.f32 %v308, 0.0
        %v733 = vmax.f32 %v309, 0.0
        %v734 = vmax.f32 %v310, 0.0
        %v735 = vmax.f32 %v311, 0.0
        %v736 = vmax.f32 %v312, 0.0
        %v737 = vmax.f32 %v313, 0.0
        %v738 = vmax.f32 %v314, 0.0
        %v739 = vmax.f32 %v315, 0.0
        %v740 = vmax.f32 %v316, 0.0
        %v741 = vmax.f32 %v317, 0.0
        %v742 = vmax.f32 %v318, 0.0
        %v743 = vmax.f32 %v319, 0.0
        %v744 = vmax.f32 %v320, 0.0
        %v745 = vmax.f32 %v321, 0.0
        %v746 = vmax.f32 %v322, 0.0
        %v747 = vmax.f32 %v323, 0.0
        %v748 = vmax.f32 %v324, 0.0
        %v749 = vmax.f32 %v325, 0.0
        %v750 = vmax.f32 %v326, 0.0
        %v751 = vmax.f32 %v327, 0.0
        %v752 = vmax.f32 %v328, 0.0
        %v753 = vmax.f32 %v329, 0.0
        %v754 = vmax.f32 %v330, 0.0
        %v755 = vmax.f32 %v331, 0.0
        %v756 = vmax.f32 %v332, 0.0
        %v757 = vmax.f32 %v333, 0.0
        %v758 = vmax.f32 %v334, 0.0
        %v759 = vmax.f32 %v335, 0.0
        %v760 = vmax.f32 %v336, 0.0
        %v761 = vmax.f32 %v337, 0.0
        %v762 = vmax.f32 %v338, 0.0
        %v763 = vmax.f32 %v339, 0.0
        %v764 = vmax.f32 %v340, 0.0
        %v765 = vmax.f32 %v341, 0.0
        %v766 = vmax.f32 %v342, 0.0
        %v767 = vmax.f32 %v343, 0.0
        %v768 = vmax.f32 %v344, 0.0
        %v769 = vmax.f32 %v345, 0.0
        %v770 = vmax.f32 %v346, 0.0
        %v771 = vmax.f32 %v347, 0.0
        %v772 = vmax.f32 %v348, 0.0
        %v773 = vmax.f32 %v349, 0.0
        %v774 = vmax.f32 %v350, 0.0
        %v775 = vmax.f32 %v351, 0.0
        %v776 = vmax.f32 %v352, 0.0
        %v777 = vmax.f32 %v353, 0.0
        %v778 = vmax.f32 %v354, 0.0
        %v779 = vmax.f32 %v355, 0.0
        %v780 = vmax.f32 %v356, 0.0
        %v781 = vmax.f32 %v357, 0.0
        %v782 = vmax.f32 %v358, 0.0
        %v783 = vmax.f32 %v359, 0.0
        %v784 = vmax.f32 %v360, 0.0
        %v785 = vmax.f32 %v361, 0.0
        %v786 = vmax.f32 %v362, 0.0
        %v787 = vmax.f32 %v363, 0.0
        %v788 = vmax.f32 %v364, 0.0
        %v789 = vmax.f32 %v365, 0.0
        %v790 = vmax.f32 %v366, 0.0
        %v791 = vmax.f32 %v367, 0.0
        %v792 = vmax.f32 %v368, 0.0
        %v793 = vmax.f32 %v369, 0.0
        %v794 = vmax.f32 %v370, 0.0
        %v795 = vmax.f32 %v371, 0.0
        %v796 = vmax.f32 %v372, 0.0
        %v797 = vmax.f32 %v373, 0.0
        %v798 = vmax.f32 %v374, 0.0
        %v799 = vmax.f32 %v375, 0.0
        %v800 = vmax.f32 %v376, 0.0
        %v801 = vmax.f32 %v377, 0.0
        %v802 = vmax.f32 %v378, 0.0
        %v803 = vmax.f32 %v379, 0.0
        %v804 = vmax.f32 %v380, 0.0
        %v805 = vmax.f32 %v381, 0.0
        %vm902 = vcmask 1046528
        %v903 = vrot.slane %v702, 1
        %v904 = vrot.slane %v703, 1
        %v905 = vsel %vm902, %v903, %v904
        %v906 = vrot.slane %v704, 1
        %v907 = vsel %vm902, %v904, %v906
        %v908 = vrot.slane %v705, 1
        %v909 = vsel %vm902, %v906, %v908
        %v910 = vrot.slane %v706, 1
        %v911 = vrot.slane %v707, 1
        %v912 = vsel %vm902, %v910, %v911
        %v913 = vrot.slane %v708, 1
        %v914 = vsel %vm902, %v911, %v913
        %v915 = vrot.slane %v709, 1
        %v916 = vsel %vm902, %v913, %v915
        %v917 = vrot.slane %v710, 1
        %v918 = vrot.slane %v711, 1
        %v919 = vsel %vm902, %v917, %v918
        %v920 = vrot.slane %v712, 1
        %v921 = vsel %vm902, %v918, %v920
        %v922 = vrot.slane %v713, 1
        %v923 = vsel %vm902, %v920, %v922
        %v924 = vrot.slane %v714, 1
        %v925 = vrot.slane %v715, 1
        %v926 = vsel %vm902, %v924, %v925
        %v927 = vrot.slane %v716, 1
        %v928 = vsel %vm902, %v925, %v927
        %v929 = vrot.slane %v717, 1
        %v930 = vsel %vm902, %v927, %v929
        %v931 = vrot.slane %v718, 1
        %v932 = vrot.slane %v719, 1
        %v933 = vsel %vm902, %v931, %v932
        %v934 = vrot.slane %v720, 1
        %v935 = vsel %vm902, %v932, %v934
        %v936 = vrot.slane %v721, 1
        %v937 = vsel %vm902, %v934, %v936
        %v938 = vrot.slane %v722, 1
        %v939 = vrot.slane %v723, 1
        %v940 = vsel %vm902, %v938, %v939
        %v941 = vrot.slane %v724, 1
        %v942 = vsel %vm902, %v939, %v941
        %v943 = vrot.slane %v725, 1
        %v944 = vsel %vm902, %v941, %v943
        %v945 = vrot.slane %v726, 1
        %v946 = vrot.slane %v727, 1
        %v947 = vsel %vm902, %v945, %v946
        %v948 = vrot.slane %v728, 1
        %v949 = vsel %vm902, %v946, %v948
        %v950 = vrot.slane %v729, 1
        %v951 = vsel %vm902, %v948, %v950
        %v952 = vrot.slane %v730, 1
        %v953 = vrot.slane %v731, 1
        %v954 = vsel %vm902, %v952, %v953
        %v955 = vrot.slane %v732, 1
        %v956 = vsel %vm902, %v953, %v955
        %v957 = vrot.slane %v733, 1
        %v958 = vsel %vm902, %v955, %v957
        %v959 = vrot.slane %v734, 1
        %v960 = vrot.slane %v735, 1
        %v961 = vsel %vm902, %v959, %v960
        %v962 = vrot.slane %v736, 1
        %v963 = vsel %vm902, %v960, %v962
        %v964 = vrot.slane %v737, 1
        %v965 = vsel %vm902, %v962, %v964
        %v966 = vrot.slane %v738, 1
        %v967 = vrot.slane %v739, 1
        %v968 = vsel %vm902, %v966, %v967
        %v969 = vrot.slane %v740, 1
        %v970 = vsel %vm902, %v967, %v969
        %v971 = vrot.slane %v741, 1
        %v972 = vsel %vm902, %v969, %v971
        %v973 = vrot.slane %v742, 1
        %v974 = vrot.slane %v743, 1
        %v975 = vsel %vm902, %v973, %v974
        %v976 = vrot.slane %v744, 1
        %v977 = vsel %vm902, %v974, %v976
        %v978 = vrot.slane %v745, 1
        %v979 = vsel %vm902, %v976, %v978
        %v980 = vrot.slane %v746, 1
        %v981 = vrot.slane %v747, 1
        %v982 = vsel %vm902, %v980, %v981
        %v983 = vrot.slane %v748, 1
        %v984 = vsel %vm902, %v981, %v983
        %v985 = vrot.slane %v749, 1
        %v986 = vsel %vm902, %v983, %v985
        %v987 = vrot.slane %v750, 1
        %v988 = vrot.slane %v751, 1
        %v989 = vsel %vm902, %v987, %v988
        %v990 = vrot.slane %v752, 1
        %v991 = vsel %vm902, %v988, %v990
        %v992 = vrot.slane %v753, 1
        %v993 = vsel %vm902, %v990, %v992
        %v994 = vrot.slane %v754, 1
        %v995 = vrot.slane %v755, 1
        %v996 = vsel %vm902, %v994, %v995
        %v997 = vrot.slane %v756, 1
        %v998 = vsel %vm902, %v995, %v997
        %v999 = vrot.slane %v757, 1
        %v1000 = vsel %vm902, %v997, %v999
        %v1001 = vrot.slane %v758, 1
        %v1002 = vrot.slane %v759, 1
        %v1003 = vsel %vm902, %v1001, %v1002
        %v1004 = vrot.slane %v760, 1
        %v1005 = vsel %vm902, %v1002, %v1004
        %v1006 = vrot.slane %v761, 1
        %v1007 = vsel %vm902, %v1004, %v1006
        %v1008 = vrot.slane %v762, 1
        %v1009 = vrot.slane %v763, 1
        %v1010 = vsel %vm902, %v1008, %v1009
        %v1011 = vrot.slane %v764, 1
        %v1012 = vsel %vm902, %v1009, %v1011
        %v1013 = vrot.slane %v765, 1
        %v1014 = vsel %vm902, %v1011, %v1013
        %v1015 = vrot.slane %v766, 1
        %v1016 = vrot.slane %v767, 1
        %v1017 = vsel %vm902, %v1015, %v1016
        %v1018 = vrot.slane %v768, 1
        %v1019 = vsel %vm902, %v1016, %v1018
        %v1020 = vrot.slane %v769, 1
        %v1021 = vsel %vm902, %v1018, %v1020
        %v1022 = vrot.slane %v770, 1
        %v1023 = vrot.slane %v771, 1
        %v1024 = vsel %vm902, %v1022, %v1023
        %v1025 = vrot.slane %v772, 1
        %v1026 = vsel %vm902, %v1023, %v1025
        %v1027 = vrot.slane %v773, 1
        %v1028 = vsel %vm902, %v1025, %v1027
        %v1029 = vrot.slane %v774, 1
        %v1030 = vrot.slane %v775, 1
        %v1031 = vsel %vm902, %v1029, %v1030
        %v1032 = vrot.slane %v776, 1
        %v1033 = vsel %vm902, %v1030, %v1032
        %v1034 = vrot.slane %v777, 1
        %v1035 = vsel %vm902, %v1032, %v1034
        %v1036 = vrot.slane %v778, 1
        %v1037 = vrot.slane %v779, 1
        %v1038 = vsel %vm902, %v1036, %v1037
        %v1039 = vrot.slane %v780, 1
        %v1040 = vsel %vm902, %v1037, %v1039
        %v1041 = vrot.slane %v781, 1
        %v1042 = vsel %vm902, %v1039, %v1041
        %v1043 = vrot.slane %v782, 1
        %v1044 = vrot.slane %v783, 1
        %v1045 = vsel %vm902, %v1043, %v1044
        %v1046 = vrot.slane %v784, 1
        %v1047 = vsel %vm902, %v1044, %v1046
        %v1048 = vrot.slane %v785, 1
        %v1049 = vsel %vm902, %v1046, %v1048
        %v1050 = vrot.slane %v786, 1
        %v1051 = vrot.slane %v787, 1
        %v1052 = vsel %vm902, %v1050, %v1051
        %v1053 = vrot.slane %v788, 1
        %v1054 = vsel %vm902, %v1051, %v1053
        %v1055 = vrot.slane %v789, 1
        %v1056 = vsel %vm902, %v1053, %v1055
        %v1057 = vrot.slane %v790, 1
        %v1058 = vrot.slane %v791, 1
        %v1059 = vsel %vm902, %v1057, %v1058
        %v1060 = vrot.slane %v792, 1
        %v1061 = vsel %vm902, %v1058, %v1060
        %v1062 = vrot.slane %v793, 1
        %v1063 = vsel %vm902, %v1060, %v1062
        %v1064 = vrot.slane %v794, 1
        %v1065 = vrot.slane %v795, 1
        %v1066 = vsel %vm902, %v1064, %v1065
        %v1067 = vrot.slane %v796, 1
        %v1068 = vsel %vm902, %v1065, %v1067
        %v1069 = vrot.slane %v797, 1
        %v1070 = vsel %vm902, %v1067, %v1069
        %v1071 = vrot.slane %v702, 2
        %v1072 = vrot.slane %v703, 2
        %v1073 = vsel %vm430, %v1071, %v1072
        %v1074 = vrot.slane %v704, 2
        %v1075 = vsel %vm430, %v1072, %v1074
        %v1076 = vrot.slane %v705, 2
        %v1077 = vsel %vm430, %v1074, %v1076
        %v1078 = vrot.slane %v706, 2
        %v1079 = vrot.slane %v707, 2
        %v1080 = vsel %vm430, %v1078, %v1079
        %v1081 = vrot.slane %v708, 2
        %v1082 = vsel %vm430, %v1079, %v1081
        %v1083 = vrot.slane %v709, 2
        %v1084 = vsel %vm430, %v1081, %v1083
        %v1085 = vrot.slane %v710, 2
        %v1086 = vrot.slane %v711, 2
        %v1087 = vsel %vm430, %v1085, %v1086
        %v1088 = vrot.slane %v712, 2
        %v1089 = vsel %vm430, %v1086, %v1088
        %v1090 = vrot.slane %v713, 2
        %v1091 = vsel %vm430, %v1088, %v1090
        %v1092 = vrot.slane %v714, 2
        %v1093 = vrot.slane %v715, 2
        %v1094 = vsel %vm430, %v1092, %v1093
        %v1095 = vrot.slane %v716, 2
        %v1096 = vsel %vm430, %v1093, %v1095
        %v1097 = vrot.slane %v717, 2
        %v1098 = vsel %vm430, %v1095, %v1097
        %v1099 = vrot.slane %v718, 2
        %v1100 = vrot.slane %v719, 2
        %v1101 = vsel %vm430, %v1099, %v1100
        %v1102 = vrot.slane %v720, 2
        %v1103 = vsel %vm430, %v1100, %v1102
        %v1104 = vrot.slane %v721, 2
        %v1105 = vsel %vm430, %v1102, %v1104
        %v1106 = vrot.slane %v722, 2
        %v1107 = vrot.slane %v723, 2
        %v1108 = vsel %vm430, %v1106, %v1107
        %v1109 = vrot.slane %v724, 2
        %v1110 = vsel %vm430, %v1107, %v1109
        %v1111 = vrot.slane %v725, 2
        %v1112 = vsel %vm430, %v1109, %v1111
        %v1113 = vrot.slane %v726, 2
        %v1114 = vrot.slane %v727, 2
        %v1115 = vsel %vm430, %v1113, %v1114
        %v1116 = vrot.slane %v728, 2
        %v1117 = vsel %vm430, %v1114, %v1116
        %v1118 = vrot.slane %v729, 2
        %v1119 = vsel %vm430, %v1116, %v1118
        %v1120 = vrot.slane %v730, 2
        %v1121 = vrot.slane %v731, 2
        %v1122 = vsel %vm430, %v1120, %v1121
        %v1123 = vrot.slane %v732, 2
        %v1124 = vsel %vm430, %v1121, %v1123
        %v1125 = vrot.slane %v733, 2
        %v1126 = vsel %vm430, %v1123, %v1125
        %v1127 = vrot.slane %v734, 2
        %v1128 = vrot.slane %v735, 2
        %v1129 = vsel %vm430, %v1127, %v1128
        %v1130 = vrot.slane %v736, 2
        %v1131 = vsel %vm430, %v1128, %v1130
        %v1132 = vrot.slane %v737, 2
        %v1133 = vsel %vm430, %v1130, %v1132
        %v1134 = vrot.slane %v738, 2
        %v1135 = vrot.slane %v739, 2
        %v1136 = vsel %vm430, %v1134, %v1135
        %v1137 = vrot.slane %v740, 2
        %v1138 = vsel %vm430, %v1135, %v1137
        %v1139 = vrot.slane %v741, 2
        %v1140 = vsel %vm430, %v1137, %v1139
        %v1141 = vrot.slane %v742, 2
        %v1142 = vrot.slane %v743, 2
        %v1143 = vsel %vm430, %v1141, %v1142
        %v1144 = vrot.slane %v744, 2
        %v1145 = vsel %vm430, %v1142, %v1144
        %v1146 = vrot.slane %v745, 2
        %v1147 = vsel %vm430, %v1144, %v1146
        %v1148 = vrot.slane %v746, 2
        %v1149 = vrot.slane %v747, 2
        %v1150 = vsel %vm430, %v1148, %v1149
        %v1151 = vrot.slane %v748, 2
        %v1152 = vsel %vm430, %v1149, %v1151
        %v1153 = vrot.slane %v749, 2
        %v1154 = vsel %vm430, %v1151, %v1153
        %v1155 = vrot.slane %v750, 2
        %v1156 = vrot.slane %v751, 2
        %v1157 = vsel %vm430, %v1155, %v1156
        %v1158 = vrot.slane %v752, 2
        %v1159 = vsel %vm430, %v1156, %v1158
        %v1160 = vrot.slane %v753, 2
        %v1161 = vsel %vm430, %v1158, %v1160
        %v1162 = vrot.slane %v754, 2
        %v1163 = vrot.slane %v755, 2
        %v1164 = vsel %vm430, %v1162, %v1163
        %v1165 = vrot.slane %v756, 2
        %v1166 = vsel %vm430, %v1163, %v1165
        %v1167 = vrot.slane %v757, 2
        %v1168 = vsel %vm430, %v1165, %v1167
        %v1169 = vrot.slane %v758, 2
        %v1170 = vrot.slane %v759, 2
        %v1171 = vsel %vm430, %v1169, %v1170
        %v1172 = vrot.slane %v760, 2
        %v1173 = vsel %vm430, %v1170, %v1172
        %v1174 = vrot.slane %v761, 2
        %v1175 = vsel %vm430, %v1172, %v1174
        %v1176 = vrot.slane %v762, 2
        %v1177 = vrot.slane %v763, 2
        %v1178 = vsel %vm430, %v1176, %v1177
        %v1179 = vrot.slane %v764, 2
        %v1180 = vsel %vm430, %v1177, %v1179
        %v1181 = vrot.slane %v765, 2
        %v1182 = vsel %vm430, %v1179, %v1181
        %v1183 = vrot.slane %v766, 2
        %v1184 = vrot.slane %v767, 2
        %v1185 = vsel %vm430, %v1183, %v1184
        %v1186 = vrot.slane %v768, 2
        %v1187 = vsel %vm430, %v1184, %v1186
        %v1188 = vrot.slane %v769, 2
        %v1189 = vsel %vm430, %v1186, %v1188
        %v1190 = vrot.slane %v770, 2
        %v1191 = vrot.slane %v771, 2
        %v1192 = vsel %vm430, %v1190, %v1191
        %v1193 = vrot.slane %v772, 2
        %v1194 = vsel %vm430, %v1191, %v1193
        %v1195 = vrot.slane %v773, 2
        %v1196 = vsel %vm430, %v1193, %v1195
        %v1197 = vrot.slane %v774, 2
        %v1198 = vrot.slane %v775, 2
        %v1199 = vsel %vm430, %v1197, %v1198
        %v1200 = vrot.slane %v776, 2
        %v1201 = vsel %vm430, %v1198, %v1200
        %v1202 = vrot.slane %v777, 2
        %v1203 = vsel %vm430, %v1200, %v1202
        %v1204 = vrot.slane %v778, 2
        %v1205 = vrot.slane %v779, 2
        %v1206 = vsel %vm430, %v1204, %v1205
        %v1207 = vrot.slane %v780, 2
        %v1208 = vsel %vm430, %v1205, %v1207
        %v1209 = vrot.slane %v781, 2
        %v1210 = vsel %vm430, %v1207, %v1209
        %v1211 = vrot.slane %v782, 2
        %v1212 = vrot.slane %v783, 2
        %v1213 = vsel %vm430, %v1211, %v1212
        %v1214 = vrot.slane %v784, 2
        %v1215 = vsel %vm430, %v1212, %v1214
        %v1216 = vrot.slane %v785, 2
        %v1217 = vsel %vm430, %v1214, %v1216
        %v1218 = vrot.slane %v786, 2
        %v1219 = vrot.slane %v787, 2
        %v1220 = vsel %vm430, %v1218, %v1219
        %v1221 = vrot.slane %v788, 2
        %v1222 = vsel %vm430, %v1219, %v1221
        %v1223 = vrot.slane %v789, 2
        %v1224 = vsel %vm430, %v1221, %v1223
        %v1225 = vrot.slane %v790, 2
        %v1226 = vrot.slane %v791, 2
        %v1227 = vsel %vm430, %v1225, %v1226
        %v1228 = vrot.slane %v792, 2
        %v1229 = vsel %vm430, %v1226, %v1228
        %v1230 = vrot.slane %v793, 2
        %v1231 = vsel %vm430, %v1228, %v1230
        %v1232 = vrot.slane %v794, 2
        %v1233 = vrot.slane %v795, 2
        %v1234 = vsel %vm430, %v1232, %v1233
        %v1235 = vrot.slane %v796, 2
        %v1236 = vsel %vm430, %v1233, %v1235
        %v1237 = vrot.slane %v797, 2
        %v1238 = vsel %vm430, %v1235, %v1237
        %v1243 = vrot.slane %v798, 1
        %v1244 = vrot.slane %v799, 1
        %v1245 = vsel %vm902, %v1243, %v1244
        %v1246 = vrot.slane %v800, 1
        %v1247 = vsel %vm902, %v1244, %v1246
        %v1248 = vrot.slane %v801, 1
        %v1249 = vsel %vm902, %v1246, %v1248
        %v1250 = vrot.slane %v798, 2
        %v1251 = vrot.slane %v799, 2
        %v1252 = vsel %vm430, %v1250, %v1251
        %v1253 = vrot.slane %v800, 2
        %v1254 = vsel %vm430, %v1251, %v1253
        %v1255 = vrot.slane %v801, 2
        %v1256 = vsel %vm430, %v1253, %v1255
        %v1261 = vrot.slane %v802, 1
        %v1262 = vrot.slane %v803, 1
        %v1263 = vsel %vm902, %v1261, %v1262
        %v1264 = vrot.slane %v804, 1
        %v1265 = vsel %vm902, %v1262, %v1264
        %v1266 = vrot.slane %v805, 1
        %v1267 = vsel %vm902, %v1264, %v1266
        %v1268 = vrot.slane %v802, 2
        %v1269 = vrot.slane %v803, 2
        %v1270 = vsel %vm430, %v1268, %v1269
        %v1271 = vrot.slane %v804, 2
        %v1272 = vsel %vm430, %v1269, %v1271
        %v1273 = vrot.slane %v805, 2
        %v1274 = vsel %vm430, %v1271, %v1273
        %1275 = vrot.lane.b32.xlu0 %v905, 4
        %v1276 = vpop.permute.xlu0 %1275
        %1277 = vrot.lane.b32.xlu0 %v907, 4
        %v1278 = vpop.permute.xlu0 %1277
        %1279 = vrot.lane.b32.xlu0 %v909, 4
        %v1280 = vpop.permute.xlu0 %1279
        %1281 = vrot.lane.b32.xlu0 %v912, 4
        %v1282 = vpop.permute.xlu0 %1281
        %1283 = vrot.lane.b32.xlu0 %v914, 4
        %v1284 = vpop.permute.xlu0 %1283
        %1285 = vrot.lane.b32.xlu0 %v916, 4
        %v1286 = vpop.permute.xlu0 %1285
        %1287 = vrot.lane.b32.xlu0 %v919, 4
        %v1288 = vpop.permute.xlu0 %1287
        %1289 = vrot.lane.b32.xlu0 %v921, 4
        %v1290 = vpop.permute.xlu0 %1289
        %1291 = vrot.lane.b32.xlu0 %v923, 4
        %v1292 = vpop.permute.xlu0 %1291
        %1293 = vrot.lane.b32.xlu0 %v926, 4
        %v1294 = vpop.permute.xlu0 %1293
        %1295 = vrot.lane.b32.xlu0 %v928, 4
        %v1296 = vpop.permute.xlu0 %1295
        %1297 = vrot.lane.b32.xlu0 %v930, 4
        %v1298 = vpop.permute.xlu0 %1297
        %1299 = vrot.lane.b32.xlu0 %v933, 4
        %v1300 = vpop.permute.xlu0 %1299
        %1301 = vrot.lane.b32.xlu0 %v935, 4
        %v1302 = vpop.permute.xlu0 %1301
        %1303 = vrot.lane.b32.xlu0 %v937, 4
        %v1304 = vpop.permute.xlu0 %1303
        %1305 = vrot.lane.b32.xlu0 %v940, 4
        %v1306 = vpop.permute.xlu0 %1305
        %1307 = vrot.lane.b32.xlu0 %v942, 4
        %v1308 = vpop.permute.xlu0 %1307
        %1309 = vrot.lane.b32.xlu0 %v944, 4
        %v1310 = vpop.permute.xlu0 %1309
        %1311 = vrot.lane.b32.xlu0 %v947, 4
        %v1312 = vpop.permute.xlu0 %1311
        %1313 = vrot.lane.b32.xlu0 %v949, 4
        %v1314 = vpop.permute.xlu0 %1313
        %1315 = vrot.lane.b32.xlu0 %v951, 4
        %v1316 = vpop.permute.xlu0 %1315
        %1317 = vrot.lane.b32.xlu0 %v954, 4
        %v1318 = vpop.permute.xlu0 %1317
        %1319 = vrot.lane.b32.xlu0 %v956, 4
        %v1320 = vpop.permute.xlu0 %1319
        %1321 = vrot.lane.b32.xlu0 %v958, 4
        %v1322 = vpop.permute.xlu0 %1321
        %1323 = vrot.lane.b32.xlu0 %v961, 4
        %v1324 = vpop.permute.xlu0 %1323
        %1325 = vrot.lane.b32.xlu0 %v963, 4
        %v1326 = vpop.permute.xlu0 %1325
        %1327 = vrot.lane.b32.xlu0 %v965, 4
        %v1328 = vpop.permute.xlu0 %1327
        %1329 = vrot.lane.b32.xlu0 %v968, 4
        %v1330 = vpop.permute.xlu0 %1329
        %1331 = vrot.lane.b32.xlu0 %v970, 4
        %v1332 = vpop.permute.xlu0 %1331
        %1333 = vrot.lane.b32.xlu0 %v972, 4
        %v1334 = vpop.permute.xlu0 %1333
        %1335 = vrot.lane.b32.xlu0 %v975, 4
        %v1336 = vpop.permute.xlu0 %1335
        %1337 = vrot.lane.b32.xlu0 %v977, 4
        %v1338 = vpop.permute.xlu0 %1337
        %1339 = vrot.lane.b32.xlu0 %v979, 4
        %v1340 = vpop.permute.xlu0 %1339
        %1341 = vrot.lane.b32.xlu0 %v982, 4
        %v1342 = vpop.permute.xlu0 %1341
        %1343 = vrot.lane.b32.xlu0 %v984, 4
        %v1344 = vpop.permute.xlu0 %1343
        %1345 = vrot.lane.b32.xlu0 %v986, 4
        %v1346 = vpop.permute.xlu0 %1345
        %1347 = vrot.lane.b32.xlu0 %v989, 4
        %v1348 = vpop.permute.xlu0 %1347
        %1349 = vrot.lane.b32.xlu0 %v991, 4
        %v1350 = vpop.permute.xlu0 %1349
        %1351 = vrot.lane.b32.xlu0 %v993, 4
        %v1352 = vpop.permute.xlu0 %1351
        %1353 = vrot.lane.b32.xlu0 %v996, 4
        %v1354 = vpop.permute.xlu0 %1353
        %1355 = vrot.lane.b32.xlu0 %v998, 4
        %v1356 = vpop.permute.xlu0 %1355
        %1357 = vrot.lane.b32.xlu0 %v1000, 4
        %v1358 = vpop.permute.xlu0 %1357
        %1359 = vrot.lane.b32.xlu0 %v1003, 4
        %v1360 = vpop.permute.xlu0 %1359
        %1361 = vrot.lane.b32.xlu0 %v1005, 4
        %v1362 = vpop.permute.xlu0 %1361
        %1363 = vrot.lane.b32.xlu0 %v1007, 4
        %v1364 = vpop.permute.xlu0 %1363
        %1365 = vrot.lane.b32.xlu0 %v1010, 4
        %v1366 = vpop.permute.xlu0 %1365
        %1367 = vrot.lane.b32.xlu0 %v1012, 4
        %v1368 = vpop.permute.xlu0 %1367
        %1369 = vrot.lane.b32.xlu0 %v1014, 4
        %v1370 = vpop.permute.xlu0 %1369
        %1371 = vrot.lane.b32.xlu0 %v1017, 4
        %v1372 = vpop.permute.xlu0 %1371
        %1373 = vrot.lane.b32.xlu0 %v1019, 4
        %v1374 = vpop.permute.xlu0 %1373
        %1375 = vrot.lane.b32.xlu0 %v1021, 4
        %v1376 = vpop.permute.xlu0 %1375
        %1377 = vrot.lane.b32.xlu0 %v1024, 4
        %v1378 = vpop.permute.xlu0 %1377
        %1379 = vrot.lane.b32.xlu0 %v1026, 4
        %v1380 = vpop.permute.xlu0 %1379
        %1381 = vrot.lane.b32.xlu0 %v1028, 4
        %v1382 = vpop.permute.xlu0 %1381
        %1383 = vrot.lane.b32.xlu0 %v1031, 4
        %v1384 = vpop.permute.xlu0 %1383
        %1385 = vrot.lane.b32.xlu0 %v1033, 4
        %v1386 = vpop.permute.xlu0 %1385
        %1387 = vrot.lane.b32.xlu0 %v1035, 4
        %v1388 = vpop.permute.xlu0 %1387
        %1389 = vrot.lane.b32.xlu0 %v1038, 4
        %v1390 = vpop.permute.xlu0 %1389
        %1391 = vrot.lane.b32.xlu0 %v1040, 4
        %v1392 = vpop.permute.xlu0 %1391
        %1393 = vrot.lane.b32.xlu0 %v1042, 4
        %v1394 = vpop.permute.xlu0 %1393
        %1395 = vrot.lane.b32.xlu0 %v1045, 4
        %v1396 = vpop.permute.xlu0 %1395
        %1397 = vrot.lane.b32.xlu0 %v1047, 4
        %v1398 = vpop.permute.xlu0 %1397
        %1399 = vrot.lane.b32.xlu0 %v1049, 4
        %v1400 = vpop.permute.xlu0 %1399
        %1401 = vrot.lane.b32.xlu0 %v1052, 4
        %v1402 = vpop.permute.xlu0 %1401
        %1403 = vrot.lane.b32.xlu0 %v1054, 4
        %v1404 = vpop.permute.xlu0 %1403
        %1405 = vrot.lane.b32.xlu0 %v1056, 4
        %v1406 = vpop.permute.xlu0 %1405
        %1407 = vrot.lane.b32.xlu0 %v1059, 4
        %v1408 = vpop.permute.xlu0 %1407
        %1409 = vrot.lane.b32.xlu0 %v1061, 4
        %v1410 = vpop.permute.xlu0 %1409
        %1411 = vrot.lane.b32.xlu0 %v1063, 4
        %v1412 = vpop.permute.xlu0 %1411
        %1413 = vrot.lane.b32.xlu0 %v1066, 4
        %v1414 = vpop.permute.xlu0 %1413
        %1415 = vrot.lane.b32.xlu0 %v1068, 4
        %v1416 = vpop.permute.xlu0 %1415
        %1417 = vrot.lane.b32.xlu0 %v1070, 4
        %v1418 = vpop.permute.xlu0 %1417
        %1491 = vrot.lane.b32.xlu0 %v1073, 8
        %v1492 = vpop.permute.xlu0 %1491
        %1493 = vrot.lane.b32.xlu0 %v1075, 8
        %v1494 = vpop.permute.xlu0 %1493
        %1495 = vrot.lane.b32.xlu0 %v1077, 8
        %v1496 = vpop.permute.xlu0 %1495
        %1497 = vrot.lane.b32.xlu0 %v1080, 8
        %v1498 = vpop.permute.xlu0 %1497
        %1499 = vrot.lane.b32.xlu0 %v1082, 8
        %v1500 = vpop.permute.xlu0 %1499
        %1501 = vrot.lane.b32.xlu0 %v1084, 8
        %v1502 = vpop.permute.xlu0 %1501
        %1503 = vrot.lane.b32.xlu0 %v1087, 8
        %v1504 = vpop.permute.xlu0 %1503
        %1505 = vrot.lane.b32.xlu0 %v1089, 8
        %v1506 = vpop.permute.xlu0 %1505
        %1507 = vrot.lane.b32.xlu0 %v1091, 8
        %v1508 = vpop.permute.xlu0 %1507
        %1509 = vrot.lane.b32.xlu0 %v1094, 8
        %v1510 = vpop.permute.xlu0 %1509
        %1511 = vrot.lane.b32.xlu0 %v1096, 8
        %v1512 = vpop.permute.xlu0 %1511
        %1513 = vrot.lane.b32.xlu0 %v1098, 8
        %v1514 = vpop.permute.xlu0 %1513
        %1515 = vrot.lane.b32.xlu0 %v1101, 8
        %v1516 = vpop.permute.xlu0 %1515
        %1517 = vrot.lane.b32.xlu0 %v1103, 8
        %v1518 = vpop.permute.xlu0 %1517
        %1519 = vrot.lane.b32.xlu0 %v1105, 8
        %v1520 = vpop.permute.xlu0 %1519
        %1521 = vrot.lane.b32.xlu0 %v1108, 8
        %v1522 = vpop.permute.xlu0 %1521
        %1523 = vrot.lane.b32.xlu0 %v1110, 8
        %v1524 = vpop.permute.xlu0 %1523
        %1525 = vrot.lane.b32.xlu0 %v1112, 8
        %v1526 = vpop.permute.xlu0 %1525
        %1527 = vrot.lane.b32.xlu0 %v1115, 8
        %v1528 = vpop.permute.xlu0 %1527
        %1529 = vrot.lane.b32.xlu0 %v1117, 8
        %v1530 = vpop.permute.xlu0 %1529
        %1531 = vrot.lane.b32.xlu0 %v1119, 8
        %v1532 = vpop.permute.xlu0 %1531
        %1533 = vrot.lane.b32.xlu0 %v1122, 8
        %v1534 = vpop.permute.xlu0 %1533
        %1535 = vrot.lane.b32.xlu0 %v1124, 8
        %v1536 = vpop.permute.xlu0 %1535
        %1537 = vrot.lane.b32.xlu0 %v1126, 8
        %v1538 = vpop.permute.xlu0 %1537
        %1539 = vrot.lane.b32.xlu0 %v1129, 8
        %v1540 = vpop.permute.xlu0 %1539
        %1541 = vrot.lane.b32.xlu0 %v1131, 8
        %v1542 = vpop.permute.xlu0 %1541
        %1543 = vrot.lane.b32.xlu0 %v1133, 8
        %v1544 = vpop.permute.xlu0 %1543
        %1545 = vrot.lane.b32.xlu0 %v1136, 8
        %v1546 = vpop.permute.xlu0 %1545
        %1547 = vrot.lane.b32.xlu0 %v1138, 8
        %v1548 = vpop.permute.xlu0 %1547
        %1549 = vrot.lane.b32.xlu0 %v1140, 8
        %v1550 = vpop.permute.xlu0 %1549
        %1551 = vrot.lane.b32.xlu0 %v1143, 8
        %v1552 = vpop.permute.xlu0 %1551
        %1553 = vrot.lane.b32.xlu0 %v1145, 8
        %v1554 = vpop.permute.xlu0 %1553
        %1555 = vrot.lane.b32.xlu0 %v1147, 8
        %v1556 = vpop.permute.xlu0 %1555
        %1557 = vrot.lane.b32.xlu0 %v1150, 8
        %v1558 = vpop.permute.xlu0 %1557
        %1559 = vrot.lane.b32.xlu0 %v1152, 8
        %v1560 = vpop.permute.xlu0 %1559
        %1561 = vrot.lane.b32.xlu0 %v1154, 8
        %v1562 = vpop.permute.xlu0 %1561
        %1563 = vrot.lane.b32.xlu0 %v1157, 8
        %v1564 = vpop.permute.xlu0 %1563
        %1565 = vrot.lane.b32.xlu0 %v1159, 8
        %v1566 = vpop.permute.xlu0 %1565
        %1567 = vrot.lane.b32.xlu0 %v1161, 8
        %v1568 = vpop.permute.xlu0 %1567
        %1569 = vrot.lane.b32.xlu0 %v1164, 8
        %v1570 = vpop.permute.xlu0 %1569
        %1571 = vrot.lane.b32.xlu0 %v1166, 8
        %v1572 = vpop.permute.xlu0 %1571
        %1573 = vrot.lane.b32.xlu0 %v1168, 8
        %v1574 = vpop.permute.xlu0 %1573
        %1575 = vrot.lane.b32.xlu0 %v1171, 8
        %v1576 = vpop.permute.xlu0 %1575
        %1577 = vrot.lane.b32.xlu0 %v1173, 8
        %v1578 = vpop.permute.xlu0 %1577
        %1579 = vrot.lane.b32.xlu0 %v1175, 8
        %v1580 = vpop.permute.xlu0 %1579
        %1581 = vrot.lane.b32.xlu0 %v1178, 8
        %v1582 = vpop.permute.xlu0 %1581
        %1583 = vrot.lane.b32.xlu0 %v1180, 8
        %v1584 = vpop.permute.xlu0 %1583
        %1585 = vrot.lane.b32.xlu0 %v1182, 8
        %v1586 = vpop.permute.xlu0 %1585
        %1587 = vrot.lane.b32.xlu0 %v1185, 8
        %v1588 = vpop.permute.xlu0 %1587
        %1589 = vrot.lane.b32.xlu0 %v1187, 8
        %v1590 = vpop.permute.xlu0 %1589
        %1591 = vrot.lane.b32.xlu0 %v1189, 8
        %v1592 = vpop.permute.xlu0 %1591
        %1593 = vrot.lane.b32.xlu0 %v1192, 8
        %v1594 = vpop.permute.xlu0 %1593
        %1595 = vrot.lane.b32.xlu0 %v1194, 8
        %v1596 = vpop.permute.xlu0 %1595
        %1597 = vrot.lane.b32.xlu0 %v1196, 8
        %v1598 = vpop.permute.xlu0 %1597
        %1599 = vrot.lane.b32.xlu0 %v1199, 8
        %v1600 = vpop.permute.xlu0 %1599
        %1601 = vrot.lane.b32.xlu0 %v1201, 8
        %v1602 = vpop.permute.xlu0 %1601
        %1603 = vrot.lane.b32.xlu0 %v1203, 8
        %v1604 = vpop.permute.xlu0 %1603
        %1605 = vrot.lane.b32.xlu0 %v1206, 8
        %v1606 = vpop.permute.xlu0 %1605
        %1607 = vrot.lane.b32.xlu0 %v1208, 8
        %v1608 = vpop.permute.xlu0 %1607
        %1609 = vrot.lane.b32.xlu0 %v1210, 8
        %v1610 = vpop.permute.xlu0 %1609
        %1611 = vrot.lane.b32.xlu0 %v1213, 8
        %v1612 = vpop.permute.xlu0 %1611
        %1613 = vrot.lane.b32.xlu0 %v1215, 8
        %v1614 = vpop.permute.xlu0 %1613
        %1615 = vrot.lane.b32.xlu0 %v1217, 8
        %v1616 = vpop.permute.xlu0 %1615
        %1617 = vrot.lane.b32.xlu0 %v1220, 8
        %v1618 = vpop.permute.xlu0 %1617
        %1619 = vrot.lane.b32.xlu0 %v1222, 8
        %v1620 = vpop.permute.xlu0 %1619
        %1621 = vrot.lane.b32.xlu0 %v1224, 8
        %v1622 = vpop.permute.xlu0 %1621
        %1623 = vrot.lane.b32.xlu0 %v1227, 8
        %v1624 = vpop.permute.xlu0 %1623
        %1625 = vrot.lane.b32.xlu0 %v1229, 8
        %v1626 = vpop.permute.xlu0 %1625
        %1627 = vrot.lane.b32.xlu0 %v1231, 8
        %v1628 = vpop.permute.xlu0 %1627
        %1629 = vrot.lane.b32.xlu0 %v1234, 8
        %v1630 = vpop.permute.xlu0 %1629
        %1631 = vrot.lane.b32.xlu0 %v1236, 8
        %v1632 = vpop.permute.xlu0 %1631
        %1633 = vrot.lane.b32.xlu0 %v1238, 8
        %v1634 = vpop.permute.xlu0 %1633
        %1707 = vrot.lane.b32.xlu0 %v706, 12
        %v1708 = vpop.permute.xlu0 %1707
        %1709 = vrot.lane.b32.xlu0 %v707, 12
        %v1710 = vpop.permute.xlu0 %1709
        %1711 = vrot.lane.b32.xlu0 %v708, 12
        %v1712 = vpop.permute.xlu0 %1711
        %1713 = vrot.lane.b32.xlu0 %v710, 12
        %v1714 = vpop.permute.xlu0 %1713
        %1715 = vrot.lane.b32.xlu0 %v711, 12
        %v1716 = vpop.permute.xlu0 %1715
        %1717 = vrot.lane.b32.xlu0 %v712, 12
        %v1718 = vpop.permute.xlu0 %1717
        %1719 = vrot.lane.b32.xlu0 %v714, 12
        %v1720 = vpop.permute.xlu0 %1719
        %1721 = vrot.lane.b32.xlu0 %v715, 12
        %v1722 = vpop.permute.xlu0 %1721
        %1723 = vrot.lane.b32.xlu0 %v716, 12
        %v1724 = vpop.permute.xlu0 %1723
        %1725 = vrot.lane.b32.xlu0 %v718, 12
        %v1726 = vpop.permute.xlu0 %1725
        %1727 = vrot.lane.b32.xlu0 %v719, 12
        %v1728 = vpop.permute.xlu0 %1727
        %1729 = vrot.lane.b32.xlu0 %v720, 12
        %v1730 = vpop.permute.xlu0 %1729
        %1731 = vrot.lane.b32.xlu0 %v722, 12
        %v1732 = vpop.permute.xlu0 %1731
        %1733 = vrot.lane.b32.xlu0 %v723, 12
        %v1734 = vpop.permute.xlu0 %1733
        %1735 = vrot.lane.b32.xlu0 %v724, 12
        %v1736 = vpop.permute.xlu0 %1735
        %1737 = vrot.lane.b32.xlu0 %v726, 12
        %v1738 = vpop.permute.xlu0 %1737
        %1739 = vrot.lane.b32.xlu0 %v727, 12
        %v1740 = vpop.permute.xlu0 %1739
        %1741 = vrot.lane.b32.xlu0 %v728, 12
        %v1742 = vpop.permute.xlu0 %1741
        %1743 = vrot.lane.b32.xlu0 %v730, 12
        %v1744 = vpop.permute.xlu0 %1743
        %1745 = vrot.lane.b32.xlu0 %v731, 12
        %v1746 = vpop.permute.xlu0 %1745
        %1747 = vrot.lane.b32.xlu0 %v732, 12
        %v1748 = vpop.permute.xlu0 %1747
        %1749 = vrot.lane.b32.xlu0 %v734, 12
        %v1750 = vpop.permute.xlu0 %1749
        %1751 = vrot.lane.b32.xlu0 %v735, 12
        %v1752 = vpop.permute.xlu0 %1751
        %1753 = vrot.lane.b32.xlu0 %v736, 12
        %v1754 = vpop.permute.xlu0 %1753
        %1755 = vrot.lane.b32.xlu0 %v738, 12
        %v1756 = vpop.permute.xlu0 %1755
        %1757 = vrot.lane.b32.xlu0 %v739, 12
        %v1758 = vpop.permute.xlu0 %1757
        %1759 = vrot.lane.b32.xlu0 %v740, 12
        %v1760 = vpop.permute.xlu0 %1759
        %1761 = vrot.lane.b32.xlu0 %v742, 12
        %v1762 = vpop.permute.xlu0 %1761
        %1763 = vrot.lane.b32.xlu0 %v743, 12
        %v1764 = vpop.permute.xlu0 %1763
        %1765 = vrot.lane.b32.xlu0 %v744, 12
        %v1766 = vpop.permute.xlu0 %1765
        %1767 = vrot.lane.b32.xlu0 %v746, 12
        %v1768 = vpop.permute.xlu0 %1767
        %1769 = vrot.lane.b32.xlu0 %v747, 12
        %v1770 = vpop.permute.xlu0 %1769
        %1771 = vrot.lane.b32.xlu0 %v748, 12
        %v1772 = vpop.permute.xlu0 %1771
        %1773 = vrot.lane.b32.xlu0 %v750, 12
        %v1774 = vpop.permute.xlu0 %1773
        %1775 = vrot.lane.b32.xlu0 %v751, 12
        %v1776 = vpop.permute.xlu0 %1775
        %1777 = vrot.lane.b32.xlu0 %v752, 12
        %v1778 = vpop.permute.xlu0 %1777
        %1779 = vrot.lane.b32.xlu0 %v754, 12
        %v1780 = vpop.permute.xlu0 %1779
        %1781 = vrot.lane.b32.xlu0 %v755, 12
        %v1782 = vpop.permute.xlu0 %1781
        %1783 = vrot.lane.b32.xlu0 %v756, 12
        %v1784 = vpop.permute.xlu0 %1783
        %1785 = vrot.lane.b32.xlu0 %v758, 12
        %v1786 = vpop.permute.xlu0 %1785
        %1787 = vrot.lane.b32.xlu0 %v759, 12
        %v1788 = vpop.permute.xlu0 %1787
        %1789 = vrot.lane.b32.xlu0 %v760, 12
        %v1790 = vpop.permute.xlu0 %1789
        %1791 = vrot.lane.b32.xlu0 %v762, 12
        %v1792 = vpop.permute.xlu0 %1791
        %1793 = vrot.lane.b32.xlu0 %v763, 12
        %v1794 = vpop.permute.xlu0 %1793
        %1795 = vrot.lane.b32.xlu0 %v764, 12
        %v1796 = vpop.permute.xlu0 %1795
        %1797 = vrot.lane.b32.xlu0 %v766, 12
        %v1798 = vpop.permute.xlu0 %1797
        %1799 = vrot.lane.b32.xlu0 %v767, 12
        %v1800 = vpop.permute.xlu0 %1799
        %1801 = vrot.lane.b32.xlu0 %v768, 12
        %v1802 = vpop.permute.xlu0 %1801
        %1803 = vrot.lane.b32.xlu0 %v770, 12
        %v1804 = vpop.permute.xlu0 %1803
        %1805 = vrot.lane.b32.xlu0 %v771, 12
        %v1806 = vpop.permute.xlu0 %1805
        %1807 = vrot.lane.b32.xlu0 %v772, 12
        %v1808 = vpop.permute.xlu0 %1807
        %1809 = vrot.lane.b32.xlu0 %v774, 12
        %v1810 = vpop.permute.xlu0 %1809
        %1811 = vrot.lane.b32.xlu0 %v775, 12
        %v1812 = vpop.permute.xlu0 %1811
        %1813 = vrot.lane.b32.xlu0 %v776, 12
        %v1814 = vpop.permute.xlu0 %1813
        %1815 = vrot.lane.b32.xlu0 %v778, 12
        %v1816 = vpop.permute.xlu0 %1815
        %1817 = vrot.lane.b32.xlu0 %v779, 12
        %v1818 = vpop.permute.xlu0 %1817
        %1819 = vrot.lane.b32.xlu0 %v780, 12
        %v1820 = vpop.permute.xlu0 %1819
        %1821 = vrot.lane.b32.xlu0 %v782, 12
        %v1822 = vpop.permute.xlu0 %1821
        %1823 = vrot.lane.b32.xlu0 %v783, 12
        %v1824 = vpop.permute.xlu0 %1823
        %1825 = vrot.lane.b32.xlu0 %v784, 12
        %v1826 = vpop.permute.xlu0 %1825
        %1827 = vrot.lane.b32.xlu0 %v786, 12
        %v1828 = vpop.permute.xlu0 %1827
        %1829 = vrot.lane.b32.xlu0 %v787, 12
        %v1830 = vpop.permute.xlu0 %1829
        %1831 = vrot.lane.b32.xlu0 %v788, 12
        %v1832 = vpop.permute.xlu0 %1831
        %1833 = vrot.lane.b32.xlu0 %v790, 12
        %v1834 = vpop.permute.xlu0 %1833
        %1835 = vrot.lane.b32.xlu0 %v791, 12
        %v1836 = vpop.permute.xlu0 %1835
        %1837 = vrot.lane.b32.xlu0 %v792, 12
        %v1838 = vpop.permute.xlu0 %1837
        %1839 = vrot.lane.b32.xlu0 %v794, 12
        %v1840 = vpop.permute.xlu0 %1839
        %1841 = vrot.lane.b32.xlu0 %v795, 12
        %v1842 = vpop.permute.xlu0 %1841
        %1843 = vrot.lane.b32.xlu0 %v796, 12
        %v1844 = vpop.permute.xlu0 %1843
        %1845 = vrot.lane.b32.xlu0 %v798, 12
        %v1846 = vpop.permute.xlu0 %1845
        %1847 = vrot.lane.b32.xlu0 %v799, 12
        %v1848 = vpop.permute.xlu0 %1847
        %1849 = vrot.lane.b32.xlu0 %v800, 12
        %v1850 = vpop.permute.xlu0 %1849
        %1923 = vrot.lane.b32.xlu0 %v912, 16
        %v1924 = vpop.permute.xlu0 %1923
        %1925 = vrot.lane.b32.xlu0 %v914, 16
        %v1926 = vpop.permute.xlu0 %1925
        %1927 = vrot.lane.b32.xlu0 %v916, 16
        %v1928 = vpop.permute.xlu0 %1927
        %1929 = vrot.lane.b32.xlu0 %v919, 16
        %v1930 = vpop.permute.xlu0 %1929
        %1931 = vrot.lane.b32.xlu0 %v921, 16
        %v1932 = vpop.permute.xlu0 %1931
        %1933 = vrot.lane.b32.xlu0 %v923, 16
        %v1934 = vpop.permute.xlu0 %1933
        %1935 = vrot.lane.b32.xlu0 %v926, 16
        %v1936 = vpop.permute.xlu0 %1935
        %1937 = vrot.lane.b32.xlu0 %v928, 16
        %v1938 = vpop.permute.xlu0 %1937
        %1939 = vrot.lane.b32.xlu0 %v930, 16
        %v1940 = vpop.permute.xlu0 %1939
        %1941 = vrot.lane.b32.xlu0 %v933, 16
        %v1942 = vpop.permute.xlu0 %1941
        %1943 = vrot.lane.b32.xlu0 %v935, 16
        %v1944 = vpop.permute.xlu0 %1943
        %1945 = vrot.lane.b32.xlu0 %v937, 16
        %v1946 = vpop.permute.xlu0 %1945
        %1947 = vrot.lane.b32.xlu0 %v940, 16
        %v1948 = vpop.permute.xlu0 %1947
        %1949 = vrot.lane.b32.xlu0 %v942, 16
        %v1950 = vpop.permute.xlu0 %1949
        %1951 = vrot.lane.b32.xlu0 %v944, 16
        %v1952 = vpop.permute.xlu0 %1951
        %1953 = vrot.lane.b32.xlu0 %v947, 16
        %v1954 = vpop.permute.xlu0 %1953
        %1955 = vrot.lane.b32.xlu0 %v949, 16
        %v1956 = vpop.permute.xlu0 %1955
        %1957 = vrot.lane.b32.xlu0 %v951, 16
        %v1958 = vpop.permute.xlu0 %1957
        %1959 = vrot.lane.b32.xlu0 %v954, 16
        %v1960 = vpop.permute.xlu0 %1959
        %1961 = vrot.lane.b32.xlu0 %v956, 16
        %v1962 = vpop.permute.xlu0 %1961
        %1963 = vrot.lane.b32.xlu0 %v958, 16
        %v1964 = vpop.permute.xlu0 %1963
        %1965 = vrot.lane.b32.xlu0 %v961, 16
        %v1966 = vpop.permute.xlu0 %1965
        %1967 = vrot.lane.b32.xlu0 %v963, 16
        %v1968 = vpop.permute.xlu0 %1967
        %1969 = vrot.lane.b32.xlu0 %v965, 16
        %v1970 = vpop.permute.xlu0 %1969
        %1971 = vrot.lane.b32.xlu0 %v968, 16
        %v1972 = vpop.permute.xlu0 %1971
        %1973 = vrot.lane.b32.xlu0 %v970, 16
        %v1974 = vpop.permute.xlu0 %1973
        %1975 = vrot.lane.b32.xlu0 %v972, 16
        %v1976 = vpop.permute.xlu0 %1975
        %1977 = vrot.lane.b32.xlu0 %v975, 16
        %v1978 = vpop.permute.xlu0 %1977
        %1979 = vrot.lane.b32.xlu0 %v977, 16
        %v1980 = vpop.permute.xlu0 %1979
        %1981 = vrot.lane.b32.xlu0 %v979, 16
        %v1982 = vpop.permute.xlu0 %1981
        %1983 = vrot.lane.b32.xlu0 %v982, 16
        %v1984 = vpop.permute.xlu0 %1983
        %1985 = vrot.lane.b32.xlu0 %v984, 16
        %v1986 = vpop.permute.xlu0 %1985
        %1987 = vrot.lane.b32.xlu0 %v986, 16
        %v1988 = vpop.permute.xlu0 %1987
        %1989 = vrot.lane.b32.xlu0 %v989, 16
        %v1990 = vpop.permute.xlu0 %1989
        %1991 = vrot.lane.b32.xlu0 %v991, 16
        %v1992 = vpop.permute.xlu0 %1991
        %1993 = vrot.lane.b32.xlu0 %v993, 16
        %v1994 = vpop.permute.xlu0 %1993
        %1995 = vrot.lane.b32.xlu0 %v996, 16
        %v1996 = vpop.permute.xlu0 %1995
        %1997 = vrot.lane.b32.xlu0 %v998, 16
        %v1998 = vpop.permute.xlu0 %1997
        %1999 = vrot.lane.b32.xlu0 %v1000, 16
        %v2000 = vpop.permute.xlu0 %1999
        %2001 = vrot.lane.b32.xlu0 %v1003, 16
        %v2002 = vpop.permute.xlu0 %2001
        %2003 = vrot.lane.b32.xlu0 %v1005, 16
        %v2004 = vpop.permute.xlu0 %2003
        %2005 = vrot.lane.b32.xlu0 %v1007, 16
        %v2006 = vpop.permute.xlu0 %2005
        %2007 = vrot.lane.b32.xlu0 %v1010, 16
        %v2008 = vpop.permute.xlu0 %2007
        %2009 = vrot.lane.b32.xlu0 %v1012, 16
        %v2010 = vpop.permute.xlu0 %2009
        %2011 = vrot.lane.b32.xlu0 %v1014, 16
        %v2012 = vpop.permute.xlu0 %2011
        %2013 = vrot.lane.b32.xlu0 %v1017, 16
        %v2014 = vpop.permute.xlu0 %2013
        %2015 = vrot.lane.b32.xlu0 %v1019, 16
        %v2016 = vpop.permute.xlu0 %2015
        %2017 = vrot.lane.b32.xlu0 %v1021, 16
        %v2018 = vpop.permute.xlu0 %2017
        %2019 = vrot.lane.b32.xlu0 %v1024, 16
        %v2020 = vpop.permute.xlu0 %2019
        %2021 = vrot.lane.b32.xlu0 %v1026, 16
        %v2022 = vpop.permute.xlu0 %2021
        %2023 = vrot.lane.b32.xlu0 %v1028, 16
        %v2024 = vpop.permute.xlu0 %2023
        %2025 = vrot.lane.b32.xlu0 %v1031, 16
        %v2026 = vpop.permute.xlu0 %2025
        %2027 = vrot.lane.b32.xlu0 %v1033, 16
        %v2028 = vpop.permute.xlu0 %2027
        %2029 = vrot.lane.b32.xlu0 %v1035, 16
        %v2030 = vpop.permute.xlu0 %2029
        %2031 = vrot.lane.b32.xlu0 %v1038, 16
        %v2032 = vpop.permute.xlu0 %2031
        %2033 = vrot.lane.b32.xlu0 %v1040, 16
        %v2034 = vpop.permute.xlu0 %2033
        %2035 = vrot.lane.b32.xlu0 %v1042, 16
        %v2036 = vpop.permute.xlu0 %2035
        %2037 = vrot.lane.b32.xlu0 %v1045, 16
        %v2038 = vpop.permute.xlu0 %2037
        %2039 = vrot.lane.b32.xlu0 %v1047, 16
        %v2040 = vpop.permute.xlu0 %2039
        %2041 = vrot.lane.b32.xlu0 %v1049, 16
        %v2042 = vpop.permute.xlu0 %2041
        %2043 = vrot.lane.b32.xlu0 %v1052, 16
        %v2044 = vpop.permute.xlu0 %2043
        %2045 = vrot.lane.b32.xlu0 %v1054, 16
        %v2046 = vpop.permute.xlu0 %2045
        %2047 = vrot.lane.b32.xlu0 %v1056, 16
        %v2048 = vpop.permute.xlu0 %2047
        %2049 = vrot.lane.b32.xlu0 %v1059, 16
        %v2050 = vpop.permute.xlu0 %2049
        %2051 = vrot.lane.b32.xlu0 %v1061, 16
        %v2052 = vpop.permute.xlu0 %2051
        %2053 = vrot.lane.b32.xlu0 %v1063, 16
        %v2054 = vpop.permute.xlu0 %2053
        %2055 = vrot.lane.b32.xlu0 %v1066, 16
        %v2056 = vpop.permute.xlu0 %2055
        %2057 = vrot.lane.b32.xlu0 %v1068, 16
        %v2058 = vpop.permute.xlu0 %2057
        %2059 = vrot.lane.b32.xlu0 %v1070, 16
        %v2060 = vpop.permute.xlu0 %2059
        %2061 = vrot.lane.b32.xlu0 %v1245, 16
        %v2062 = vpop.permute.xlu0 %2061
        %2063 = vrot.lane.b32.xlu0 %v1247, 16
        %v2064 = vpop.permute.xlu0 %2063
        %2065 = vrot.lane.b32.xlu0 %v1249, 16
        %v2066 = vpop.permute.xlu0 %2065
        %2139 = vrot.lane.b32.xlu0 %v1080, 20
        %v2140 = vpop.permute.xlu0 %2139
        %2141 = vrot.lane.b32.xlu0 %v1082, 20
        %v2142 = vpop.permute.xlu0 %2141
        %2143 = vrot.lane.b32.xlu0 %v1084, 20
        %v2144 = vpop.permute.xlu0 %2143
        %2145 = vrot.lane.b32.xlu0 %v1087, 20
        %v2146 = vpop.permute.xlu0 %2145
        %2147 = vrot.lane.b32.xlu0 %v1089, 20
        %v2148 = vpop.permute.xlu0 %2147
        %2149 = vrot.lane.b32.xlu0 %v1091, 20
        %v2150 = vpop.permute.xlu0 %2149
        %2151 = vrot.lane.b32.xlu0 %v1094, 20
        %v2152 = vpop.permute.xlu0 %2151
        %2153 = vrot.lane.b32.xlu0 %v1096, 20
        %v2154 = vpop.permute.xlu0 %2153
        %2155 = vrot.lane.b32.xlu0 %v1098, 20
        %v2156 = vpop.permute.xlu0 %2155
        %2157 = vrot.lane.b32.xlu0 %v1101, 20
        %v2158 = vpop.permute.xlu0 %2157
        %2159 = vrot.lane.b32.xlu0 %v1103, 20
        %v2160 = vpop.permute.xlu0 %2159
        %2161 = vrot.lane.b32.xlu0 %v1105, 20
        %v2162 = vpop.permute.xlu0 %2161
        %2163 = vrot.lane.b32.xlu0 %v1108, 20
        %v2164 = vpop.permute.xlu0 %2163
        %2165 = vrot.lane.b32.xlu0 %v1110, 20
        %v2166 = vpop.permute.xlu0 %2165
        %2167 = vrot.lane.b32.xlu0 %v1112, 20
        %v2168 = vpop.permute.xlu0 %2167
        %2169 = vrot.lane.b32.xlu0 %v1115, 20
        %v2170 = vpop.permute.xlu0 %2169
        %2171 = vrot.lane.b32.xlu0 %v1117, 20
        %v2172 = vpop.permute.xlu0 %2171
        %2173 = vrot.lane.b32.xlu0 %v1119, 20
        %v2174 = vpop.permute.xlu0 %2173
        %2175 = vrot.lane.b32.xlu0 %v1122, 20
        %v2176 = vpop.permute.xlu0 %2175
        %2177 = vrot.lane.b32.xlu0 %v1124, 20
        %v2178 = vpop.permute.xlu0 %2177
        %2179 = vrot.lane.b32.xlu0 %v1126, 20
        %v2180 = vpop.permute.xlu0 %2179
        %2181 = vrot.lane.b32.xlu0 %v1129, 20
        %v2182 = vpop.permute.xlu0 %2181
        %2183 = vrot.lane.b32.xlu0 %v1131, 20
        %v2184 = vpop.permute.xlu0 %2183
        %2185 = vrot.lane.b32.xlu0 %v1133, 20
        %v2186 = vpop.permute.xlu0 %2185
        %2187 = vrot.lane.b32.xlu0 %v1136, 20
        %v2188 = vpop.permute.xlu0 %2187
        %2189 = vrot.lane.b32.xlu0 %v1138, 20
        %v2190 = vpop.permute.xlu0 %2189
        %2191 = vrot.lane.b32.xlu0 %v1140, 20
        %v2192 = vpop.permute.xlu0 %2191
        %2193 = vrot.lane.b32.xlu0 %v1143, 20
        %v2194 = vpop.permute.xlu0 %2193
        %2195 = vrot.lane.b32.xlu0 %v1145, 20
        %v2196 = vpop.permute.xlu0 %2195
        %2197 = vrot.lane.b32.xlu0 %v1147, 20
        %v2198 = vpop.permute.xlu0 %2197
        %2199 = vrot.lane.b32.xlu0 %v1150, 20
        %v2200 = vpop.permute.xlu0 %2199
        %2201 = vrot.lane.b32.xlu0 %v1152, 20
        %v2202 = vpop.permute.xlu0 %2201
        %2203 = vrot.lane.b32.xlu0 %v1154, 20
        %v2204 = vpop.permute.xlu0 %2203
        %2205 = vrot.lane.b32.xlu0 %v1157, 20
        %v2206 = vpop.permute.xlu0 %2205
        %2207 = vrot.lane.b32.xlu0 %v1159, 20
        %v2208 = vpop.permute.xlu0 %2207
        %2209 = vrot.lane.b32.xlu0 %v1161, 20
        %v2210 = vpop.permute.xlu0 %2209
        %2211 = vrot.lane.b32.xlu0 %v1164, 20
        %v2212 = vpop.permute.xlu0 %2211
        %2213 = vrot.lane.b32.xlu0 %v1166, 20
        %v2214 = vpop.permute.xlu0 %2213
        %2215 = vrot.lane.b32.xlu0 %v1168, 20
        %v2216 = vpop.permute.xlu0 %2215
        %2217 = vrot.lane.b32.xlu0 %v1171, 20
        %v2218 = vpop.permute.xlu0 %2217
        %2219 = vrot.lane.b32.xlu0 %v1173, 20
        %v2220 = vpop.permute.xlu0 %2219
        %2221 = vrot.lane.b32.xlu0 %v1175, 20
        %v2222 = vpop.permute.xlu0 %2221
        %2223 = vrot.lane.b32.xlu0 %v1178, 20
        %v2224 = vpop.permute.xlu0 %2223
        %2225 = vrot.lane.b32.xlu0 %v1180, 20
        %v2226 = vpop.permute.xlu0 %2225
        %2227 = vrot.lane.b32.xlu0 %v1182, 20
        %v2228 = vpop.permute.xlu0 %2227
        %2229 = vrot.lane.b32.xlu0 %v1185, 20
        %v2230 = vpop.permute.xlu0 %2229
        %2231 = vrot.lane.b32.xlu0 %v1187, 20
        %v2232 = vpop.permute.xlu0 %2231
        %2233 = vrot.lane.b32.xlu0 %v1189, 20
        %v2234 = vpop.permute.xlu0 %2233
        %2235 = vrot.lane.b32.xlu0 %v1192, 20
        %v2236 = vpop.permute.xlu0 %2235
        %2237 = vrot.lane.b32.xlu0 %v1194, 20
        %v2238 = vpop.permute.xlu0 %2237
        %2239 = vrot.lane.b32.xlu0 %v1196, 20
        %v2240 = vpop.permute.xlu0 %2239
        %2241 = vrot.lane.b32.xlu0 %v1199, 20
        %v2242 = vpop.permute.xlu0 %2241
        %2243 = vrot.lane.b32.xlu0 %v1201, 20
        %v2244 = vpop.permute.xlu0 %2243
        %2245 = vrot.lane.b32.xlu0 %v1203, 20
        %v2246 = vpop.permute.xlu0 %2245
        %2247 = vrot.lane.b32.xlu0 %v1206, 20
        %v2248 = vpop.permute.xlu0 %2247
        %2249 = vrot.lane.b32.xlu0 %v1208, 20
        %v2250 = vpop.permute.xlu0 %2249
        %2251 = vrot.lane.b32.xlu0 %v1210, 20
        %v2252 = vpop.permute.xlu0 %2251
        %2253 = vrot.lane.b32.xlu0 %v1213, 20
        %v2254 = vpop.permute.xlu0 %2253
        %2255 = vrot.lane.b32.xlu0 %v1215, 20
        %v2256 = vpop.permute.xlu0 %2255
        %2257 = vrot.lane.b32.xlu0 %v1217, 20
        %v2258 = vpop.permute.xlu0 %2257
        %2259 = vrot.lane.b32.xlu0 %v1220, 20
        %v2260 = vpop.permute.xlu0 %2259
        %2261 = vrot.lane.b32.xlu0 %v1222, 20
        %v2262 = vpop.permute.xlu0 %2261
        %2263 = vrot.lane.b32.xlu0 %v1224, 20
        %v2264 = vpop.permute.xlu0 %2263
        %2265 = vrot.lane.b32.xlu0 %v1227, 20
        %v2266 = vpop.permute.xlu0 %2265
        %2267 = vrot.lane.b32.xlu0 %v1229, 20
        %v2268 = vpop.permute.xlu0 %2267
        %2269 = vrot.lane.b32.xlu0 %v1231, 20
        %v2270 = vpop.permute.xlu0 %2269
        %2271 = vrot.lane.b32.xlu0 %v1234, 20
        %v2272 = vpop.permute.xlu0 %2271
        %2273 = vrot.lane.b32.xlu0 %v1236, 20
        %v2274 = vpop.permute.xlu0 %2273
        %2275 = vrot.lane.b32.xlu0 %v1238, 20
        %v2276 = vpop.permute.xlu0 %2275
        %2277 = vrot.lane.b32.xlu0 %v1252, 20
        %v2278 = vpop.permute.xlu0 %2277
        %2279 = vrot.lane.b32.xlu0 %v1254, 20
        %v2280 = vpop.permute.xlu0 %2279
        %2281 = vrot.lane.b32.xlu0 %v1256, 20
        %v2282 = vpop.permute.xlu0 %2281
        %2355 = vrot.lane.b32.xlu0 %v710, 24
        %v2356 = vpop.permute.xlu0 %2355
        %2357 = vrot.lane.b32.xlu0 %v711, 24
        %v2358 = vpop.permute.xlu0 %2357
        %2359 = vrot.lane.b32.xlu0 %v712, 24
        %v2360 = vpop.permute.xlu0 %2359
        %2361 = vrot.lane.b32.xlu0 %v714, 24
        %v2362 = vpop.permute.xlu0 %2361
        %2363 = vrot.lane.b32.xlu0 %v715, 24
        %v2364 = vpop.permute.xlu0 %2363
        %2365 = vrot.lane.b32.xlu0 %v716, 24
        %v2366 = vpop.permute.xlu0 %2365
        %2367 = vrot.lane.b32.xlu0 %v718, 24
        %v2368 = vpop.permute.xlu0 %2367
        %2369 = vrot.lane.b32.xlu0 %v719, 24
        %v2370 = vpop.permute.xlu0 %2369
        %2371 = vrot.lane.b32.xlu0 %v720, 24
        %v2372 = vpop.permute.xlu0 %2371
        %2373 = vrot.lane.b32.xlu0 %v722, 24
        %v2374 = vpop.permute.xlu0 %2373
        %2375 = vrot.lane.b32.xlu0 %v723, 24
        %v2376 = vpop.permute.xlu0 %2375
        %2377 = vrot.lane.b32.xlu0 %v724, 24
        %v2378 = vpop.permute.xlu0 %2377
        %2379 = vrot.lane.b32.xlu0 %v726, 24
        %v2380 = vpop.permute.xlu0 %2379
        %2381 = vrot.lane.b32.xlu0 %v727, 24
        %v2382 = vpop.permute.xlu0 %2381
        %2383 = vrot.lane.b32.xlu0 %v728, 24
        %v2384 = vpop.permute.xlu0 %2383
        %2385 = vrot.lane.b32.xlu0 %v730, 24
        %v2386 = vpop.permute.xlu0 %2385
        %2387 = vrot.lane.b32.xlu0 %v731, 24
        %v2388 = vpop.permute.xlu0 %2387
        %2389 = vrot.lane.b32.xlu0 %v732, 24
        %v2390 = vpop.permute.xlu0 %2389
        %2391 = vrot.lane.b32.xlu0 %v734, 24
        %v2392 = vpop.permute.xlu0 %2391
        %2393 = vrot.lane.b32.xlu0 %v735, 24
        %v2394 = vpop.permute.xlu0 %2393
        %2395 = vrot.lane.b32.xlu0 %v736, 24
        %v2396 = vpop.permute.xlu0 %2395
        %2397 = vrot.lane.b32.xlu0 %v738, 24
        %v2398 = vpop.permute.xlu0 %2397
        %2399 = vrot.lane.b32.xlu0 %v739, 24
        %v2400 = vpop.permute.xlu0 %2399
        %2401 = vrot.lane.b32.xlu0 %v740, 24
        %v2402 = vpop.permute.xlu0 %2401
        %2403 = vrot.lane.b32.xlu0 %v742, 24
        %v2404 = vpop.permute.xlu0 %2403
        %2405 = vrot.lane.b32.xlu0 %v743, 24
        %v2406 = vpop.permute.xlu0 %2405
        %2407 = vrot.lane.b32.xlu0 %v744, 24
        %v2408 = vpop.permute.xlu0 %2407
        %2409 = vrot.lane.b32.xlu0 %v746, 24
        %v2410 = vpop.permute.xlu0 %2409
        %2411 = vrot.lane.b32.xlu0 %v747, 24
        %v2412 = vpop.permute.xlu0 %2411
        %2413 = vrot.lane.b32.xlu0 %v748, 24
        %v2414 = vpop.permute.xlu0 %2413
        %2415 = vrot.lane.b32.xlu0 %v750, 24
        %v2416 = vpop.permute.xlu0 %2415
        %2417 = vrot.lane.b32.xlu0 %v751, 24
        %v2418 = vpop.permute.xlu0 %2417
        %2419 = vrot.lane.b32.xlu0 %v752, 24
        %v2420 = vpop.permute.xlu0 %2419
        %2421 = vrot.lane.b32.xlu0 %v754, 24
        %v2422 = vpop.permute.xlu0 %2421
        %2423 = vrot.lane.b32.xlu0 %v755, 24
        %v2424 = vpop.permute.xlu0 %2423
        %2425 = vrot.lane.b32.xlu0 %v756, 24
        %v2426 = vpop.permute.xlu0 %2425
        %2427 = vrot.lane.b32.xlu0 %v758, 24
        %v2428 = vpop.permute.xlu0 %2427
        %2429 = vrot.lane.b32.xlu0 %v759, 24
        %v2430 = vpop.permute.xlu0 %2429
        %2431 = vrot.lane.b32.xlu0 %v760, 24
        %v2432 = vpop.permute.xlu0 %2431
        %2433 = vrot.lane.b32.xlu0 %v762, 24
        %v2434 = vpop.permute.xlu0 %2433
        %2435 = vrot.lane.b32.xlu0 %v763, 24
        %v2436 = vpop.permute.xlu0 %2435
        %2437 = vrot.lane.b32.xlu0 %v764, 24
        %v2438 = vpop.permute.xlu0 %2437
        %2439 = vrot.lane.b32.xlu0 %v766, 24
        %v2440 = vpop.permute.xlu0 %2439
        %2441 = vrot.lane.b32.xlu0 %v767, 24
        %v2442 = vpop.permute.xlu0 %2441
        %2443 = vrot.lane.b32.xlu0 %v768, 24
        %v2444 = vpop.permute.xlu0 %2443
        %2445 = vrot.lane.b32.xlu0 %v770, 24
        %v2446 = vpop.permute.xlu0 %2445
        %2447 = vrot.lane.b32.xlu0 %v771, 24
        %v2448 = vpop.permute.xlu0 %2447
        %2449 = vrot.lane.b32.xlu0 %v772, 24
        %v2450 = vpop.permute.xlu0 %2449
        %2451 = vrot.lane.b32.xlu0 %v774, 24
        %v2452 = vpop.permute.xlu0 %2451
        %2453 = vrot.lane.b32.xlu0 %v775, 24
        %v2454 = vpop.permute.xlu0 %2453
        %2455 = vrot.lane.b32.xlu0 %v776, 24
        %v2456 = vpop.permute.xlu0 %2455
        %2457 = vrot.lane.b32.xlu0 %v778, 24
        %v2458 = vpop.permute.xlu0 %2457
        %2459 = vrot.lane.b32.xlu0 %v779, 24
        %v2460 = vpop.permute.xlu0 %2459
        %2461 = vrot.lane.b32.xlu0 %v780, 24
        %v2462 = vpop.permute.xlu0 %2461
        %2463 = vrot.lane.b32.xlu0 %v782, 24
        %v2464 = vpop.permute.xlu0 %2463
        %2465 = vrot.lane.b32.xlu0 %v783, 24
        %v2466 = vpop.permute.xlu0 %2465
        %2467 = vrot.lane.b32.xlu0 %v784, 24
        %v2468 = vpop.permute.xlu0 %2467
        %2469 = vrot.lane.b32.xlu0 %v786, 24
        %v2470 = vpop.permute.xlu0 %2469
        %2471 = vrot.lane.b32.xlu0 %v787, 24
        %v2472 = vpop.permute.xlu0 %2471
        %2473 = vrot.lane.b32.xlu0 %v788, 24
        %v2474 = vpop.permute.xlu0 %2473
        %2475 = vrot.lane.b32.xlu0 %v790, 24
        %v2476 = vpop.permute.xlu0 %2475
        %2477 = vrot.lane.b32.xlu0 %v791, 24
        %v2478 = vpop.permute.xlu0 %2477
        %2479 = vrot.lane.b32.xlu0 %v792, 24
        %v2480 = vpop.permute.xlu0 %2479
        %2481 = vrot.lane.b32.xlu0 %v794, 24
        %v2482 = vpop.permute.xlu0 %2481
        %2483 = vrot.lane.b32.xlu0 %v795, 24
        %v2484 = vpop.permute.xlu0 %2483
        %2485 = vrot.lane.b32.xlu0 %v796, 24
        %v2486 = vpop.permute.xlu0 %2485
        %2487 = vrot.lane.b32.xlu0 %v798, 24
        %v2488 = vpop.permute.xlu0 %2487
        %2489 = vrot.lane.b32.xlu0 %v799, 24
        %v2490 = vpop.permute.xlu0 %2489
        %2491 = vrot.lane.b32.xlu0 %v800, 24
        %v2492 = vpop.permute.xlu0 %2491
        %2493 = vrot.lane.b32.xlu0 %v802, 24
        %v2494 = vpop.permute.xlu0 %2493
        %2495 = vrot.lane.b32.xlu0 %v803, 24
        %v2496 = vpop.permute.xlu0 %2495
        %2497 = vrot.lane.b32.xlu0 %v804, 24
        %v2498 = vpop.permute.xlu0 %2497
        %2571 = vrot.lane.b32.xlu0 %v919, 28
        %v2572 = vpop.permute.xlu0 %2571
        %2573 = vrot.lane.b32.xlu0 %v921, 28
        %v2574 = vpop.permute.xlu0 %2573
        %2575 = vrot.lane.b32.xlu0 %v923, 28
        %v2576 = vpop.permute.xlu0 %2575
        %2577 = vrot.lane.b32.xlu0 %v926, 28
        %v2578 = vpop.permute.xlu0 %2577
        %2579 = vrot.lane.b32.xlu0 %v928, 28
        %v2580 = vpop.permute.xlu0 %2579
        %2581 = vrot.lane.b32.xlu0 %v930, 28
        %v2582 = vpop.permute.xlu0 %2581
        %2583 = vrot.lane.b32.xlu0 %v933, 28
        %v2584 = vpop.permute.xlu0 %2583
        %2585 = vrot.lane.b32.xlu0 %v935, 28
        %v2586 = vpop.permute.xlu0 %2585
        %2587 = vrot.lane.b32.xlu0 %v937, 28
        %v2588 = vpop.permute.xlu0 %2587
        %2589 = vrot.lane.b32.xlu0 %v940, 28
        %v2590 = vpop.permute.xlu0 %2589
        %2591 = vrot.lane.b32.xlu0 %v942, 28
        %v2592 = vpop.permute.xlu0 %2591
        %2593 = vrot.lane.b32.xlu0 %v944, 28
        %v2594 = vpop.permute.xlu0 %2593
        %2595 = vrot.lane.b32.xlu0 %v947, 28
        %v2596 = vpop.permute.xlu0 %2595
        %2597 = vrot.lane.b32.xlu0 %v949, 28
        %v2598 = vpop.permute.xlu0 %2597
        %2599 = vrot.lane.b32.xlu0 %v951, 28
        %v2600 = vpop.permute.xlu0 %2599
        %2601 = vrot.lane.b32.xlu0 %v954, 28
        %v2602 = vpop.permute.xlu0 %2601
        %2603 = vrot.lane.b32.xlu0 %v956, 28
        %v2604 = vpop.permute.xlu0 %2603
        %2605 = vrot.lane.b32.xlu0 %v958, 28
        %v2606 = vpop.permute.xlu0 %2605
        %2607 = vrot.lane.b32.xlu0 %v961, 28
        %v2608 = vpop.permute.xlu0 %2607
        %2609 = vrot.lane.b32.xlu0 %v963, 28
        %v2610 = vpop.permute.xlu0 %2609
        %2611 = vrot.lane.b32.xlu0 %v965, 28
        %v2612 = vpop.permute.xlu0 %2611
        %2613 = vrot.lane.b32.xlu0 %v968, 28
        %v2614 = vpop.permute.xlu0 %2613
        %2615 = vrot.lane.b32.xlu0 %v970, 28
        %v2616 = vpop.permute.xlu0 %2615
        %2617 = vrot.lane.b32.xlu0 %v972, 28
        %v2618 = vpop.permute.xlu0 %2617
        %2619 = vrot.lane.b32.xlu0 %v975, 28
        %v2620 = vpop.permute.xlu0 %2619
        %2621 = vrot.lane.b32.xlu0 %v977, 28
        %v2622 = vpop.permute.xlu0 %2621
        %2623 = vrot.lane.b32.xlu0 %v979, 28
        %v2624 = vpop.permute.xlu0 %2623
        %2625 = vrot.lane.b32.xlu0 %v982, 28
        %v2626 = vpop.permute.xlu0 %2625
        %2627 = vrot.lane.b32.xlu0 %v984, 28
        %v2628 = vpop.permute.xlu0 %2627
        %2629 = vrot.lane.b32.xlu0 %v986, 28
        %v2630 = vpop.permute.xlu0 %2629
        %2631 = vrot.lane.b32.xlu0 %v989, 28
        %v2632 = vpop.permute.xlu0 %2631
        %2633 = vrot.lane.b32.xlu0 %v991, 28
        %v2634 = vpop.permute.xlu0 %2633
        %2635 = vrot.lane.b32.xlu0 %v993, 28
        %v2636 = vpop.permute.xlu0 %2635
        %2637 = vrot.lane.b32.xlu0 %v996, 28
        %v2638 = vpop.permute.xlu0 %2637
        %2639 = vrot.lane.b32.xlu0 %v998, 28
        %v2640 = vpop.permute.xlu0 %2639
        %2641 = vrot.lane.b32.xlu0 %v1000, 28
        %v2642 = vpop.permute.xlu0 %2641
        %2643 = vrot.lane.b32.xlu0 %v1003, 28
        %v2644 = vpop.permute.xlu0 %2643
        %2645 = vrot.lane.b32.xlu0 %v1005, 28
        %v2646 = vpop.permute.xlu0 %2645
        %2647 = vrot.lane.b32.xlu0 %v1007, 28
        %v2648 = vpop.permute.xlu0 %2647
        %2649 = vrot.lane.b32.xlu0 %v1010, 28
        %v2650 = vpop.permute.xlu0 %2649
        %2651 = vrot.lane.b32.xlu0 %v1012, 28
        %v2652 = vpop.permute.xlu0 %2651
        %2653 = vrot.lane.b32.xlu0 %v1014, 28
        %v2654 = vpop.permute.xlu0 %2653
        %2655 = vrot.lane.b32.xlu0 %v1017, 28
        %v2656 = vpop.permute.xlu0 %2655
        %2657 = vrot.lane.b32.xlu0 %v1019, 28
        %v2658 = vpop.permute.xlu0 %2657
        %2659 = vrot.lane.b32.xlu0 %v1021, 28
        %v2660 = vpop.permute.xlu0 %2659
        %2661 = vrot.lane.b32.xlu0 %v1024, 28
        %v2662 = vpop.permute.xlu0 %2661
        %2663 = vrot.lane.b32.xlu0 %v1026, 28
        %v2664 = vpop.permute.xlu0 %2663
        %2665 = vrot.lane.b32.xlu0 %v1028, 28
        %v2666 = vpop.permute.xlu0 %2665
        %2667 = vrot.lane.b32.xlu0 %v1031, 28
        %v2668 = vpop.permute.xlu0 %2667
        %2669 = vrot.lane.b32.xlu0 %v1033, 28
        %v2670 = vpop.permute.xlu0 %2669
        %2671 = vrot.lane.b32.xlu0 %v1035, 28
        %v2672 = vpop.permute.xlu0 %2671
        %2673 = vrot.lane.b32.xlu0 %v1038, 28
        %v2674 = vpop.permute.xlu0 %2673
        %2675 = vrot.lane.b32.xlu0 %v1040, 28
        %v2676 = vpop.permute.xlu0 %2675
        %2677 = vrot.lane.b32.xlu0 %v1042, 28
        %v2678 = vpop.permute.xlu0 %2677
        %2679 = vrot.lane.b32.xlu0 %v1045, 28
        %v2680 = vpop.permute.xlu0 %2679
        %2681 = vrot.lane.b32.xlu0 %v1047, 28
        %v2682 = vpop.permute.xlu0 %2681
        %2683 = vrot.lane.b32.xlu0 %v1049, 28
        %v2684 = vpop.permute.xlu0 %2683
        %2685 = vrot.lane.b32.xlu0 %v1052, 28
        %v2686 = vpop.permute.xlu0 %2685
        %2687 = vrot.lane.b32.xlu0 %v1054, 28
        %v2688 = vpop.permute.xlu0 %2687
        %2689 = vrot.lane.b32.xlu0 %v1056, 28
        %v2690 = vpop.permute.xlu0 %2689
        %2691 = vrot.lane.b32.xlu0 %v1059, 28
        %v2692 = vpop.permute.xlu0 %2691
        %2693 = vrot.lane.b32.xlu0 %v1061, 28
        %v2694 = vpop.permute.xlu0 %2693
        %2695 = vrot.lane.b32.xlu0 %v1063, 28
        %v2696 = vpop.permute.xlu0 %2695
        %2697 = vrot.lane.b32.xlu0 %v1066, 28
        %v2698 = vpop.permute.xlu0 %2697
        %2699 = vrot.lane.b32.xlu0 %v1068, 28
        %v2700 = vpop.permute.xlu0 %2699
        %2701 = vrot.lane.b32.xlu0 %v1070, 28
        %v2702 = vpop.permute.xlu0 %2701
        %2703 = vrot.lane.b32.xlu0 %v1245, 28
        %v2704 = vpop.permute.xlu0 %2703
        %2705 = vrot.lane.b32.xlu0 %v1247, 28
        %v2706 = vpop.permute.xlu0 %2705
        %2707 = vrot.lane.b32.xlu0 %v1249, 28
        %v2708 = vpop.permute.xlu0 %2707
        %2709 = vrot.lane.b32.xlu0 %v1263, 28
        %v2710 = vpop.permute.xlu0 %2709
        %2711 = vrot.lane.b32.xlu0 %v1265, 28
        %v2712 = vpop.permute.xlu0 %2711
        %2713 = vrot.lane.b32.xlu0 %v1267, 28
        %v2714 = vpop.permute.xlu0 %2713
        %2787 = vrot.lane.b32.xlu0 %v1087, 32
        %v2788 = vpop.permute.xlu0 %2787
        %2789 = vrot.lane.b32.xlu0 %v1089, 32
        %v2790 = vpop.permute.xlu0 %2789
        %2791 = vrot.lane.b32.xlu0 %v1091, 32
        %v2792 = vpop.permute.xlu0 %2791
        %2793 = vrot.lane.b32.xlu0 %v1094, 32
        %v2794 = vpop.permute.xlu0 %2793
        %2795 = vrot.lane.b32.xlu0 %v1096, 32
        %v2796 = vpop.permute.xlu0 %2795
        %2797 = vrot.lane.b32.xlu0 %v1098, 32
        %v2798 = vpop.permute.xlu0 %2797
        %2799 = vrot.lane.b32.xlu0 %v1101, 32
        %v2800 = vpop.permute.xlu0 %2799
        %2801 = vrot.lane.b32.xlu0 %v1103, 32
        %v2802 = vpop.permute.xlu0 %2801
        %2803 = vrot.lane.b32.xlu0 %v1105, 32
        %v2804 = vpop.permute.xlu0 %2803
        %2805 = vrot.lane.b32.xlu0 %v1108, 32
        %v2806 = vpop.permute.xlu0 %2805
        %2807 = vrot.lane.b32.xlu0 %v1110, 32
        %v2808 = vpop.permute.xlu0 %2807
        %2809 = vrot.lane.b32.xlu0 %v1112, 32
        %v2810 = vpop.permute.xlu0 %2809
        %2811 = vrot.lane.b32.xlu0 %v1115, 32
        %v2812 = vpop.permute.xlu0 %2811
        %2813 = vrot.lane.b32.xlu0 %v1117, 32
        %v2814 = vpop.permute.xlu0 %2813
        %2815 = vrot.lane.b32.xlu0 %v1119, 32
        %v2816 = vpop.permute.xlu0 %2815
        %2817 = vrot.lane.b32.xlu0 %v1122, 32
        %v2818 = vpop.permute.xlu0 %2817
        %2819 = vrot.lane.b32.xlu0 %v1124, 32
        %v2820 = vpop.permute.xlu0 %2819
        %2821 = vrot.lane.b32.xlu0 %v1126, 32
        %v2822 = vpop.permute.xlu0 %2821
        %2823 = vrot.lane.b32.xlu0 %v1129, 32
        %v2824 = vpop.permute.xlu0 %2823
        %2825 = vrot.lane.b32.xlu0 %v1131, 32
        %v2826 = vpop.permute.xlu0 %2825
        %2827 = vrot.lane.b32.xlu0 %v1133, 32
        %v2828 = vpop.permute.xlu0 %2827
        %2829 = vrot.lane.b32.xlu0 %v1136, 32
        %v2830 = vpop.permute.xlu0 %2829
        %2831 = vrot.lane.b32.xlu0 %v1138, 32
        %v2832 = vpop.permute.xlu0 %2831
        %2833 = vrot.lane.b32.xlu0 %v1140, 32
        %v2834 = vpop.permute.xlu0 %2833
        %2835 = vrot.lane.b32.xlu0 %v1143, 32
        %v2836 = vpop.permute.xlu0 %2835
        %2837 = vrot.lane.b32.xlu0 %v1145, 32
        %v2838 = vpop.permute.xlu0 %2837
        %2839 = vrot.lane.b32.xlu0 %v1147, 32
        %v2840 = vpop.permute.xlu0 %2839
        %2841 = vrot.lane.b32.xlu0 %v1150, 32
        %v2842 = vpop.permute.xlu0 %2841
        %2843 = vrot.lane.b32.xlu0 %v1152, 32
        %v2844 = vpop.permute.xlu0 %2843
        %2845 = vrot.lane.b32.xlu0 %v1154, 32
        %v2846 = vpop.permute.xlu0 %2845
        %2847 = vrot.lane.b32.xlu0 %v1157, 32
        %v2848 = vpop.permute.xlu0 %2847
        %2849 = vrot.lane.b32.xlu0 %v1159, 32
        %v2850 = vpop.permute.xlu0 %2849
        %2851 = vrot.lane.b32.xlu0 %v1161, 32
        %v2852 = vpop.permute.xlu0 %2851
        %2853 = vrot.lane.b32.xlu0 %v1164, 32
        %v2854 = vpop.permute.xlu0 %2853
        %2855 = vrot.lane.b32.xlu0 %v1166, 32
        %v2856 = vpop.permute.xlu0 %2855
        %2857 = vrot.lane.b32.xlu0 %v1168, 32
        %v2858 = vpop.permute.xlu0 %2857
        %2859 = vrot.lane.b32.xlu0 %v1171, 32
        %v2860 = vpop.permute.xlu0 %2859
        %2861 = vrot.lane.b32.xlu0 %v1173, 32
        %v2862 = vpop.permute.xlu0 %2861
        %2863 = vrot.lane.b32.xlu0 %v1175, 32
        %v2864 = vpop.permute.xlu0 %2863
        %2865 = vrot.lane.b32.xlu0 %v1178, 32
        %v2866 = vpop.permute.xlu0 %2865
        %2867 = vrot.lane.b32.xlu0 %v1180, 32
        %v2868 = vpop.permute.xlu0 %2867
        %2869 = vrot.lane.b32.xlu0 %v1182, 32
        %v2870 = vpop.permute.xlu0 %2869
        %2871 = vrot.lane.b32.xlu0 %v1185, 32
        %v2872 = vpop.permute.xlu0 %2871
        %2873 = vrot.lane.b32.xlu0 %v1187, 32
        %v2874 = vpop.permute.xlu0 %2873
        %2875 = vrot.lane.b32.xlu0 %v1189, 32
        %v2876 = vpop.permute.xlu0 %2875
        %2877 = vrot.lane.b32.xlu0 %v1192, 32
        %v2878 = vpop.permute.xlu0 %2877
        %2879 = vrot.lane.b32.xlu0 %v1194, 32
        %v2880 = vpop.permute.xlu0 %2879
        %2881 = vrot.lane.b32.xlu0 %v1196, 32
        %v2882 = vpop.permute.xlu0 %2881
        %2883 = vrot.lane.b32.xlu0 %v1199, 32
        %v2884 = vpop.permute.xlu0 %2883
        %2885 = vrot.lane.b32.xlu0 %v1201, 32
        %v2886 = vpop.permute.xlu0 %2885
        %2887 = vrot.lane.b32.xlu0 %v1203, 32
        %v2888 = vpop.permute.xlu0 %2887
        %2889 = vrot.lane.b32.xlu0 %v1206, 32
        %v2890 = vpop.permute.xlu0 %2889
        %2891 = vrot.lane.b32.xlu0 %v1208, 32
        %v2892 = vpop.permute.xlu0 %2891
        %2893 = vrot.lane.b32.xlu0 %v1210, 32
        %v2894 = vpop.permute.xlu0 %2893
        %2895 = vrot.lane.b32.xlu0 %v1213, 32
        %v2896 = vpop.permute.xlu0 %2895
        %2897 = vrot.lane.b32.xlu0 %v1215, 32
        %v2898 = vpop.permute.xlu0 %2897
        %2899 = vrot.lane.b32.xlu0 %v1217, 32
        %v2900 = vpop.permute.xlu0 %2899
        %2901 = vrot.lane.b32.xlu0 %v1220, 32
        %v2902 = vpop.permute.xlu0 %2901
        %2903 = vrot.lane.b32.xlu0 %v1222, 32
        %v2904 = vpop.permute.xlu0 %2903
        %2905 = vrot.lane.b32.xlu0 %v1224, 32
        %v2906 = vpop.permute.xlu0 %2905
        %2907 = vrot.lane.b32.xlu0 %v1227, 32
        %v2908 = vpop.permute.xlu0 %2907
        %2909 = vrot.lane.b32.xlu0 %v1229, 32
        %v2910 = vpop.permute.xlu0 %2909
        %2911 = vrot.lane.b32.xlu0 %v1231, 32
        %v2912 = vpop.permute.xlu0 %2911
        %2913 = vrot.lane.b32.xlu0 %v1234, 32
        %v2914 = vpop.permute.xlu0 %2913
        %2915 = vrot.lane.b32.xlu0 %v1236, 32
        %v2916 = vpop.permute.xlu0 %2915
        %2917 = vrot.lane.b32.xlu0 %v1238, 32
        %v2918 = vpop.permute.xlu0 %2917
        %2919 = vrot.lane.b32.xlu0 %v1252, 32
        %v2920 = vpop.permute.xlu0 %2919
        %2921 = vrot.lane.b32.xlu0 %v1254, 32
        %v2922 = vpop.permute.xlu0 %2921
        %2923 = vrot.lane.b32.xlu0 %v1256, 32
        %v2924 = vpop.permute.xlu0 %2923
        %2925 = vrot.lane.b32.xlu0 %v1270, 32
        %v2926 = vpop.permute.xlu0 %2925
        %2927 = vrot.lane.b32.xlu0 %v1272, 32
        %v2928 = vpop.permute.xlu0 %2927
        %2929 = vrot.lane.b32.xlu0 %v1274, 32
        %v2930 = vpop.permute.xlu0 %2929
        %v3003 = vsel %vm560, %v702, %v1276
        %v3004 = vsel %vm560, %v703, %v1278
        %v3005 = vsel %vm560, %v704, %v1280
        %v3006 = vsel %vm560, %v706, %v1282
        %v3007 = vsel %vm560, %v707, %v1284
        %v3008 = vsel %vm560, %v708, %v1286
        %v3009 = vsel %vm560, %v710, %v1288
        %v3010 = vsel %vm560, %v711, %v1290
        %v3011 = vsel %vm560, %v712, %v1292
        %v3012 = vsel %vm560, %v714, %v1294
        %v3013 = vsel %vm560, %v715, %v1296
        %v3014 = vsel %vm560, %v716, %v1298
        %v3015 = vsel %vm560, %v718, %v1300
        %v3016 = vsel %vm560, %v719, %v1302
        %v3017 = vsel %vm560, %v720, %v1304
        %v3018 = vsel %vm560, %v722, %v1306
        %v3019 = vsel %vm560, %v723, %v1308
        %v3020 = vsel %vm560, %v724, %v1310
        %v3021 = vsel %vm560, %v726, %v1312
        %v3022 = vsel %vm560, %v727, %v1314
        %v3023 = vsel %vm560, %v728, %v1316
        %v3024 = vsel %vm560, %v730, %v1318
        %v3025 = vsel %vm560, %v731, %v1320
        %v3026 = vsel %vm560, %v732, %v1322
        %v3027 = vsel %vm560, %v734, %v1324
        %v3028 = vsel %vm560, %v735, %v1326
        %v3029 = vsel %vm560, %v736, %v1328
        %v3030 = vsel %vm560, %v738, %v1330
        %v3031 = vsel %vm560, %v739, %v1332
        %v3032 = vsel %vm560, %v740, %v1334
        %v3033 = vsel %vm560, %v742, %v1336
        %v3034 = vsel %vm560, %v743, %v1338
        %v3035 = vsel %vm560, %v744, %v1340
        %v3036 = vsel %vm560, %v746, %v1342
        %v3037 = vsel %vm560, %v747, %v1344
        %v3038 = vsel %vm560, %v748, %v1346
        %v3039 = vsel %vm560, %v750, %v1348
        %v3040 = vsel %vm560, %v751, %v1350
        %v3041 = vsel %vm560, %v752, %v1352
        %v3042 = vsel %vm560, %v754, %v1354
        %v3043 = vsel %vm560, %v755, %v1356
        %v3044 = vsel %vm560, %v756, %v1358
        %v3045 = vsel %vm560, %v758, %v1360
        %v3046 = vsel %vm560, %v759, %v1362
        %v3047 = vsel %vm560, %v760, %v1364
        %v3048 = vsel %vm560, %v762, %v1366
        %v3049 = vsel %vm560, %v763, %v1368
        %v3050 = vsel %vm560, %v764, %v1370
        %v3051 = vsel %vm560, %v766, %v1372
        %v3052 = vsel %vm560, %v767, %v1374
        %v3053 = vsel %vm560, %v768, %v1376
        %v3054 = vsel %vm560, %v770, %v1378
        %v3055 = vsel %vm560, %v771, %v1380
        %v3056 = vsel %vm560, %v772, %v1382
        %v3057 = vsel %vm560, %v774, %v1384
        %v3058 = vsel %vm560, %v775, %v1386
        %v3059 = vsel %vm560, %v776, %v1388
        %v3060 = vsel %vm560, %v778, %v1390
        %v3061 = vsel %vm560, %v779, %v1392
        %v3062 = vsel %vm560, %v780, %v1394
        %v3063 = vsel %vm560, %v782, %v1396
        %v3064 = vsel %vm560, %v783, %v1398
        %v3065 = vsel %vm560, %v784, %v1400
        %v3066 = vsel %vm560, %v786, %v1402
        %v3067 = vsel %vm560, %v787, %v1404
        %v3068 = vsel %vm560, %v788, %v1406
        %v3069 = vsel %vm560, %v790, %v1408
        %v3070 = vsel %vm560, %v791, %v1410
        %v3071 = vsel %vm560, %v792, %v1412
        %v3072 = vsel %vm560, %v794, %v1414
        %v3073 = vsel %vm560, %v795, %v1416
        %v3074 = vsel %vm560, %v796, %v1418
        %vm3075 = vcmask 64512
        %v3076 = vsel %vm3075, %v3003, %v1492
        %v3077 = vsel %vm3075, %v3004, %v1494
        %v3078 = vsel %vm3075, %v3005, %v1496
        %v3079 = vsel %vm3075, %v3006, %v1498
        %v3080 = vsel %vm3075, %v3007, %v1500
        %v3081 = vsel %vm3075, %v3008, %v1502
        %v3082 = vsel %vm3075, %v3009, %v1504
        %v3083 = vsel %vm3075, %v3010, %v1506
        %v3084 = vsel %vm3075, %v3011, %v1508
        %v3085 = vsel %vm3075, %v3012, %v1510
        %v3086 = vsel %vm3075, %v3013, %v1512
        %v3087 = vsel %vm3075, %v3014, %v1514
        %v3088 = vsel %vm3075, %v3015, %v1516
        %v3089 = vsel %vm3075, %v3016, %v1518
        %v3090 = vsel %vm3075, %v3017, %v1520
        %v3091 = vsel %vm3075, %v3018, %v1522
        %v3092 = vsel %vm3075, %v3019, %v1524
        %v3093 = vsel %vm3075, %v3020, %v1526
        %v3094 = vsel %vm3075, %v3021, %v1528
        %v3095 = vsel %vm3075, %v3022, %v1530
        %v3096 = vsel %vm3075, %v3023, %v1532
        %v3097 = vsel %vm3075, %v3024, %v1534
        %v3098 = vsel %vm3075, %v3025, %v1536
        %v3099 = vsel %vm3075, %v3026, %v1538
        %v3100 = vsel %vm3075, %v3027, %v1540
        %v3101 = vsel %vm3075, %v3028, %v1542
        %v3102 = vsel %vm3075, %v3029, %v1544
        %v3103 = vsel %vm3075, %v3030, %v1546
        %v3104 = vsel %vm3075, %v3031, %v1548
        %v3105 = vsel %vm3075, %v3032, %v1550
        %v3106 = vsel %vm3075, %v3033, %v1552
        %v3107 = vsel %vm3075, %v3034, %v1554
        %v3108 = vsel %vm3075, %v3035, %v1556
        %v3109 = vsel %vm3075, %v3036, %v1558
        %v3110 = vsel %vm3075, %v3037, %v1560
        %v3111 = vsel %vm3075, %v3038, %v1562
        %v3112 = vsel %vm3075, %v3039, %v1564
        %v3113 = vsel %vm3075, %v3040, %v1566
        %v3114 = vsel %vm3075, %v3041, %v1568
        %v3115 = vsel %vm3075, %v3042, %v1570
        %v3116 = vsel %vm3075, %v3043, %v1572
        %v3117 = vsel %vm3075, %v3044, %v1574
        %v3118 = vsel %vm3075, %v3045, %v1576
        %v3119 = vsel %vm3075, %v3046, %v1578
        %v3120 = vsel %vm3075, %v3047, %v1580
        %v3121 = vsel %vm3075, %v3048, %v1582
        %v3122 = vsel %vm3075, %v3049, %v1584
        %v3123 = vsel %vm3075, %v3050, %v1586
        %v3124 = vsel %vm3075, %v3051, %v1588
        %v3125 = vsel %vm3075, %v3052, %v1590
        %v3126 = vsel %vm3075, %v3053, %v1592
        %v3127 = vsel %vm3075, %v3054, %v1594
        %v3128 = vsel %vm3075, %v3055, %v1596
        %v3129 = vsel %vm3075, %v3056, %v1598
        %v3130 = vsel %vm3075, %v3057, %v1600
        %v3131 = vsel %vm3075, %v3058, %v1602
        %v3132 = vsel %vm3075, %v3059, %v1604
        %v3133 = vsel %vm3075, %v3060, %v1606
        %v3134 = vsel %vm3075, %v3061, %v1608
        %v3135 = vsel %vm3075, %v3062, %v1610
        %v3136 = vsel %vm3075, %v3063, %v1612
        %v3137 = vsel %vm3075, %v3064, %v1614
        %v3138 = vsel %vm3075, %v3065, %v1616
        %v3139 = vsel %vm3075, %v3066, %v1618
        %v3140 = vsel %vm3075, %v3067, %v1620
        %v3141 = vsel %vm3075, %v3068, %v1622
        %v3142 = vsel %vm3075, %v3069, %v1624
        %v3143 = vsel %vm3075, %v3070, %v1626
        %v3144 = vsel %vm3075, %v3071, %v1628
        %v3145 = vsel %vm3075, %v3072, %v1630
        %v3146 = vsel %vm3075, %v3073, %v1632
        %v3147 = vsel %vm3075, %v3074, %v1634
        %vm3148 = vcmask 97280
        %v3149 = vsel %vm3148, %v3076, %v1708
        %v3150 = vsel %vm3148, %v3077, %v1710
        %v3151 = vsel %vm3148, %v3078, %v1712
        %v3152 = vsel %vm3148, %v3079, %v1714
        %v3153 = vsel %vm3148, %v3080, %v1716
        %v3154 = vsel %vm3148, %v3081, %v1718
        %v3155 = vsel %vm3148, %v3082, %v1720
        %v3156 = vsel %vm3148, %v3083, %v1722
        %v3157 = vsel %vm3148, %v3084, %v1724
        %v3158 = vsel %vm3148, %v3085, %v1726
        %v3159 = vsel %vm3148, %v3086, %v1728
        %v3160 = vsel %vm3148, %v3087, %v1730
        %v3161 = vsel %vm3148, %v3088, %v1732
        %v3162 = vsel %vm3148, %v3089, %v1734
        %v3163 = vsel %vm3148, %v3090, %v1736
        %v3164 = vsel %vm3148, %v3091, %v1738
        %v3165 = vsel %vm3148, %v3092, %v1740
        %v3166 = vsel %vm3148, %v3093, %v1742
        %v3167 = vsel %vm3148, %v3094, %v1744
        %v3168 = vsel %vm3148, %v3095, %v1746
        %v3169 = vsel %vm3148, %v3096, %v1748
        %v3170 = vsel %vm3148, %v3097, %v1750
        %v3171 = vsel %vm3148, %v3098, %v1752
        %v3172 = vsel %vm3148, %v3099, %v1754
        %v3173 = vsel %vm3148, %v3100, %v1756
        %v3174 = vsel %vm3148, %v3101, %v1758
        %v3175 = vsel %vm3148, %v3102, %v1760
        %v3176 = vsel %vm3148, %v3103, %v1762
        %v3177 = vsel %vm3148, %v3104, %v1764
        %v3178 = vsel %vm3148, %v3105, %v1766
        %v3179 = vsel %vm3148, %v3106, %v1768
        %v3180 = vsel %vm3148, %v3107, %v1770
        %v3181 = vsel %vm3148, %v3108, %v1772
        %v3182 = vsel %vm3148, %v3109, %v1774
        %v3183 = vsel %vm3148, %v3110, %v1776
        %v3184 = vsel %vm3148, %v3111, %v1778
        %v3185 = vsel %vm3148, %v3112, %v1780
        %v3186 = vsel %vm3148, %v3113, %v1782
        %v3187 = vsel %vm3148, %v3114, %v1784
        %v3188 = vsel %vm3148, %v3115, %v1786
        %v3189 = vsel %vm3148, %v3116, %v1788
        %v3190 = vsel %vm3148, %v3117, %v1790
        %v3191 = vsel %vm3148, %v3118, %v1792
        %v3192 = vsel %vm3148, %v3119, %v1794
        %v3193 = vsel %vm3148, %v3120, %v1796
        %v3194 = vsel %vm3148, %v3121, %v1798
        %v3195 = vsel %vm3148, %v3122, %v1800
        %v3196 = vsel %vm3148, %v3123, %v1802
        %v3197 = vsel %vm3148, %v3124, %v1804
        %v3198 = vsel %vm3148, %v3125, %v1806
        %v3199 = vsel %vm3148, %v3126, %v1808
        %v3200 = vsel %vm3148, %v3127, %v1810
        %v3201 = vsel %vm3148, %v3128, %v1812
        %v3202 = vsel %vm3148, %v3129, %v1814
        %v3203 = vsel %vm3148, %v3130, %v1816
        %v3204 = vsel %vm3148, %v3131, %v1818
        %v3205 = vsel %vm3148, %v3132, %v1820
        %v3206 = vsel %vm3148, %v3133, %v1822
        %v3207 = vsel %vm3148, %v3134, %v1824
        %v3208 = vsel %vm3148, %v3135, %v1826
        %v3209 = vsel %vm3148, %v3136, %v1828
        %v3210 = vsel %vm3148, %v3137, %v1830
        %v3211 = vsel %vm3148, %v3138, %v1832
        %v3212 = vsel %vm3148, %v3139, %v1834
        %v3213 = vsel %vm3148, %v3140, %v1836
        %v3214 = vsel %vm3148, %v3141, %v1838
        %v3215 = vsel %vm3148, %v3142, %v1840
        %v3216 = vsel %vm3148, %v3143, %v1842
        %v3217 = vsel %vm3148, %v3144, %v1844
        %v3218 = vsel %vm3148, %v3145, %v1846
        %v3219 = vsel %vm3148, %v3146, %v1848
        %v3220 = vsel %vm3148, %v3147, %v1850
        %vm3221 = vcmask 130048
        %v3222 = vsel %vm3221, %v3149, %v1924
        %v3223 = vsel %vm3221, %v3150, %v1926
        %v3224 = vsel %vm3221, %v3151, %v1928
        %v3225 = vsel %vm3221, %v3152, %v1930
        %v3226 = vsel %vm3221, %v3153, %v1932
        %v3227 = vsel %vm3221, %v3154, %v1934
        %v3228 = vsel %vm3221, %v3155, %v1936
        %v3229 = vsel %vm3221, %v3156, %v1938
        %v3230 = vsel %vm3221, %v3157, %v1940
        %v3231 = vsel %vm3221, %v3158, %v1942
        %v3232 = vsel %vm3221, %v3159, %v1944
        %v3233 = vsel %vm3221, %v3160, %v1946
        %v3234 = vsel %vm3221, %v3161, %v1948
        %v3235 = vsel %vm3221, %v3162, %v1950
        %v3236 = vsel %vm3221, %v3163, %v1952
        %v3237 = vsel %vm3221, %v3164, %v1954
        %v3238 = vsel %vm3221, %v3165, %v1956
        %v3239 = vsel %vm3221, %v3166, %v1958
        %v3240 = vsel %vm3221, %v3167, %v1960
        %v3241 = vsel %vm3221, %v3168, %v1962
        %v3242 = vsel %vm3221, %v3169, %v1964
        %v3243 = vsel %vm3221, %v3170, %v1966
        %v3244 = vsel %vm3221, %v3171, %v1968
        %v3245 = vsel %vm3221, %v3172, %v1970
        %v3246 = vsel %vm3221, %v3173, %v1972
        %v3247 = vsel %vm3221, %v3174, %v1974
        %v3248 = vsel %vm3221, %v3175, %v1976
        %v3249 = vsel %vm3221, %v3176, %v1978
        %v3250 = vsel %vm3221, %v3177, %v1980
        %v3251 = vsel %vm3221, %v3178, %v1982
        %v3252 = vsel %vm3221, %v3179, %v1984
        %v3253 = vsel %vm3221, %v3180, %v1986
        %v3254 = vsel %vm3221, %v3181, %v1988
        %v3255 = vsel %vm3221, %v3182, %v1990
        %v3256 = vsel %vm3221, %v3183, %v1992
        %v3257 = vsel %vm3221, %v3184, %v1994
        %v3258 = vsel %vm3221, %v3185, %v1996
        %v3259 = vsel %vm3221, %v3186, %v1998
        %v3260 = vsel %vm3221, %v3187, %v2000
        %v3261 = vsel %vm3221, %v3188, %v2002
        %v3262 = vsel %vm3221, %v3189, %v2004
        %v3263 = vsel %vm3221, %v3190, %v2006
        %v3264 = vsel %vm3221, %v3191, %v2008
        %v3265 = vsel %vm3221, %v3192, %v2010
        %v3266 = vsel %vm3221, %v3193, %v2012
        %v3267 = vsel %vm3221, %v3194, %v2014
        %v3268 = vsel %vm3221, %v3195, %v2016
        %v3269 = vsel %vm3221, %v3196, %v2018
        %v3270 = vsel %vm3221, %v3197, %v2020
        %v3271 = vsel %vm3221, %v3198, %v2022
        %v3272 = vsel %vm3221, %v3199, %v2024
        %v3273 = vsel %vm3221, %v3200, %v2026
        %v3274 = vsel %vm3221, %v3201, %v2028
        %v3275 = vsel %vm3221, %v3202, %v2030
        %v3276 = vsel %vm3221, %v3203, %v2032
        %v3277 = vsel %vm3221, %v3204, %v2034
        %v3278 = vsel %vm3221, %v3205, %v2036
        %v3279 = vsel %vm3221, %v3206, %v2038
        %v3280 = vsel %vm3221, %v3207, %v2040
        %v3281 = vsel %vm3221, %v3208, %v2042
        %v3282 = vsel %vm3221, %v3209, %v2044
        %v3283 = vsel %vm3221, %v3210, %v2046
        %v3284 = vsel %vm3221, %v3211, %v2048
        %v3285 = vsel %vm3221, %v3212, %v2050
        %v3286 = vsel %vm3221, %v3213, %v2052
        %v3287 = vsel %vm3221, %v3214, %v2054
        %v3288 = vsel %vm3221, %v3215, %v2056
        %v3289 = vsel %vm3221, %v3216, %v2058
        %v3290 = vsel %vm3221, %v3217, %v2060
        %v3291 = vsel %vm3221, %v3218, %v2062
        %v3292 = vsel %vm3221, %v3219, %v2064
        %v3293 = vsel %vm3221, %v3220, %v2066
        %vm3294 = vcmask 162816
        %v3295 = vsel %vm3294, %v3222, %v2140
        %v3296 = vsel %vm3294, %v3223, %v2142
        %v3297 = vsel %vm3294, %v3224, %v2144
        %v3298 = vsel %vm3294, %v3225, %v2146
        %v3299 = vsel %vm3294, %v3226, %v2148
        %v3300 = vsel %vm3294, %v3227, %v2150
        %v3301 = vsel %vm3294, %v3228, %v2152
        %v3302 = vsel %vm3294, %v3229, %v2154
        %v3303 = vsel %vm3294, %v3230, %v2156
        %v3304 = vsel %vm3294, %v3231, %v2158
        %v3305 = vsel %vm3294, %v3232, %v2160
        %v3306 = vsel %vm3294, %v3233, %v2162
        %v3307 = vsel %vm3294, %v3234, %v2164
        %v3308 = vsel %vm3294, %v3235, %v2166
        %v3309 = vsel %vm3294, %v3236, %v2168
        %v3310 = vsel %vm3294, %v3237, %v2170
        %v3311 = vsel %vm3294, %v3238, %v2172
        %v3312 = vsel %vm3294, %v3239, %v2174
        %v3313 = vsel %vm3294, %v3240, %v2176
        %v3314 = vsel %vm3294, %v3241, %v2178
        %v3315 = vsel %vm3294, %v3242, %v2180
        %v3316 = vsel %vm3294, %v3243, %v2182
        %v3317 = vsel %vm3294, %v3244, %v2184
        %v3318 = vsel %vm3294, %v3245, %v2186
        %v3319 = vsel %vm3294, %v3246, %v2188
        %v3320 = vsel %vm3294, %v3247, %v2190
        %v3321 = vsel %vm3294, %v3248, %v2192
        %v3322 = vsel %vm3294, %v3249, %v2194
        %v3323 = vsel %vm3294, %v3250, %v2196
        %v3324 = vsel %vm3294, %v3251, %v2198
        %v3325 = vsel %vm3294, %v3252, %v2200
        %v3326 = vsel %vm3294, %v3253, %v2202
        %v3327 = vsel %vm3294, %v3254, %v2204
        %v3328 = vsel %vm3294, %v3255, %v2206
        %v3329 = vsel %vm3294, %v3256, %v2208
        %v3330 = vsel %vm3294, %v3257, %v2210
        %v3331 = vsel %vm3294, %v3258, %v2212
        %v3332 = vsel %vm3294, %v3259, %v2214
        %v3333 = vsel %vm3294, %v3260, %v2216
        %v3334 = vsel %vm3294, %v3261, %v2218
        %v3335 = vsel %vm3294, %v3262, %v2220
        %v3336 = vsel %vm3294, %v3263, %v2222
        %v3337 = vsel %vm3294, %v3264, %v2224
        %v3338 = vsel %vm3294, %v3265, %v2226
        %v3339 = vsel %vm3294, %v3266, %v2228
        %v3340 = vsel %vm3294, %v3267, %v2230
        %v3341 = vsel %vm3294, %v3268, %v2232
        %v3342 = vsel %vm3294, %v3269, %v2234
        %v3343 = vsel %vm3294, %v3270, %v2236
        %v3344 = vsel %vm3294, %v3271, %v2238
        %v3345 = vsel %vm3294, %v3272, %v2240
        %v3346 = vsel %vm3294, %v3273, %v2242
        %v3347 = vsel %vm3294, %v3274, %v2244
        %v3348 = vsel %vm3294, %v3275, %v2246
        %v3349 = vsel %vm3294, %v3276, %v2248
        %v3350 = vsel %vm3294, %v3277, %v2250
        %v3351 = vsel %vm3294, %v3278, %v2252
        %v3352 = vsel %vm3294, %v3279, %v2254
        %v3353 = vsel %vm3294, %v3280, %v2256
        %v3354 = vsel %vm3294, %v3281, %v2258
        %v3355 = vsel %vm3294, %v3282, %v2260
        %v3356 = vsel %vm3294, %v3283, %v2262
        %v3357 = vsel %vm3294, %v3284, %v2264
        %v3358 = vsel %vm3294, %v3285, %v2266
        %v3359 = vsel %vm3294, %v3286, %v2268
        %v3360 = vsel %vm3294, %v3287, %v2270
        %v3361 = vsel %vm3294, %v3288, %v2272
        %v3362 = vsel %vm3294, %v3289, %v2274
        %v3363 = vsel %vm3294, %v3290, %v2276
        %v3364 = vsel %vm3294, %v3291, %v2278
        %v3365 = vsel %vm3294, %v3292, %v2280
        %v3366 = vsel %vm3294, %v3293, %v2282
        %vm3367 = vcmask 195584
        %v3368 = vsel %vm3367, %v3295, %v2356
        %v3369 = vsel %vm3367, %v3296, %v2358
        %v3370 = vsel %vm3367, %v3297, %v2360
        %v3371 = vsel %vm3367, %v3298, %v2362
        %v3372 = vsel %vm3367, %v3299, %v2364
        %v3373 = vsel %vm3367, %v3300, %v2366
        %v3374 = vsel %vm3367, %v3301, %v2368
        %v3375 = vsel %vm3367, %v3302, %v2370
        %v3376 = vsel %vm3367, %v3303, %v2372
        %v3377 = vsel %vm3367, %v3304, %v2374
        %v3378 = vsel %vm3367, %v3305, %v2376
        %v3379 = vsel %vm3367, %v3306, %v2378
        %v3380 = vsel %vm3367, %v3307, %v2380
        %v3381 = vsel %vm3367, %v3308, %v2382
        %v3382 = vsel %vm3367, %v3309, %v2384
        %v3383 = vsel %vm3367, %v3310, %v2386
        %v3384 = vsel %vm3367, %v3311, %v2388
        %v3385 = vsel %vm3367, %v3312, %v2390
        %v3386 = vsel %vm3367, %v3313, %v2392
        %v3387 = vsel %vm3367, %v3314, %v2394
        %v3388 = vsel %vm3367, %v3315, %v2396
        %v3389 = vsel %vm3367, %v3316, %v2398
        %v3390 = vsel %vm3367, %v3317, %v2400
        %v3391 = vsel %vm3367, %v3318, %v2402
        %v3392 = vsel %vm3367, %v3319, %v2404
        %v3393 = vsel %vm3367, %v3320, %v2406
        %v3394 = vsel %vm3367, %v3321, %v2408
        %v3395 = vsel %vm3367, %v3322, %v2410
        %v3396 = vsel %vm3367, %v3323, %v2412
        %v3397 = vsel %vm3367, %v3324, %v2414
        %v3398 = vsel %vm3367, %v3325, %v2416
        %v3399 = vsel %vm3367, %v3326, %v2418
        %v3400 = vsel %vm3367, %v3327, %v2420
        %v3401 = vsel %vm3367, %v3328, %v2422
        %v3402 = vsel %vm3367, %v3329, %v2424
        %v3403 = vsel %vm3367, %v3330, %v2426
        %v3404 = vsel %vm3367, %v3331, %v2428
        %v3405 = vsel %vm3367, %v3332, %v2430
        %v3406 = vsel %vm3367, %v3333, %v2432
        %v3407 = vsel %vm3367, %v3334, %v2434
        %v3408 = vsel %vm3367, %v3335, %v2436
        %v3409 = vsel %vm3367, %v3336, %v2438
        %v3410 = vsel %vm3367, %v3337, %v2440
        %v3411 = vsel %vm3367, %v3338, %v2442
        %v3412 = vsel %vm3367, %v3339, %v2444
        %v3413 = vsel %vm3367, %v3340, %v2446
        %v3414 = vsel %vm3367, %v3341, %v2448
        %v3415 = vsel %vm3367, %v3342, %v2450
        %v3416 = vsel %vm3367, %v3343, %v2452
        %v3417 = vsel %vm3367, %v3344, %v2454
        %v3418 = vsel %vm3367, %v3345, %v2456
        %v3419 = vsel %vm3367, %v3346, %v2458
        %v3420 = vsel %vm3367, %v3347, %v2460
        %v3421 = vsel %vm3367, %v3348, %v2462
        %v3422 = vsel %vm3367, %v3349, %v2464
        %v3423 = vsel %vm3367, %v3350, %v2466
        %v3424 = vsel %vm3367, %v3351, %v2468
        %v3425 = vsel %vm3367, %v3352, %v2470
        %v3426 = vsel %vm3367, %v3353, %v2472
        %v3427 = vsel %vm3367, %v3354, %v2474
        %v3428 = vsel %vm3367, %v3355, %v2476
        %v3429 = vsel %vm3367, %v3356, %v2478
        %v3430 = vsel %vm3367, %v3357, %v2480
        %v3431 = vsel %vm3367, %v3358, %v2482
        %v3432 = vsel %vm3367, %v3359, %v2484
        %v3433 = vsel %vm3367, %v3360, %v2486
        %v3434 = vsel %vm3367, %v3361, %v2488
        %v3435 = vsel %vm3367, %v3362, %v2490
        %v3436 = vsel %vm3367, %v3363, %v2492
        %v3437 = vsel %vm3367, %v3364, %v2494
        %v3438 = vsel %vm3367, %v3365, %v2496
        %v3439 = vsel %vm3367, %v3366, %v2498
        %vm3440 = vcmask 228352
        %v3441 = vsel %vm3440, %v3368, %v2572
        %v3442 = vsel %vm3440, %v3369, %v2574
        %v3443 = vsel %vm3440, %v3370, %v2576
        %v3444 = vsel %vm3440, %v3371, %v2578
        %v3445 = vsel %vm3440, %v3372, %v2580
        %v3446 = vsel %vm3440, %v3373, %v2582
        %v3447 = vsel %vm3440, %v3374, %v2584
        %v3448 = vsel %vm3440, %v3375, %v2586
        %v3449 = vsel %vm3440, %v3376, %v2588
        %v3450 = vsel %vm3440, %v3377, %v2590
        %v3451 = vsel %vm3440, %v3378, %v2592
        %v3452 = vsel %vm3440, %v3379, %v2594
        %v3453 = vsel %vm3440, %v3380, %v2596
        %v3454 = vsel %vm3440, %v3381, %v2598
        %v3455 = vsel %vm3440, %v3382, %v2600
        %v3456 = vsel %vm3440, %v3383, %v2602
        %v3457 = vsel %vm3440, %v3384, %v2604
        %v3458 = vsel %vm3440, %v3385, %v2606
        %v3459 = vsel %vm3440, %v3386, %v2608
        %v3460 = vsel %vm3440, %v3387, %v2610
        %v3461 = vsel %vm3440, %v3388, %v2612
        %v3462 = vsel %vm3440, %v3389, %v2614
        %v3463 = vsel %vm3440, %v3390, %v2616
        %v3464 = vsel %vm3440, %v3391, %v2618
        %v3465 = vsel %vm3440, %v3392, %v2620
        %v3466 = vsel %vm3440, %v3393, %v2622
        %v3467 = vsel %vm3440, %v3394, %v2624
        %v3468 = vsel %vm3440, %v3395, %v2626
        %v3469 = vsel %vm3440, %v3396, %v2628
        %v3470 = vsel %vm3440, %v3397, %v2630
        %v3471 = vsel %vm3440, %v3398, %v2632
        %v3472 = vsel %vm3440, %v3399, %v2634
        %v3473 = vsel %vm3440, %v3400, %v2636
        %v3474 = vsel %vm3440, %v3401, %v2638
        %v3475 = vsel %vm3440, %v3402, %v2640
        %v3476 = vsel %vm3440, %v3403, %v2642
        %v3477 = vsel %vm3440, %v3404, %v2644
        %v3478 = vsel %vm3440, %v3405, %v2646
        %v3479 = vsel %vm3440, %v3406, %v2648
        %v3480 = vsel %vm3440, %v3407, %v2650
        %v3481 = vsel %vm3440, %v3408, %v2652
        %v3482 = vsel %vm3440, %v3409, %v2654
        %v3483 = vsel %vm3440, %v3410, %v2656
        %v3484 = vsel %vm3440, %v3411, %v2658
        %v3485 = vsel %vm3440, %v3412, %v2660
        %v3486 = vsel %vm3440, %v3413, %v2662
        %v3487 = vsel %vm3440, %v3414, %v2664
        %v3488 = vsel %vm3440, %v3415, %v2666
        %v3489 = vsel %vm3440, %v3416, %v2668
        %v3490 = vsel %vm3440, %v3417, %v2670
        %v3491 = vsel %vm3440, %v3418, %v2672
        %v3492 = vsel %vm3440, %v3419, %v2674
        %v3493 = vsel %vm3440, %v3420, %v2676
        %v3494 = vsel %vm3440, %v3421, %v2678
        %v3495 = vsel %vm3440, %v3422, %v2680
        %v3496 = vsel %vm3440, %v3423, %v2682
        %v3497 = vsel %vm3440, %v3424, %v2684
        %v3498 = vsel %vm3440, %v3425, %v2686
        %v3499 = vsel %vm3440, %v3426, %v2688
        %v3500 = vsel %vm3440, %v3427, %v2690
        %v3501 = vsel %vm3440, %v3428, %v2692
        %v3502 = vsel %vm3440, %v3429, %v2694
        %v3503 = vsel %vm3440, %v3430, %v2696
        %v3504 = vsel %vm3440, %v3431, %v2698
        %v3505 = vsel %vm3440, %v3432, %v2700
        %v3506 = vsel %vm3440, %v3433, %v2702
        %v3507 = vsel %vm3440, %v3434, %v2704
        %v3508 = vsel %vm3440, %v3435, %v2706
        %v3509 = vsel %vm3440, %v3436, %v2708
        %v3510 = vsel %vm3440, %v3437, %v2710
        %v3511 = vsel %vm3440, %v3438, %v2712
        %v3512 = vsel %vm3440, %v3439, %v2714
        %vm3513 = vcmask 261120
        %v3514 = vsel %vm3513, %v3441, %v2788
        %v3515 = vsel %vm3513, %v3442, %v2790
        %v3516 = vsel %vm3513, %v3443, %v2792
        %v3517 = vsel %vm3513, %v3444, %v2794
        %v3518 = vsel %vm3513, %v3445, %v2796
        %v3519 = vsel %vm3513, %v3446, %v2798
        %v3520 = vsel %vm3513, %v3447, %v2800
        %v3521 = vsel %vm3513, %v3448, %v2802
        %v3522 = vsel %vm3513, %v3449, %v2804
        %v3523 = vsel %vm3513, %v3450, %v2806
        %v3524 = vsel %vm3513, %v3451, %v2808
        %v3525 = vsel %vm3513, %v3452, %v2810
        %v3526 = vsel %vm3513, %v3453, %v2812
        %v3527 = vsel %vm3513, %v3454, %v2814
        %v3528 = vsel %vm3513, %v3455, %v2816
        %v3529 = vsel %vm3513, %v3456, %v2818
        %v3530 = vsel %vm3513, %v3457, %v2820
        %v3531 = vsel %vm3513, %v3458, %v2822
        %v3532 = vsel %vm3513, %v3459, %v2824
        %v3533 = vsel %vm3513, %v3460, %v2826
        %v3534 = vsel %vm3513, %v3461, %v2828
        %v3535 = vsel %vm3513, %v3462, %v2830
        %v3536 = vsel %vm3513, %v3463, %v2832
        %v3537 = vsel %vm3513, %v3464, %v2834
        %v3538 = vsel %vm3513, %v3465, %v2836
        %v3539 = vsel %vm3513, %v3466, %v2838
        %v3540 = vsel %vm3513, %v3467, %v2840
        %v3541 = vsel %vm3513, %v3468, %v2842
        %v3542 = vsel %vm3513, %v3469, %v2844
        %v3543 = vsel %vm3513, %v3470, %v2846
        %v3544 = vsel %vm3513, %v3471, %v2848
        %v3545 = vsel %vm3513, %v3472, %v2850
        %v3546 = vsel %vm3513, %v3473, %v2852
        %v3547 = vsel %vm3513, %v3474, %v2854
        %v3548 = vsel %vm3513, %v3475, %v2856
        %v3549 = vsel %vm3513, %v3476, %v2858
        %v3550 = vsel %vm3513, %v3477, %v2860
        %v3551 = vsel %vm3513, %v3478, %v2862
        %v3552 = vsel %vm3513, %v3479, %v2864
        %v3553 = vsel %vm3513, %v3480, %v2866
        %v3554 = vsel %vm3513, %v3481, %v2868
        %v3555 = vsel %vm3513, %v3482, %v2870
        %v3556 = vsel %vm3513, %v3483, %v2872
        %v3557 = vsel %vm3513, %v3484, %v2874
        %v3558 = vsel %vm3513, %v3485, %v2876
        %v3559 = vsel %vm3513, %v3486, %v2878
        %v3560 = vsel %vm3513, %v3487, %v2880
        %v3561 = vsel %vm3513, %v3488, %v2882
        %v3562 = vsel %vm3513, %v3489, %v2884
        %v3563 = vsel %vm3513, %v3490, %v2886
        %v3564 = vsel %vm3513, %v3491, %v2888
        %v3565 = vsel %vm3513, %v3492, %v2890
        %v3566 = vsel %vm3513, %v3493, %v2892
        %v3567 = vsel %vm3513, %v3494, %v2894
        %v3568 = vsel %vm3513, %v3495, %v2896
        %v3569 = vsel %vm3513, %v3496, %v2898
        %v3570 = vsel %vm3513, %v3497, %v2900
        %v3571 = vsel %vm3513, %v3498, %v2902
        %v3572 = vsel %vm3513, %v3499, %v2904
        %v3573 = vsel %vm3513, %v3500, %v2906
        %v3574 = vsel %vm3513, %v3501, %v2908
        %v3575 = vsel %vm3513, %v3502, %v2910
        %v3576 = vsel %vm3513, %v3503, %v2912
        %v3577 = vsel %vm3513, %v3504, %v2914
        %v3578 = vsel %vm3513, %v3505, %v2916
        %v3579 = vsel %vm3513, %v3506, %v2918
        %v3580 = vsel %vm3513, %v3507, %v2920
        %v3581 = vsel %vm3513, %v3508, %v2922
        %v3582 = vsel %vm3513, %v3509, %v2924
        %v3583 = vsel %vm3513, %v3510, %v2926
        %v3584 = vsel %vm3513, %v3511, %v2928
        %v3585 = vsel %vm3513, %v3512, %v2930
        %v3586 = vpack.c.bf16 %v3515, %v3514
        %v3587 = vpack.c.bf16 %v3517, %v3516
        %v3588 = vpack.c.bf16 %v3519, %v3518
        %v3589 = vpack.c.bf16 %v3521, %v3520
        %v3590 = vpack.c.bf16 %v3523, %v3522
        %v3591 = vpack.c.bf16 %v3525, %v3524
        %v3592 = vpack.c.bf16 %v3527, %v3526
        %v3593 = vpack.c.bf16 %v3529, %v3528
        %v3594 = vpack.c.bf16 %v3531, %v3530
        %v3595 = vpack.c.bf16 %v3533, %v3532
        %v3596 = vpack.c.bf16 %v3535, %v3534
        %v3597 = vpack.c.bf16 %v3537, %v3536
        %v3598 = vpack.c.bf16 %v3539, %v3538
        %v3599 = vpack.c.bf16 %v3541, %v3540
        %v3600 = vpack.c.bf16 %v3543, %v3542
        %v3601 = vpack.c.bf16 %v3545, %v3544
        %v3602 = vpack.c.bf16 %v3547, %v3546
        %v3603 = vpack.c.bf16 %v3549, %v3548
        %v3604 = vpack.c.bf16 %v3551, %v3550
        %v3605 = vpack.c.bf16 %v3553, %v3552
        %v3606 = vpack.c.bf16 %v3555, %v3554
        %v3607 = vpack.c.bf16 %v3557, %v3556
        %v3608 = vpack.c.bf16 %v3559, %v3558
        %v3609 = vpack.c.bf16 %v3561, %v3560
        %v3610 = vpack.c.bf16 %v3563, %v3562
        %v3611 = vpack.c.bf16 %v3565, %v3564
        %v3612 = vpack.c.bf16 %v3567, %v3566
        %v3613 = vpack.c.bf16 %v3569, %v3568
        %v3614 = vpack.c.bf16 %v3571, %v3570
        %v3615 = vpack.c.bf16 %v3573, %v3572
        %v3616 = vpack.c.bf16 %v3575, %v3574
        %v3617 = vpack.c.bf16 %v3577, %v3576
        %v3618 = vpack.c.bf16 %v3579, %v3578
        %v3619 = vpack.c.bf16 %v3581, %v3580
        %v3620 = vpack.c.bf16 %v3583, %v3582
        %v3621 = vpack.c.bf16 %v3585, %v3584
        %v3622 = vld [vmem:[%s2] sm:$0xf]
        %v3623 = vld [vmem:[%s2 + $0x4] sm:$0xf]
        %v3624 = vld [vmem:[%s2 + $0x8] sm:$0xf]
        %v3625 = vld [vmem:[%s2 + $0xc] sm:$0xf]
        %v3626 = vld [vmem:[%s2 + $0x10] sm:$0x3]
        %v3627 = vld [vmem:[%s3] sm:$0x1]
        %v3629 = vperm.slane %v3627, 0
        %v3636 = vunpack.c.l.b16 %v3622
        %v3637 = vunpack.c.l.b16 %v3623
        %v3638 = vunpack.c.l.b16 %v3624
        %v3639 = vunpack.c.l.b16 %v3625
        %v3640 = vunpack.c.l.b16 %v3626
        %v3641 = vpack.c.b16 %v3637, %v3636
        %v3642 = vpack.c.b16 %v3639, %v3638
        %v3643 = vpack.c.b16 %v3640, %v3640
        %vm3646 = vcmask 293888
        %v3648 = vsel %vm3646, %v3586, 0
        %v3651 = vsel %vm3646, %v3587, 0
        %v3654 = vsel %vm3646, %v3588, 0
        %v3657 = vsel %vm3646, %v3589, 0
        %v3660 = vsel %vm3646, %v3590, 0
        %v3663 = vsel %vm3646, %v3591, 0
        %v3666 = vsel %vm3646, %v3592, 0
        %v3669 = vsel %vm3646, %v3593, 0
        %v3672 = vsel %vm3646, %v3594, 0
        %v3675 = vsel %vm3646, %v3595, 0
        %v3678 = vsel %vm3646, %v3596, 0
        %v3681 = vsel %vm3646, %v3597, 0
        %v3684 = vsel %vm3646, %v3598, 0
        %v3687 = vsel %vm3646, %v3599, 0
        %v3690 = vsel %vm3646, %v3600, 0
        %v3693 = vsel %vm3646, %v3601, 0
        %v3696 = vsel %vm3646, %v3602, 0
        %v3699 = vsel %vm3646, %v3603, 0
        %v3702 = vsel %vm3646, %v3604, 0
        %v3705 = vsel %vm3646, %v3605, 0
        %v3708 = vsel %vm3646, %v3606, 0
        %v3711 = vsel %vm3646, %v3607, 0
        %v3714 = vsel %vm3646, %v3608, 0
        %v3717 = vsel %vm3646, %v3609, 0
        %v3720 = vsel %vm3646, %v3610, 0
        %v3723 = vsel %vm3646, %v3611, 0
        %v3726 = vsel %vm3646, %v3612, 0
        %v3729 = vsel %vm3646, %v3613, 0
        %v3732 = vsel %vm3646, %v3614, 0
        %v3735 = vsel %vm3646, %v3615, 0
        %v3738 = vsel %vm3646, %v3616, 0
        %v3741 = vsel %vm3646, %v3617, 0
        %v3744 = vsel %vm3646, %v3618, 0
        %v3747 = vsel %vm3646, %v3619, 0
        %v3750 = vsel %vm3646, %v3620, 0
        %v3753 = vsel %vm3646, %v3621, 0
        %v3756 = vsel %vm609, %v3643, 0
        %3758 = vmatpush.bf16.msra.mxu0 0
        %3759 = vmatpush.bf16.msra.mxu0 0
        %3760 = vmatpush.bf16.msra.mxu0 0
        %3761 = vmatpush.bf16.msra.mxu0 0
        %3762 = vmatpush.bf16.msra.mxu0 0
        %3763 = vmatpush.bf16.msra.mxu0 %v3756
        %3764 = vmatpush.bf16.msra.mxu0 %v3642
        %3765 = vmatpush.bf16.msra.mxu0 %v3641
        %3766 = vmatmul.bf16.gmra.mxu0 %v3648
        %v3767 = vpop.f32.mrf.mxu0
        %v3768 = vadd.f32 %v3629, %v3767
        %v3769 = vpop.f32.mrf.mxu0
        %v3770 = vadd.f32 %v3629, %v3769
        %3771 = vmatmul.bf16.gmra.mxu0 %v3651
        %v3772 = vpop.f32.mrf.mxu0
        %v3773 = vadd.f32 %v3629, %v3772
        %v3774 = vpop.f32.mrf.mxu0
        %v3775 = vadd.f32 %v3629, %v3774
        %3776 = vmatmul.bf16.gmra.mxu0 %v3654
        %v3777 = vpop.f32.mrf.mxu0
        %v3778 = vadd.f32 %v3629, %v3777
        %v3779 = vpop.f32.mrf.mxu0
        %v3780 = vadd.f32 %v3629, %v3779
        %3781 = vmatmul.bf16.gmra.mxu0 %v3657
        %v3782 = vpop.f32.mrf.mxu0
        %v3783 = vadd.f32 %v3629, %v3782
        %v3784 = vpop.f32.mrf.mxu0
        %v3785 = vadd.f32 %v3629, %v3784
        %3786 = vmatmul.bf16.gmra.mxu0 %v3660
        %v3787 = vpop.f32.mrf.mxu0
        %v3788 = vadd.f32 %v3629, %v3787
        %v3789 = vpop.f32.mrf.mxu0
        %v3790 = vadd.f32 %v3629, %v3789
        %3791 = vmatmul.bf16.gmra.mxu0 %v3663
        %v3792 = vpop.f32.mrf.mxu0
        %v3793 = vadd.f32 %v3629, %v3792
        %v3794 = vpop.f32.mrf.mxu0
        %v3795 = vadd.f32 %v3629, %v3794
        %3796 = vmatmul.bf16.gmra.mxu0 %v3666
        %v3797 = vpop.f32.mrf.mxu0
        %v3798 = vadd.f32 %v3629, %v3797
        %v3799 = vpop.f32.mrf.mxu0
        %v3800 = vadd.f32 %v3629, %v3799
        %3801 = vmatmul.bf16.gmra.mxu0 %v3669
        %v3802 = vpop.f32.mrf.mxu0
        %v3803 = vadd.f32 %v3629, %v3802
        %v3804 = vpop.f32.mrf.mxu0
        %v3805 = vadd.f32 %v3629, %v3804
        %3806 = vmatmul.bf16.gmra.mxu0 %v3672
        %v3807 = vpop.f32.mrf.mxu0
        %v3808 = vadd.f32 %v3629, %v3807
        %v3809 = vpop.f32.mrf.mxu0
        %v3810 = vadd.f32 %v3629, %v3809
        %3811 = vmatmul.bf16.gmra.mxu0 %v3675
        %v3812 = vpop.f32.mrf.mxu0
        %v3813 = vadd.f32 %v3629, %v3812
        %v3814 = vpop.f32.mrf.mxu0
        %v3815 = vadd.f32 %v3629, %v3814
        %3816 = vmatmul.bf16.gmra.mxu0 %v3678
        %v3817 = vpop.f32.mrf.mxu0
        %v3818 = vadd.f32 %v3629, %v3817
        %v3819 = vpop.f32.mrf.mxu0
        %v3820 = vadd.f32 %v3629, %v3819
        %3821 = vmatmul.bf16.gmra.mxu0 %v3681
        %v3822 = vpop.f32.mrf.mxu0
        %v3823 = vadd.f32 %v3629, %v3822
        %v3824 = vpop.f32.mrf.mxu0
        %v3825 = vadd.f32 %v3629, %v3824
        %3826 = vmatmul.bf16.gmra.mxu0 %v3684
        %v3827 = vpop.f32.mrf.mxu0
        %v3828 = vadd.f32 %v3629, %v3827
        %v3829 = vpop.f32.mrf.mxu0
        %v3830 = vadd.f32 %v3629, %v3829
        %3831 = vmatmul.bf16.gmra.mxu0 %v3687
        %v3832 = vpop.f32.mrf.mxu0
        %v3833 = vadd.f32 %v3629, %v3832
        %v3834 = vpop.f32.mrf.mxu0
        %v3835 = vadd.f32 %v3629, %v3834
        %3836 = vmatmul.bf16.gmra.mxu0 %v3690
        %v3837 = vpop.f32.mrf.mxu0
        %v3838 = vadd.f32 %v3629, %v3837
        %v3839 = vpop.f32.mrf.mxu0
        %v3840 = vadd.f32 %v3629, %v3839
        %3841 = vmatmul.bf16.gmra.mxu0 %v3693
        %v3842 = vpop.f32.mrf.mxu0
        %v3843 = vadd.f32 %v3629, %v3842
        %v3844 = vpop.f32.mrf.mxu0
        %v3845 = vadd.f32 %v3629, %v3844
        %3846 = vmatmul.bf16.gmra.mxu0 %v3696
        %v3847 = vpop.f32.mrf.mxu0
        %v3848 = vadd.f32 %v3629, %v3847
        %v3849 = vpop.f32.mrf.mxu0
        %v3850 = vadd.f32 %v3629, %v3849
        %3851 = vmatmul.bf16.gmra.mxu0 %v3699
        %v3852 = vpop.f32.mrf.mxu0
        %v3853 = vadd.f32 %v3629, %v3852
        %v3854 = vpop.f32.mrf.mxu0
        %v3855 = vadd.f32 %v3629, %v3854
        %3856 = vmatmul.bf16.gmra.mxu0 %v3702
        %v3857 = vpop.f32.mrf.mxu0
        %v3858 = vadd.f32 %v3629, %v3857
        %v3859 = vpop.f32.mrf.mxu0
        %v3860 = vadd.f32 %v3629, %v3859
        %3861 = vmatmul.bf16.gmra.mxu0 %v3705
        %v3862 = vpop.f32.mrf.mxu0
        %v3863 = vadd.f32 %v3629, %v3862
        %v3864 = vpop.f32.mrf.mxu0
        %v3865 = vadd.f32 %v3629, %v3864
        %3866 = vmatmul.bf16.gmra.mxu0 %v3708
        %v3867 = vpop.f32.mrf.mxu0
        %v3868 = vadd.f32 %v3629, %v3867
        %v3869 = vpop.f32.mrf.mxu0
        %v3870 = vadd.f32 %v3629, %v3869
        %3871 = vmatmul.bf16.gmra.mxu0 %v3711
        %v3872 = vpop.f32.mrf.mxu0
        %v3873 = vadd.f32 %v3629, %v3872
        %v3874 = vpop.f32.mrf.mxu0
        %v3875 = vadd.f32 %v3629, %v3874
        %3876 = vmatmul.bf16.gmra.mxu0 %v3714
        %v3877 = vpop.f32.mrf.mxu0
        %v3878 = vadd.f32 %v3629, %v3877
        %v3879 = vpop.f32.mrf.mxu0
        %v3880 = vadd.f32 %v3629, %v3879
        %3881 = vmatmul.bf16.gmra.mxu0 %v3717
        %v3882 = vpop.f32.mrf.mxu0
        %v3883 = vadd.f32 %v3629, %v3882
        %v3884 = vpop.f32.mrf.mxu0
        %v3885 = vadd.f32 %v3629, %v3884
        %3886 = vmatmul.bf16.gmra.mxu0 %v3720
        %v3887 = vpop.f32.mrf.mxu0
        %v3888 = vadd.f32 %v3629, %v3887
        %v3889 = vpop.f32.mrf.mxu0
        %v3890 = vadd.f32 %v3629, %v3889
        %3891 = vmatmul.bf16.gmra.mxu0 %v3723
        %v3892 = vpop.f32.mrf.mxu0
        %v3893 = vadd.f32 %v3629, %v3892
        %v3894 = vpop.f32.mrf.mxu0
        %v3895 = vadd.f32 %v3629, %v3894
        %3896 = vmatmul.bf16.gmra.mxu0 %v3726
        %v3897 = vpop.f32.mrf.mxu0
        %v3898 = vadd.f32 %v3629, %v3897
        %v3899 = vpop.f32.mrf.mxu0
        %v3900 = vadd.f32 %v3629, %v3899
        %3901 = vmatmul.bf16.gmra.mxu0 %v3729
        %v3902 = vpop.f32.mrf.mxu0
        %v3903 = vpop.f32.mrf.mxu0
        %3904 = vmatmul.bf16.gmra.mxu0 %v3732
        %v3905 = vpop.f32.mrf.mxu0
        %v3906 = vpop.f32.mrf.mxu0
        %3907 = vmatmul.bf16.gmra.mxu0 %v3735
        %v3908 = vpop.f32.mrf.mxu0
        %v3909 = vpop.f32.mrf.mxu0
        %3910 = vmatmul.bf16.gmra.mxu0 %v3738
        %v3911 = vpop.f32.mrf.mxu0
        %v3912 = vpop.f32.mrf.mxu0
        %3913 = vmatmul.bf16.gmra.mxu0 %v3741
        %v3914 = vpop.f32.mrf.mxu0
        %v3915 = vpop.f32.mrf.mxu0
        %3916 = vmatmul.bf16.gmra.mxu0 %v3744
        %v3917 = vpop.f32.mrf.mxu0
        %v3918 = vpop.f32.mrf.mxu0
        %3919 = vmatmul.bf16.gmra.mxu0 %v3747
        %v3920 = vpop.f32.mrf.mxu0
        %v3921 = vpop.f32.mrf.mxu0
        %3922 = vmatmul.bf16.gmra.mxu0 %v3750
        %v3923 = vpop.f32.mrf.mxu0
        %v3924 = vpop.f32.mrf.mxu0
        %3925 = vmatmul.bf16.gmra.mxu0 %v3753
        %v3926 = vpop.f32.mrf.mxu0
        %v3927 = vpop.f32.mrf.mxu0
        %3928 = vdwg.mxu0
        %v3929 = vmax.f32 %v3768, 0.0
        %v3930 = vmax.f32 %v3770, 0.0
        %v3931 = vmax.f32 %v3773, 0.0
        %v3932 = vmax.f32 %v3775, 0.0
        %v3933 = vmax.f32 %v3778, 0.0
        %v3934 = vmax.f32 %v3780, 0.0
        %v3935 = vmax.f32 %v3783, 0.0
        %v3936 = vmax.f32 %v3785, 0.0
        %v3937 = vmax.f32 %v3788, 0.0
        %v3938 = vmax.f32 %v3790, 0.0
        %v3939 = vmax.f32 %v3793, 0.0
        %v3940 = vmax.f32 %v3795, 0.0
        %v3941 = vmax.f32 %v3798, 0.0
        %v3942 = vmax.f32 %v3800, 0.0
        %v3943 = vmax.f32 %v3803, 0.0
        %v3944 = vmax.f32 %v3805, 0.0
        %v3945 = vmax.f32 %v3808, 0.0
        %v3946 = vmax.f32 %v3810, 0.0
        %v3947 = vmax.f32 %v3813, 0.0
        %v3948 = vmax.f32 %v3815, 0.0
        %v3949 = vmax.f32 %v3818, 0.0
        %v3950 = vmax.f32 %v3820, 0.0
        %v3951 = vmax.f32 %v3823, 0.0
        %v3952 = vmax.f32 %v3825, 0.0
        %v3953 = vmax.f32 %v3828, 0.0
        %v3954 = vmax.f32 %v3830, 0.0
        %v3955 = vmax.f32 %v3833, 0.0
        %v3956 = vmax.f32 %v3835, 0.0
        %v3957 = vmax.f32 %v3838, 0.0
        %v3958 = vmax.f32 %v3840, 0.0
        %v3959 = vmax.f32 %v3843, 0.0
        %v3960 = vmax.f32 %v3845, 0.0
        %v3961 = vmax.f32 %v3848, 0.0
        %v3962 = vmax.f32 %v3850, 0.0
        %v3963 = vmax.f32 %v3853, 0.0
        %v3964 = vmax.f32 %v3855, 0.0
        %v3965 = vmax.f32 %v3858, 0.0
        %v3966 = vmax.f32 %v3860, 0.0
        %v3967 = vmax.f32 %v3863, 0.0
        %v3968 = vmax.f32 %v3865, 0.0
        %v3969 = vmax.f32 %v3868, 0.0
        %v3970 = vmax.f32 %v3870, 0.0
        %v3971 = vmax.f32 %v3873, 0.0
        %v3972 = vmax.f32 %v3875, 0.0
        %v3973 = vmax.f32 %v3878, 0.0
        %v3974 = vmax.f32 %v3880, 0.0
        %v3975 = vmax.f32 %v3883, 0.0
        %v3976 = vmax.f32 %v3885, 0.0
        %v3977 = vmax.f32 %v3888, 0.0
        %v3978 = vmax.f32 %v3890, 0.0
        %v3979 = vmax.f32 %v3893, 0.0
        %v3980 = vmax.f32 %v3895, 0.0
        %v3981 = vmax.f32 %v3898, 0.0
        %v3982 = vmax.f32 %v3900, 0.0
        %v3983 = vld [vmem:[%s1] sm:$0xff]
        %v3984 = vld [vmem:[%s1 + $0x8] sm:$0xff]
        %v3985 = vld [vmem:[%s1 + $0x10] sm:$0xff]
        %v3986 = vld [vmem:[%s1 + $0x18] sm:$0xff]
        %v3987 = vld [vmem:[%s1 + $0x20] sm:$0xff]
        %v3988 = vld [vmem:[%s1 + $0x28] sm:$0xff]
        %v3989 = vld [vmem:[%s1 + $0x30] sm:$0xff]
        %v3990 = vld [vmem:[%s1 + $0x38] sm:$0xff]
        %v3991 = vld [vmem:[%s1 + $0x40] sm:$0xff]
        %v3992 = vld [vmem:[%s1 + $0x48] sm:$0xff]
        %v3993 = vld [vmem:[%s1 + $0x50] sm:$0xff]
        %v3994 = vld [vmem:[%s1 + $0x58] sm:$0xff]
        %v3995 = vld [vmem:[%s1 + $0x60] sm:$0xff]
        %v3996 = vld [vmem:[%s1 + $0x68] sm:$0xff]
        %v3997 = vld [vmem:[%s1 + $0x70] sm:$0xff]
        %v3998 = vld [vmem:[%s1 + $0x78] sm:$0xff]
        %v3999 = vld [vmem:[%s1 + $0x80] sm:$0xff]
        %v4000 = vld [vmem:[%s1 + $0x88] sm:$0xff]
        %v4001 = vld [vmem:[%s1 + $0x90] sm:$0xff]
        %v4002 = vld [vmem:[%s1 + $0x98] sm:$0xff]
        %v4003 = vld [vmem:[%s1 + $0xa0] sm:$0xff]
        %v4004 = vld [vmem:[%s1 + $0xa8] sm:$0xff]
        %v4005 = vld [vmem:[%s1 + $0xb0] sm:$0xff]
        %v4006 = vld [vmem:[%s1 + $0xb8] sm:$0xff]
        %v4007 = vld [vmem:[%s1 + $0xc0] sm:$0xff]
        %v4008 = vld [vmem:[%s1 + $0xc8] sm:$0xff]
        %v4009 = vld [vmem:[%s1 + $0xd0] sm:$0xff]
        %v4010 = vld [vmem:[%s1 + $0xd8] sm:$0xff]
        %v4011 = vld [vmem:[%s1 + $0xe0] sm:$0xff]
        %v4012 = vld [vmem:[%s1 + $0xe8] sm:$0xff]
        %v4013 = vld [vmem:[%s1 + $0xf0] sm:$0xff]
        %v4014 = vld [vmem:[%s1 + $0xf8] sm:$0xff]
        %v4015 = vld [vmem:[%s1 + $0x100] sm:$0xff]
        %v4016 = vld [vmem:[%s1 + $0x108] sm:$0xff]
        %v4017 = vld [vmem:[%s1 + $0x110] sm:$0xff]
        %v4018 = vld [vmem:[%s1 + $0x118] sm:$0xff]
        %v4019 = vld [vmem:[%s1 + $0x120] sm:$0xff]
        %v4020 = vld [vmem:[%s1 + $0x128] sm:$0xff]
        %v4021 = vld [vmem:[%s1 + $0x130] sm:$0xff]
        %v4022 = vld [vmem:[%s1 + $0x138] sm:$0xff]
        %v4023 = vld [vmem:[%s1 + $0x140] sm:$0xff]
        %v4024 = vld [vmem:[%s1 + $0x148] sm:$0xff]
        %v4025 = vld [vmem:[%s1 + $0x150] sm:$0xff]
        %v4026 = vld [vmem:[%s1 + $0x158] sm:$0xff]
        %v4027 = vld [vmem:[%s1 + $0x160] sm:$0xff]
        %v4028 = vld [vmem:[%s1 + $0x168] sm:$0xff]
        %v4029 = vld [vmem:[%s1 + $0x170] sm:$0xff]
        %v4030 = vld [vmem:[%s1 + $0x178] sm:$0xff]
        %v4031 = vld [vmem:[%s1 + $0x180] sm:$0xff]
        %v4032 = vld [vmem:[%s1 + $0x188] sm:$0xff]
        %v4033 = vld [vmem:[%s1 + $0x190] sm:$0xff]
        %v4034 = vld [vmem:[%s1 + $0x198] sm:$0xff]
        %v4035 = vld [vmem:[%s1 + $0x1a0] sm:$0xff]
        %v4036 = vld [vmem:[%s1 + $0x1a8] sm:$0xff]
        %v4037 = vmul.f32 %v3929, %v3983
        %v4038 = vmul.f32 %v3930, %v3984
        %v4039 = vmul.f32 %v3931, %v3985
        %v4040 = vmul.f32 %v3932, %v3986
        %v4041 = vmul.f32 %v3933, %v3987
        %v4042 = vmul.f32 %v3934, %v3988
        %v4043 = vmul.f32 %v3935, %v3989
        %v4044 = vmul.f32 %v3936, %v3990
        %v4045 = vmul.f32 %v3937, %v3991
        %v4046 = vmul.f32 %v3938, %v3992
        %v4047 = vmul.f32 %v3939, %v3993
        %v4048 = vmul.f32 %v3940, %v3994
        %v4049 = vmul.f32 %v3941, %v3995
        %v4050 = vmul.f32 %v3942, %v3996
        %v4051 = vmul.f32 %v3943, %v3997
        %v4052 = vmul.f32 %v3944, %v3998
        %v4053 = vmul.f32 %v3945, %v3999
        %v4054 = vmul.f32 %v3946, %v4000
        %v4055 = vmul.f32 %v3947, %v4001
        %v4056 = vmul.f32 %v3948, %v4002
        %v4057 = vmul.f32 %v3949, %v4003
        %v4058 = vmul.f32 %v3950, %v4004
        %v4059 = vmul.f32 %v3951, %v4005
        %v4060 = vmul.f32 %v3952, %v4006
        %v4061 = vmul.f32 %v3953, %v4007
        %v4062 = vmul.f32 %v3954, %v4008
        %v4063 = vmul.f32 %v3955, %v4009
        %v4064 = vmul.f32 %v3956, %v4010
        %v4065 = vmul.f32 %v3957, %v4011
        %v4066 = vmul.f32 %v3958, %v4012
        %v4067 = vmul.f32 %v3959, %v4013
        %v4068 = vmul.f32 %v3960, %v4014
        %v4069 = vmul.f32 %v3961, %v4015
        %v4070 = vmul.f32 %v3962, %v4016
        %v4071 = vmul.f32 %v3963, %v4017
        %v4072 = vmul.f32 %v3964, %v4018
        %v4073 = vmul.f32 %v3965, %v4019
        %v4074 = vmul.f32 %v3966, %v4020
        %v4075 = vmul.f32 %v3967, %v4021
        %v4076 = vmul.f32 %v3968, %v4022
        %v4077 = vmul.f32 %v3969, %v4023
        %v4078 = vmul.f32 %v3970, %v4024
        %v4079 = vmul.f32 %v3971, %v4025
        %v4080 = vmul.f32 %v3972, %v4026
        %v4081 = vmul.f32 %v3973, %v4027
        %v4082 = vmul.f32 %v3974, %v4028
        %v4083 = vmul.f32 %v3975, %v4029
        %v4084 = vmul.f32 %v3976, %v4030
        %v4085 = vmul.f32 %v3977, %v4031
        %v4086 = vmul.f32 %v3978, %v4032
        %v4087 = vmul.f32 %v3979, %v4033
        %v4088 = vmul.f32 %v3980, %v4034
        %v4089 = vmul.f32 %v3981, %v4035
        %v4090 = vmul.f32 %v3982, %v4036
        %v4139 = vrot.slane %v4037, 1
        %v4140 = vrot.slane %v4038, 1
        %v4141 = vsel %vm902, %v4139, %v4140
        %v4142 = vrot.slane %v4039, 1
        %v4143 = vsel %vm902, %v4140, %v4142
        %v4144 = vrot.slane %v4040, 1
        %v4145 = vrot.slane %v4041, 1
        %v4146 = vsel %vm902, %v4144, %v4145
        %v4147 = vrot.slane %v4042, 1
        %v4148 = vsel %vm902, %v4145, %v4147
        %v4149 = vrot.slane %v4043, 1
        %v4150 = vrot.slane %v4044, 1
        %v4151 = vsel %vm902, %v4149, %v4150
        %v4152 = vrot.slane %v4045, 1
        %v4153 = vsel %vm902, %v4150, %v4152
        %v4154 = vrot.slane %v4046, 1
        %v4155 = vrot.slane %v4047, 1
        %v4156 = vsel %vm902, %v4154, %v4155
        %v4157 = vrot.slane %v4048, 1
        %v4158 = vsel %vm902, %v4155, %v4157
        %v4159 = vrot.slane %v4049, 1
        %v4160 = vrot.slane %v4050, 1
        %v4161 = vsel %vm902, %v4159, %v4160
        %v4162 = vrot.slane %v4051, 1
        %v4163 = vsel %vm902, %v4160, %v4162
        %v4164 = vrot.slane %v4052, 1
        %v4165 = vrot.slane %v4053, 1
        %v4166 = vsel %vm902, %v4164, %v4165
        %v4167 = vrot.slane %v4054, 1
        %v4168 = vsel %vm902, %v4165, %v4167
        %v4169 = vrot.slane %v4055, 1
        %v4170 = vrot.slane %v4056, 1
        %v4171 = vsel %vm902, %v4169, %v4170
        %v4172 = vrot.slane %v4057, 1
        %v4173 = vsel %vm902, %v4170, %v4172
        %v4174 = vrot.slane %v4058, 1
        %v4175 = vrot.slane %v4059, 1
        %v4176 = vsel %vm902, %v4174, %v4175
        %v4177 = vrot.slane %v4060, 1
        %v4178 = vsel %vm902, %v4175, %v4177
        %v4179 = vrot.slane %v4061, 1
        %v4180 = vrot.slane %v4062, 1
        %v4181 = vsel %vm902, %v4179, %v4180
        %v4182 = vrot.slane %v4063, 1
        %v4183 = vsel %vm902, %v4180, %v4182
        %v4184 = vrot.slane %v4064, 1
        %v4185 = vrot.slane %v4065, 1
        %v4186 = vsel %vm902, %v4184, %v4185
        %v4187 = vrot.slane %v4066, 1
        %v4188 = vsel %vm902, %v4185, %v4187
        %v4189 = vrot.slane %v4067, 1
        %v4190 = vrot.slane %v4068, 1
        %v4191 = vsel %vm902, %v4189, %v4190
        %v4192 = vrot.slane %v4069, 1
        %v4193 = vsel %vm902, %v4190, %v4192
        %v4194 = vrot.slane %v4070, 1
        %v4195 = vrot.slane %v4071, 1
        %v4196 = vsel %vm902, %v4194, %v4195
        %v4197 = vrot.slane %v4072, 1
        %v4198 = vsel %vm902, %v4195, %v4197
        %v4199 = vrot.slane %v4073, 1
        %v4200 = vrot.slane %v4074, 1
        %v4201 = vsel %vm902, %v4199, %v4200
        %v4202 = vrot.slane %v4075, 1
        %v4203 = vsel %vm902, %v4200, %v4202
        %v4204 = vrot.slane %v4076, 1
        %v4205 = vrot.slane %v4077, 1
        %v4206 = vsel %vm902, %v4204, %v4205
        %v4207 = vrot.slane %v4078, 1
        %v4208 = vsel %vm902, %v4205, %v4207
        %v4209 = vrot.slane %v4079, 1
        %v4210 = vrot.slane %v4080, 1
        %v4211 = vsel %vm902, %v4209, %v4210
        %v4212 = vrot.slane %v4081, 1
        %v4213 = vsel %vm902, %v4210, %v4212
        %v4214 = vrot.slane %v4082, 1
        %v4215 = vrot.slane %v4083, 1
        %v4216 = vsel %vm902, %v4214, %v4215
        %v4217 = vrot.slane %v4084, 1
        %v4218 = vsel %vm902, %v4215, %v4217
        %v4219 = vrot.slane %v4037, 2
        %v4220 = vrot.slane %v4038, 2
        %v4221 = vsel %vm430, %v4219, %v4220
        %v4222 = vrot.slane %v4039, 2
        %v4223 = vsel %vm430, %v4220, %v4222
        %v4224 = vrot.slane %v4040, 2
        %v4225 = vrot.slane %v4041, 2
        %v4226 = vsel %vm430, %v4224, %v4225
        %v4227 = vrot.slane %v4042, 2
        %v4228 = vsel %vm430, %v4225, %v4227
        %v4229 = vrot.slane %v4043, 2
        %v4230 = vrot.slane %v4044, 2
        %v4231 = vsel %vm430, %v4229, %v4230
        %v4232 = vrot.slane %v4045, 2
        %v4233 = vsel %vm430, %v4230, %v4232
        %v4234 = vrot.slane %v4046, 2
        %v4235 = vrot.slane %v4047, 2
        %v4236 = vsel %vm430, %v4234, %v4235
        %v4237 = vrot.slane %v4048, 2
        %v4238 = vsel %vm430, %v4235, %v4237
        %v4239 = vrot.slane %v4049, 2
        %v4240 = vrot.slane %v4050, 2
        %v4241 = vsel %vm430, %v4239, %v4240
        %v4242 = vrot.slane %v4051, 2
        %v4243 = vsel %vm430, %v4240, %v4242
        %v4244 = vrot.slane %v4052, 2
        %v4245 = vrot.slane %v4053, 2
        %v4246 = vsel %vm430, %v4244, %v4245
        %v4247 = vrot.slane %v4054, 2
        %v4248 = vsel %vm430, %v4245, %v4247
        %v4249 = vrot.slane %v4055, 2
        %v4250 = vrot.slane %v4056, 2
        %v4251 = vsel %vm430, %v4249, %v4250
        %v4252 = vrot.slane %v4057, 2
        %v4253 = vsel %vm430, %v4250, %v4252
        %v4254 = vrot.slane %v4058, 2
        %v4255 = vrot.slane %v4059, 2
        %v4256 = vsel %vm430, %v4254, %v4255
        %v4257 = vrot.slane %v4060, 2
        %v4258 = vsel %vm430, %v4255, %v4257
        %v4259 = vrot.slane %v4061, 2
        %v4260 = vrot.slane %v4062, 2
        %v4261 = vsel %vm430, %v4259, %v4260
        %v4262 = vrot.slane %v4063, 2
        %v4263 = vsel %vm430, %v4260, %v4262
        %v4264 = vrot.slane %v4064, 2
        %v4265 = vrot.slane %v4065, 2
        %v4266 = vsel %vm430, %v4264, %v4265
        %v4267 = vrot.slane %v4066, 2
        %v4268 = vsel %vm430, %v4265, %v4267
        %v4269 = vrot.slane %v4067, 2
        %v4270 = vrot.slane %v4068, 2
        %v4271 = vsel %vm430, %v4269, %v4270
        %v4272 = vrot.slane %v4069, 2
        %v4273 = vsel %vm430, %v4270, %v4272
        %v4274 = vrot.slane %v4070, 2
        %v4275 = vrot.slane %v4071, 2
        %v4276 = vsel %vm430, %v4274, %v4275
        %v4277 = vrot.slane %v4072, 2
        %v4278 = vsel %vm430, %v4275, %v4277
        %v4279 = vrot.slane %v4073, 2
        %v4280 = vrot.slane %v4074, 2
        %v4281 = vsel %vm430, %v4279, %v4280
        %v4282 = vrot.slane %v4075, 2
        %v4283 = vsel %vm430, %v4280, %v4282
        %v4284 = vrot.slane %v4076, 2
        %v4285 = vrot.slane %v4077, 2
        %v4286 = vsel %vm430, %v4284, %v4285
        %v4287 = vrot.slane %v4078, 2
        %v4288 = vsel %vm430, %v4285, %v4287
        %v4289 = vrot.slane %v4079, 2
        %v4290 = vrot.slane %v4080, 2
        %v4291 = vsel %vm430, %v4289, %v4290
        %v4292 = vrot.slane %v4081, 2
        %v4293 = vsel %vm430, %v4290, %v4292
        %v4294 = vrot.slane %v4082, 2
        %v4295 = vrot.slane %v4083, 2
        %v4296 = vsel %vm430, %v4294, %v4295
        %v4297 = vrot.slane %v4084, 2
        %v4298 = vsel %vm430, %v4295, %v4297
        %v4302 = vrot.slane %v4085, 1
        %v4303 = vrot.slane %v4086, 1
        %v4304 = vsel %vm902, %v4302, %v4303
        %v4305 = vrot.slane %v4087, 1
        %v4306 = vsel %vm902, %v4303, %v4305
        %v4307 = vrot.slane %v4085, 2
        %v4308 = vrot.slane %v4086, 2
        %v4309 = vsel %vm430, %v4307, %v4308
        %v4310 = vrot.slane %v4087, 2
        %v4311 = vsel %vm430, %v4308, %v4310
        %v4315 = vrot.slane %v4088, 1
        %v4316 = vrot.slane %v4089, 1
        %v4317 = vsel %vm902, %v4315, %v4316
        %v4318 = vrot.slane %v4090, 1
        %v4319 = vsel %vm902, %v4316, %v4318
        %v4320 = vrot.slane %v4088, 2
        %v4321 = vrot.slane %v4089, 2
        %v4322 = vsel %vm430, %v4320, %v4321
        %v4323 = vrot.slane %v4090, 2
        %v4324 = vsel %vm430, %v4321, %v4323
        %4325 = vrot.lane.b32.xlu0 %v4141, 8
        %v4326 = vpop.permute.xlu0 %4325
        %4327 = vrot.lane.b32.xlu0 %v4143, 8
        %v4328 = vpop.permute.xlu0 %4327
        %4329 = vrot.lane.b32.xlu0 %v4146, 8
        %v4330 = vpop.permute.xlu0 %4329
        %4331 = vrot.lane.b32.xlu0 %v4148, 8
        %v4332 = vpop.permute.xlu0 %4331
        %4333 = vrot.lane.b32.xlu0 %v4151, 8
        %v4334 = vpop.permute.xlu0 %4333
        %4335 = vrot.lane.b32.xlu0 %v4153, 8
        %v4336 = vpop.permute.xlu0 %4335
        %4337 = vrot.lane.b32.xlu0 %v4156, 8
        %v4338 = vpop.permute.xlu0 %4337
        %4339 = vrot.lane.b32.xlu0 %v4158, 8
        %v4340 = vpop.permute.xlu0 %4339
        %4341 = vrot.lane.b32.xlu0 %v4161, 8
        %v4342 = vpop.permute.xlu0 %4341
        %4343 = vrot.lane.b32.xlu0 %v4163, 8
        %v4344 = vpop.permute.xlu0 %4343
        %4345 = vrot.lane.b32.xlu0 %v4166, 8
        %v4346 = vpop.permute.xlu0 %4345
        %4347 = vrot.lane.b32.xlu0 %v4168, 8
        %v4348 = vpop.permute.xlu0 %4347
        %4349 = vrot.lane.b32.xlu0 %v4171, 8
        %v4350 = vpop.permute.xlu0 %4349
        %4351 = vrot.lane.b32.xlu0 %v4173, 8
        %v4352 = vpop.permute.xlu0 %4351
        %4353 = vrot.lane.b32.xlu0 %v4176, 8
        %v4354 = vpop.permute.xlu0 %4353
        %4355 = vrot.lane.b32.xlu0 %v4178, 8
        %v4356 = vpop.permute.xlu0 %4355
        %4357 = vrot.lane.b32.xlu0 %v4181, 8
        %v4358 = vpop.permute.xlu0 %4357
        %4359 = vrot.lane.b32.xlu0 %v4183, 8
        %v4360 = vpop.permute.xlu0 %4359
        %4361 = vrot.lane.b32.xlu0 %v4186, 8
        %v4362 = vpop.permute.xlu0 %4361
        %4363 = vrot.lane.b32.xlu0 %v4188, 8
        %v4364 = vpop.permute.xlu0 %4363
        %4365 = vrot.lane.b32.xlu0 %v4191, 8
        %v4366 = vpop.permute.xlu0 %4365
        %4367 = vrot.lane.b32.xlu0 %v4193, 8
        %v4368 = vpop.permute.xlu0 %4367
        %4369 = vrot.lane.b32.xlu0 %v4196, 8
        %v4370 = vpop.permute.xlu0 %4369
        %4371 = vrot.lane.b32.xlu0 %v4198, 8
        %v4372 = vpop.permute.xlu0 %4371
        %4373 = vrot.lane.b32.xlu0 %v4201, 8
        %v4374 = vpop.permute.xlu0 %4373
        %4375 = vrot.lane.b32.xlu0 %v4203, 8
        %v4376 = vpop.permute.xlu0 %4375
        %4377 = vrot.lane.b32.xlu0 %v4206, 8
        %v4378 = vpop.permute.xlu0 %4377
        %4379 = vrot.lane.b32.xlu0 %v4208, 8
        %v4380 = vpop.permute.xlu0 %4379
        %4381 = vrot.lane.b32.xlu0 %v4211, 8
        %v4382 = vpop.permute.xlu0 %4381
        %4383 = vrot.lane.b32.xlu0 %v4213, 8
        %v4384 = vpop.permute.xlu0 %4383
        %4385 = vrot.lane.b32.xlu0 %v4216, 8
        %v4386 = vpop.permute.xlu0 %4385
        %4387 = vrot.lane.b32.xlu0 %v4218, 8
        %v4388 = vpop.permute.xlu0 %4387
        %4421 = vrot.lane.b32.xlu0 %v4221, 16
        %v4422 = vpop.permute.xlu0 %4421
        %4423 = vrot.lane.b32.xlu0 %v4223, 16
        %v4424 = vpop.permute.xlu0 %4423
        %4425 = vrot.lane.b32.xlu0 %v4226, 16
        %v4426 = vpop.permute.xlu0 %4425
        %4427 = vrot.lane.b32.xlu0 %v4228, 16
        %v4428 = vpop.permute.xlu0 %4427
        %4429 = vrot.lane.b32.xlu0 %v4231, 16
        %v4430 = vpop.permute.xlu0 %4429
        %4431 = vrot.lane.b32.xlu0 %v4233, 16
        %v4432 = vpop.permute.xlu0 %4431
        %4433 = vrot.lane.b32.xlu0 %v4236, 16
        %v4434 = vpop.permute.xlu0 %4433
        %4435 = vrot.lane.b32.xlu0 %v4238, 16
        %v4436 = vpop.permute.xlu0 %4435
        %4437 = vrot.lane.b32.xlu0 %v4241, 16
        %v4438 = vpop.permute.xlu0 %4437
        %4439 = vrot.lane.b32.xlu0 %v4243, 16
        %v4440 = vpop.permute.xlu0 %4439
        %4441 = vrot.lane.b32.xlu0 %v4246, 16
        %v4442 = vpop.permute.xlu0 %4441
        %4443 = vrot.lane.b32.xlu0 %v4248, 16
        %v4444 = vpop.permute.xlu0 %4443
        %4445 = vrot.lane.b32.xlu0 %v4251, 16
        %v4446 = vpop.permute.xlu0 %4445
        %4447 = vrot.lane.b32.xlu0 %v4253, 16
        %v4448 = vpop.permute.xlu0 %4447
        %4449 = vrot.lane.b32.xlu0 %v4256, 16
        %v4450 = vpop.permute.xlu0 %4449
        %4451 = vrot.lane.b32.xlu0 %v4258, 16
        %v4452 = vpop.permute.xlu0 %4451
        %4453 = vrot.lane.b32.xlu0 %v4261, 16
        %v4454 = vpop.permute.xlu0 %4453
        %4455 = vrot.lane.b32.xlu0 %v4263, 16
        %v4456 = vpop.permute.xlu0 %4455
        %4457 = vrot.lane.b32.xlu0 %v4266, 16
        %v4458 = vpop.permute.xlu0 %4457
        %4459 = vrot.lane.b32.xlu0 %v4268, 16
        %v4460 = vpop.permute.xlu0 %4459
        %4461 = vrot.lane.b32.xlu0 %v4271, 16
        %v4462 = vpop.permute.xlu0 %4461
        %4463 = vrot.lane.b32.xlu0 %v4273, 16
        %v4464 = vpop.permute.xlu0 %4463
        %4465 = vrot.lane.b32.xlu0 %v4276, 16
        %v4466 = vpop.permute.xlu0 %4465
        %4467 = vrot.lane.b32.xlu0 %v4278, 16
        %v4468 = vpop.permute.xlu0 %4467
        %4469 = vrot.lane.b32.xlu0 %v4281, 16
        %v4470 = vpop.permute.xlu0 %4469
        %4471 = vrot.lane.b32.xlu0 %v4283, 16
        %v4472 = vpop.permute.xlu0 %4471
        %4473 = vrot.lane.b32.xlu0 %v4286, 16
        %v4474 = vpop.permute.xlu0 %4473
        %4475 = vrot.lane.b32.xlu0 %v4288, 16
        %v4476 = vpop.permute.xlu0 %4475
        %4477 = vrot.lane.b32.xlu0 %v4291, 16
        %v4478 = vpop.permute.xlu0 %4477
        %4479 = vrot.lane.b32.xlu0 %v4293, 16
        %v4480 = vpop.permute.xlu0 %4479
        %4481 = vrot.lane.b32.xlu0 %v4296, 16
        %v4482 = vpop.permute.xlu0 %4481
        %4483 = vrot.lane.b32.xlu0 %v4298, 16
        %v4484 = vpop.permute.xlu0 %4483
        %4517 = vrot.lane.b32.xlu0 %v4040, 24
        %v4518 = vpop.permute.xlu0 %4517
        %4519 = vrot.lane.b32.xlu0 %v4041, 24
        %v4520 = vpop.permute.xlu0 %4519
        %4521 = vrot.lane.b32.xlu0 %v4043, 24
        %v4522 = vpop.permute.xlu0 %4521
        %4523 = vrot.lane.b32.xlu0 %v4044, 24
        %v4524 = vpop.permute.xlu0 %4523
        %4525 = vrot.lane.b32.xlu0 %v4046, 24
        %v4526 = vpop.permute.xlu0 %4525
        %4527 = vrot.lane.b32.xlu0 %v4047, 24
        %v4528 = vpop.permute.xlu0 %4527
        %4529 = vrot.lane.b32.xlu0 %v4049, 24
        %v4530 = vpop.permute.xlu0 %4529
        %4531 = vrot.lane.b32.xlu0 %v4050, 24
        %v4532 = vpop.permute.xlu0 %4531
        %4533 = vrot.lane.b32.xlu0 %v4052, 24
        %v4534 = vpop.permute.xlu0 %4533
        %4535 = vrot.lane.b32.xlu0 %v4053, 24
        %v4536 = vpop.permute.xlu0 %4535
        %4537 = vrot.lane.b32.xlu0 %v4055, 24
        %v4538 = vpop.permute.xlu0 %4537
        %4539 = vrot.lane.b32.xlu0 %v4056, 24
        %v4540 = vpop.permute.xlu0 %4539
        %4541 = vrot.lane.b32.xlu0 %v4058, 24
        %v4542 = vpop.permute.xlu0 %4541
        %4543 = vrot.lane.b32.xlu0 %v4059, 24
        %v4544 = vpop.permute.xlu0 %4543
        %4545 = vrot.lane.b32.xlu0 %v4061, 24
        %v4546 = vpop.permute.xlu0 %4545
        %4547 = vrot.lane.b32.xlu0 %v4062, 24
        %v4548 = vpop.permute.xlu0 %4547
        %4549 = vrot.lane.b32.xlu0 %v4064, 24
        %v4550 = vpop.permute.xlu0 %4549
        %4551 = vrot.lane.b32.xlu0 %v4065, 24
        %v4552 = vpop.permute.xlu0 %4551
        %4553 = vrot.lane.b32.xlu0 %v4067, 24
        %v4554 = vpop.permute.xlu0 %4553
        %4555 = vrot.lane.b32.xlu0 %v4068, 24
        %v4556 = vpop.permute.xlu0 %4555
        %4557 = vrot.lane.b32.xlu0 %v4070, 24
        %v4558 = vpop.permute.xlu0 %4557
        %4559 = vrot.lane.b32.xlu0 %v4071, 24
        %v4560 = vpop.permute.xlu0 %4559
        %4561 = vrot.lane.b32.xlu0 %v4073, 24
        %v4562 = vpop.permute.xlu0 %4561
        %4563 = vrot.lane.b32.xlu0 %v4074, 24
        %v4564 = vpop.permute.xlu0 %4563
        %4565 = vrot.lane.b32.xlu0 %v4076, 24
        %v4566 = vpop.permute.xlu0 %4565
        %4567 = vrot.lane.b32.xlu0 %v4077, 24
        %v4568 = vpop.permute.xlu0 %4567
        %4569 = vrot.lane.b32.xlu0 %v4079, 24
        %v4570 = vpop.permute.xlu0 %4569
        %4571 = vrot.lane.b32.xlu0 %v4080, 24
        %v4572 = vpop.permute.xlu0 %4571
        %4573 = vrot.lane.b32.xlu0 %v4082, 24
        %v4574 = vpop.permute.xlu0 %4573
        %4575 = vrot.lane.b32.xlu0 %v4083, 24
        %v4576 = vpop.permute.xlu0 %4575
        %4577 = vrot.lane.b32.xlu0 %v4085, 24
        %v4578 = vpop.permute.xlu0 %4577
        %4579 = vrot.lane.b32.xlu0 %v4086, 24
        %v4580 = vpop.permute.xlu0 %4579
        %4613 = vrot.lane.b32.xlu0 %v4146, 32
        %v4614 = vpop.permute.xlu0 %4613
        %4615 = vrot.lane.b32.xlu0 %v4148, 32
        %v4616 = vpop.permute.xlu0 %4615
        %4617 = vrot.lane.b32.xlu0 %v4151, 32
        %v4618 = vpop.permute.xlu0 %4617
        %4619 = vrot.lane.b32.xlu0 %v4153, 32
        %v4620 = vpop.permute.xlu0 %4619
        %4621 = vrot.lane.b32.xlu0 %v4156, 32
        %v4622 = vpop.permute.xlu0 %4621
        %4623 = vrot.lane.b32.xlu0 %v4158, 32
        %v4624 = vpop.permute.xlu0 %4623
        %4625 = vrot.lane.b32.xlu0 %v4161, 32
        %v4626 = vpop.permute.xlu0 %4625
        %4627 = vrot.lane.b32.xlu0 %v4163, 32
        %v4628 = vpop.permute.xlu0 %4627
        %4629 = vrot.lane.b32.xlu0 %v4166, 32
        %v4630 = vpop.permute.xlu0 %4629
        %4631 = vrot.lane.b32.xlu0 %v4168, 32
        %v4632 = vpop.permute.xlu0 %4631
        %4633 = vrot.lane.b32.xlu0 %v4171, 32
        %v4634 = vpop.permute.xlu0 %4633
        %4635 = vrot.lane.b32.xlu0 %v4173, 32
        %v4636 = vpop.permute.xlu0 %4635
        %4637 = vrot.lane.b32.xlu0 %v4176, 32
        %v4638 = vpop.permute.xlu0 %4637
        %4639 = vrot.lane.b32.xlu0 %v4178, 32
        %v4640 = vpop.permute.xlu0 %4639
        %4641 = vrot.lane.b32.xlu0 %v4181, 32
        %v4642 = vpop.permute.xlu0 %4641
        %4643 = vrot.lane.b32.xlu0 %v4183, 32
        %v4644 = vpop.permute.xlu0 %4643
        %4645 = vrot.lane.b32.xlu0 %v4186, 32
        %v4646 = vpop.permute.xlu0 %4645
        %4647 = vrot.lane.b32.xlu0 %v4188, 32
        %v4648 = vpop.permute.xlu0 %4647
        %4649 = vrot.lane.b32.xlu0 %v4191, 32
        %v4650 = vpop.permute.xlu0 %4649
        %4651 = vrot.lane.b32.xlu0 %v4193, 32
        %v4652 = vpop.permute.xlu0 %4651
        %4653 = vrot.lane.b32.xlu0 %v4196, 32
        %v4654 = vpop.permute.xlu0 %4653
        %4655 = vrot.lane.b32.xlu0 %v4198, 32
        %v4656 = vpop.permute.xlu0 %4655
        %4657 = vrot.lane.b32.xlu0 %v4201, 32
        %v4658 = vpop.permute.xlu0 %4657
        %4659 = vrot.lane.b32.xlu0 %v4203, 32
        %v4660 = vpop.permute.xlu0 %4659
        %4661 = vrot.lane.b32.xlu0 %v4206, 32
        %v4662 = vpop.permute.xlu0 %4661
        %4663 = vrot.lane.b32.xlu0 %v4208, 32
        %v4664 = vpop.permute.xlu0 %4663
        %4665 = vrot.lane.b32.xlu0 %v4211, 32
        %v4666 = vpop.permute.xlu0 %4665
        %4667 = vrot.lane.b32.xlu0 %v4213, 32
        %v4668 = vpop.permute.xlu0 %4667
        %4669 = vrot.lane.b32.xlu0 %v4216, 32
        %v4670 = vpop.permute.xlu0 %4669
        %4671 = vrot.lane.b32.xlu0 %v4218, 32
        %v4672 = vpop.permute.xlu0 %4671
        %4673 = vrot.lane.b32.xlu0 %v4304, 32
        %v4674 = vpop.permute.xlu0 %4673
        %4675 = vrot.lane.b32.xlu0 %v4306, 32
        %v4676 = vpop.permute.xlu0 %4675
        %4709 = vrot.lane.b32.xlu0 %v4226, 40
        %v4710 = vpop.permute.xlu0 %4709
        %4711 = vrot.lane.b32.xlu0 %v4228, 40
        %v4712 = vpop.permute.xlu0 %4711
        %4713 = vrot.lane.b32.xlu0 %v4231, 40
        %v4714 = vpop.permute.xlu0 %4713
        %4715 = vrot.lane.b32.xlu0 %v4233, 40
        %v4716 = vpop.permute.xlu0 %4715
        %4717 = vrot.lane.b32.xlu0 %v4236, 40
        %v4718 = vpop.permute.xlu0 %4717
        %4719 = vrot.lane.b32.xlu0 %v4238, 40
        %v4720 = vpop.permute.xlu0 %4719
        %4721 = vrot.lane.b32.xlu0 %v4241, 40
        %v4722 = vpop.permute.xlu0 %4721
        %4723 = vrot.lane.b32.xlu0 %v4243, 40
        %v4724 = vpop.permute.xlu0 %4723
        %4725 = vrot.lane.b32.xlu0 %v4246, 40
        %v4726 = vpop.permute.xlu0 %4725
        %4727 = vrot.lane.b32.xlu0 %v4248, 40
        %v4728 = vpop.permute.xlu0 %4727
        %4729 = vrot.lane.b32.xlu0 %v4251, 40
        %v4730 = vpop.permute.xlu0 %4729
        %4731 = vrot.lane.b32.xlu0 %v4253, 40
        %v4732 = vpop.permute.xlu0 %4731
        %4733 = vrot.lane.b32.xlu0 %v4256, 40
        %v4734 = vpop.permute.xlu0 %4733
        %4735 = vrot.lane.b32.xlu0 %v4258, 40
        %v4736 = vpop.permute.xlu0 %4735
        %4737 = vrot.lane.b32.xlu0 %v4261, 40
        %v4738 = vpop.permute.xlu0 %4737
        %4739 = vrot.lane.b32.xlu0 %v4263, 40
        %v4740 = vpop.permute.xlu0 %4739
        %4741 = vrot.lane.b32.xlu0 %v4266, 40
        %v4742 = vpop.permute.xlu0 %4741
        %4743 = vrot.lane.b32.xlu0 %v4268, 40
        %v4744 = vpop.permute.xlu0 %4743
        %4745 = vrot.lane.b32.xlu0 %v4271, 40
        %v4746 = vpop.permute.xlu0 %4745
        %4747 = vrot.lane.b32.xlu0 %v4273, 40
        %v4748 = vpop.permute.xlu0 %4747
        %4749 = vrot.lane.b32.xlu0 %v4276, 40
        %v4750 = vpop.permute.xlu0 %4749
        %4751 = vrot.lane.b32.xlu0 %v4278, 40
        %v4752 = vpop.permute.xlu0 %4751
        %4753 = vrot.lane.b32.xlu0 %v4281, 40
        %v4754 = vpop.permute.xlu0 %4753
        %4755 = vrot.lane.b32.xlu0 %v4283, 40
        %v4756 = vpop.permute.xlu0 %4755
        %4757 = vrot.lane.b32.xlu0 %v4286, 40
        %v4758 = vpop.permute.xlu0 %4757
        %4759 = vrot.lane.b32.xlu0 %v4288, 40
        %v4760 = vpop.permute.xlu0 %4759
        %4761 = vrot.lane.b32.xlu0 %v4291, 40
        %v4762 = vpop.permute.xlu0 %4761
        %4763 = vrot.lane.b32.xlu0 %v4293, 40
        %v4764 = vpop.permute.xlu0 %4763
        %4765 = vrot.lane.b32.xlu0 %v4296, 40
        %v4766 = vpop.permute.xlu0 %4765
        %4767 = vrot.lane.b32.xlu0 %v4298, 40
        %v4768 = vpop.permute.xlu0 %4767
        %4769 = vrot.lane.b32.xlu0 %v4309, 40
        %v4770 = vpop.permute.xlu0 %4769
        %4771 = vrot.lane.b32.xlu0 %v4311, 40
        %v4772 = vpop.permute.xlu0 %4771
        %4805 = vrot.lane.b32.xlu0 %v4043, 48
        %v4806 = vpop.permute.xlu0 %4805
        %4807 = vrot.lane.b32.xlu0 %v4044, 48
        %v4808 = vpop.permute.xlu0 %4807
        %4809 = vrot.lane.b32.xlu0 %v4046, 48
        %v4810 = vpop.permute.xlu0 %4809
        %4811 = vrot.lane.b32.xlu0 %v4047, 48
        %v4812 = vpop.permute.xlu0 %4811
        %4813 = vrot.lane.b32.xlu0 %v4049, 48
        %v4814 = vpop.permute.xlu0 %4813
        %4815 = vrot.lane.b32.xlu0 %v4050, 48
        %v4816 = vpop.permute.xlu0 %4815
        %4817 = vrot.lane.b32.xlu0 %v4052, 48
        %v4818 = vpop.permute.xlu0 %4817
        %4819 = vrot.lane.b32.xlu0 %v4053, 48
        %v4820 = vpop.permute.xlu0 %4819
        %4821 = vrot.lane.b32.xlu0 %v4055, 48
        %v4822 = vpop.permute.xlu0 %4821
        %4823 = vrot.lane.b32.xlu0 %v4056, 48
        %v4824 = vpop.permute.xlu0 %4823
        %4825 = vrot.lane.b32.xlu0 %v4058, 48
        %v4826 = vpop.permute.xlu0 %4825
        %4827 = vrot.lane.b32.xlu0 %v4059, 48
        %v4828 = vpop.permute.xlu0 %4827
        %4829 = vrot.lane.b32.xlu0 %v4061, 48
        %v4830 = vpop.permute.xlu0 %4829
        %4831 = vrot.lane.b32.xlu0 %v4062, 48
        %v4832 = vpop.permute.xlu0 %4831
        %4833 = vrot.lane.b32.xlu0 %v4064, 48
        %v4834 = vpop.permute.xlu0 %4833
        %4835 = vrot.lane.b32.xlu0 %v4065, 48
        %v4836 = vpop.permute.xlu0 %4835
        %4837 = vrot.lane.b32.xlu0 %v4067, 48
        %v4838 = vpop.permute.xlu0 %4837
        %4839 = vrot.lane.b32.xlu0 %v4068, 48
        %v4840 = vpop.permute.xlu0 %4839
        %4841 = vrot.lane.b32.xlu0 %v4070, 48
        %v4842 = vpop.permute.xlu0 %4841
        %4843 = vrot.lane.b32.xlu0 %v4071, 48
        %v4844 = vpop.permute.xlu0 %4843
        %4845 = vrot.lane.b32.xlu0 %v4073, 48
        %v4846 = vpop.permute.xlu0 %4845
        %4847 = vrot.lane.b32.xlu0 %v4074, 48
        %v4848 = vpop.permute.xlu0 %4847
        %4849 = vrot.lane.b32.xlu0 %v4076, 48
        %v4850 = vpop.permute.xlu0 %4849
        %4851 = vrot.lane.b32.xlu0 %v4077, 48
        %v4852 = vpop.permute.xlu0 %4851
        %4853 = vrot.lane.b32.xlu0 %v4079, 48
        %v4854 = vpop.permute.xlu0 %4853
        %4855 = vrot.lane.b32.xlu0 %v4080, 48
        %v4856 = vpop.permute.xlu0 %4855
        %4857 = vrot.lane.b32.xlu0 %v4082, 48
        %v4858 = vpop.permute.xlu0 %4857
        %4859 = vrot.lane.b32.xlu0 %v4083, 48
        %v4860 = vpop.permute.xlu0 %4859
        %4861 = vrot.lane.b32.xlu0 %v4085, 48
        %v4862 = vpop.permute.xlu0 %4861
        %4863 = vrot.lane.b32.xlu0 %v4086, 48
        %v4864 = vpop.permute.xlu0 %4863
        %4865 = vrot.lane.b32.xlu0 %v4088, 48
        %v4866 = vpop.permute.xlu0 %4865
        %4867 = vrot.lane.b32.xlu0 %v4089, 48
        %v4868 = vpop.permute.xlu0 %4867
        %4901 = vrot.lane.b32.xlu0 %v4151, 56
        %v4902 = vpop.permute.xlu0 %4901
        %4903 = vrot.lane.b32.xlu0 %v4153, 56
        %v4904 = vpop.permute.xlu0 %4903
        %4905 = vrot.lane.b32.xlu0 %v4156, 56
        %v4906 = vpop.permute.xlu0 %4905
        %4907 = vrot.lane.b32.xlu0 %v4158, 56
        %v4908 = vpop.permute.xlu0 %4907
        %4909 = vrot.lane.b32.xlu0 %v4161, 56
        %v4910 = vpop.permute.xlu0 %4909
        %4911 = vrot.lane.b32.xlu0 %v4163, 56
        %v4912 = vpop.permute.xlu0 %4911
        %4913 = vrot.lane.b32.xlu0 %v4166, 56
        %v4914 = vpop.permute.xlu0 %4913
        %4915 = vrot.lane.b32.xlu0 %v4168, 56
        %v4916 = vpop.permute.xlu0 %4915
        %4917 = vrot.lane.b32.xlu0 %v4171, 56
        %v4918 = vpop.permute.xlu0 %4917
        %4919 = vrot.lane.b32.xlu0 %v4173, 56
        %v4920 = vpop.permute.xlu0 %4919
        %4921 = vrot.lane.b32.xlu0 %v4176, 56
        %v4922 = vpop.permute.xlu0 %4921
        %4923 = vrot.lane.b32.xlu0 %v4178, 56
        %v4924 = vpop.permute.xlu0 %4923
        %4925 = vrot.lane.b32.xlu0 %v4181, 56
        %v4926 = vpop.permute.xlu0 %4925
        %4927 = vrot.lane.b32.xlu0 %v4183, 56
        %v4928 = vpop.permute.xlu0 %4927
        %4929 = vrot.lane.b32.xlu0 %v4186, 56
        %v4930 = vpop.permute.xlu0 %4929
        %4931 = vrot.lane.b32.xlu0 %v4188, 56
        %v4932 = vpop.permute.xlu0 %4931
        %4933 = vrot.lane.b32.xlu0 %v4191, 56
        %v4934 = vpop.permute.xlu0 %4933
        %4935 = vrot.lane.b32.xlu0 %v4193, 56
        %v4936 = vpop.permute.xlu0 %4935
        %4937 = vrot.lane.b32.xlu0 %v4196, 56
        %v4938 = vpop.permute.xlu0 %4937
        %4939 = vrot.lane.b32.xlu0 %v4198, 56
        %v4940 = vpop.permute.xlu0 %4939
        %4941 = vrot.lane.b32.xlu0 %v4201, 56
        %v4942 = vpop.permute.xlu0 %4941
        %4943 = vrot.lane.b32.xlu0 %v4203, 56
        %v4944 = vpop.permute.xlu0 %4943
        %4945 = vrot.lane.b32.xlu0 %v4206, 56
        %v4946 = vpop.permute.xlu0 %4945
        %4947 = vrot.lane.b32.xlu0 %v4208, 56
        %v4948 = vpop.permute.xlu0 %4947
        %4949 = vrot.lane.b32.xlu0 %v4211, 56
        %v4950 = vpop.permute.xlu0 %4949
        %4951 = vrot.lane.b32.xlu0 %v4213, 56
        %v4952 = vpop.permute.xlu0 %4951
        %4953 = vrot.lane.b32.xlu0 %v4216, 56
        %v4954 = vpop.permute.xlu0 %4953
        %4955 = vrot.lane.b32.xlu0 %v4218, 56
        %v4956 = vpop.permute.xlu0 %4955
        %4957 = vrot.lane.b32.xlu0 %v4304, 56
        %v4958 = vpop.permute.xlu0 %4957
        %4959 = vrot.lane.b32.xlu0 %v4306, 56
        %v4960 = vpop.permute.xlu0 %4959
        %4961 = vrot.lane.b32.xlu0 %v4317, 56
        %v4962 = vpop.permute.xlu0 %4961
        %4963 = vrot.lane.b32.xlu0 %v4319, 56
        %v4964 = vpop.permute.xlu0 %4963
        %4997 = vrot.lane.b32.xlu0 %v4231, 64
        %v4998 = vpop.permute.xlu0 %4997
        %4999 = vrot.lane.b32.xlu0 %v4233, 64
        %v5000 = vpop.permute.xlu0 %4999
        %5001 = vrot.lane.b32.xlu0 %v4236, 64
        %v5002 = vpop.permute.xlu0 %5001
        %5003 = vrot.lane.b32.xlu0 %v4238, 64
        %v5004 = vpop.permute.xlu0 %5003
        %5005 = vrot.lane.b32.xlu0 %v4241, 64
        %v5006 = vpop.permute.xlu0 %5005
        %5007 = vrot.lane.b32.xlu0 %v4243, 64
        %v5008 = vpop.permute.xlu0 %5007
        %5009 = vrot.lane.b32.xlu0 %v4246, 64
        %v5010 = vpop.permute.xlu0 %5009
        %5011 = vrot.lane.b32.xlu0 %v4248, 64
        %v5012 = vpop.permute.xlu0 %5011
        %5013 = vrot.lane.b32.xlu0 %v4251, 64
        %v5014 = vpop.permute.xlu0 %5013
        %5015 = vrot.lane.b32.xlu0 %v4253, 64
        %v5016 = vpop.permute.xlu0 %5015
        %5017 = vrot.lane.b32.xlu0 %v4256, 64
        %v5018 = vpop.permute.xlu0 %5017
        %5019 = vrot.lane.b32.xlu0 %v4258, 64
        %v5020 = vpop.permute.xlu0 %5019
        %5021 = vrot.lane.b32.xlu0 %v4261, 64
        %v5022 = vpop.permute.xlu0 %5021
        %5023 = vrot.lane.b32.xlu0 %v4263, 64
        %v5024 = vpop.permute.xlu0 %5023
        %5025 = vrot.lane.b32.xlu0 %v4266, 64
        %v5026 = vpop.permute.xlu0 %5025
        %5027 = vrot.lane.b32.xlu0 %v4268, 64
        %v5028 = vpop.permute.xlu0 %5027
        %5029 = vrot.lane.b32.xlu0 %v4271, 64
        %v5030 = vpop.permute.xlu0 %5029
        %5031 = vrot.lane.b32.xlu0 %v4273, 64
        %v5032 = vpop.permute.xlu0 %5031
        %5033 = vrot.lane.b32.xlu0 %v4276, 64
        %v5034 = vpop.permute.xlu0 %5033
        %5035 = vrot.lane.b32.xlu0 %v4278, 64
        %v5036 = vpop.permute.xlu0 %5035
        %5037 = vrot.lane.b32.xlu0 %v4281, 64
        %v5038 = vpop.permute.xlu0 %5037
        %5039 = vrot.lane.b32.xlu0 %v4283, 64
        %v5040 = vpop.permute.xlu0 %5039
        %5041 = vrot.lane.b32.xlu0 %v4286, 64
        %v5042 = vpop.permute.xlu0 %5041
        %5043 = vrot.lane.b32.xlu0 %v4288, 64
        %v5044 = vpop.permute.xlu0 %5043
        %5045 = vrot.lane.b32.xlu0 %v4291, 64
        %v5046 = vpop.permute.xlu0 %5045
        %5047 = vrot.lane.b32.xlu0 %v4293, 64
        %v5048 = vpop.permute.xlu0 %5047
        %5049 = vrot.lane.b32.xlu0 %v4296, 64
        %v5050 = vpop.permute.xlu0 %5049
        %5051 = vrot.lane.b32.xlu0 %v4298, 64
        %v5052 = vpop.permute.xlu0 %5051
        %5053 = vrot.lane.b32.xlu0 %v4309, 64
        %v5054 = vpop.permute.xlu0 %5053
        %5055 = vrot.lane.b32.xlu0 %v4311, 64
        %v5056 = vpop.permute.xlu0 %5055
        %5057 = vrot.lane.b32.xlu0 %v4322, 64
        %v5058 = vpop.permute.xlu0 %5057
        %5059 = vrot.lane.b32.xlu0 %v4324, 64
        %v5060 = vpop.permute.xlu0 %5059
        %v5093 = vsel %vm3075, %v4037, %v4326
        %v5094 = vsel %vm3075, %v4038, %v4328
        %v5095 = vsel %vm3075, %v4040, %v4330
        %v5096 = vsel %vm3075, %v4041, %v4332
        %v5097 = vsel %vm3075, %v4043, %v4334
        %v5098 = vsel %vm3075, %v4044, %v4336
        %v5099 = vsel %vm3075, %v4046, %v4338
        %v5100 = vsel %vm3075, %v4047, %v4340
        %v5101 = vsel %vm3075, %v4049, %v4342
        %v5102 = vsel %vm3075, %v4050, %v4344
        %v5103 = vsel %vm3075, %v4052, %v4346
        %v5104 = vsel %vm3075, %v4053, %v4348
        %v5105 = vsel %vm3075, %v4055, %v4350
        %v5106 = vsel %vm3075, %v4056, %v4352
        %v5107 = vsel %vm3075, %v4058, %v4354
        %v5108 = vsel %vm3075, %v4059, %v4356
        %v5109 = vsel %vm3075, %v4061, %v4358
        %v5110 = vsel %vm3075, %v4062, %v4360
        %v5111 = vsel %vm3075, %v4064, %v4362
        %v5112 = vsel %vm3075, %v4065, %v4364
        %v5113 = vsel %vm3075, %v4067, %v4366
        %v5114 = vsel %vm3075, %v4068, %v4368
        %v5115 = vsel %vm3075, %v4070, %v4370
        %v5116 = vsel %vm3075, %v4071, %v4372
        %v5117 = vsel %vm3075, %v4073, %v4374
        %v5118 = vsel %vm3075, %v4074, %v4376
        %v5119 = vsel %vm3075, %v4076, %v4378
        %v5120 = vsel %vm3075, %v4077, %v4380
        %v5121 = vsel %vm3075, %v4079, %v4382
        %v5122 = vsel %vm3075, %v4080, %v4384
        %v5123 = vsel %vm3075, %v4082, %v4386
        %v5124 = vsel %vm3075, %v4083, %v4388
        %v5125 = vsel %vm3221, %v5093, %v4422
        %v5126 = vsel %vm3221, %v5094, %v4424
        %v5127 = vsel %vm3221, %v5095, %v4426
        %v5128 = vsel %vm3221, %v5096, %v4428
        %v5129 = vsel %vm3221, %v5097, %v4430
        %v5130 = vsel %vm3221, %v5098, %v4432
        %v5131 = vsel %vm3221, %v5099, %v4434
        %v5132 = vsel %vm3221, %v5100, %v4436
        %v5133 = vsel %vm3221, %v5101, %v4438
        %v5134 = vsel %vm3221, %v5102, %v4440
        %v5135 = vsel %vm3221, %v5103, %v4442
        %v5136 = vsel %vm3221, %v5104, %v4444
        %v5137 = vsel %vm3221, %v5105, %v4446
        %v5138 = vsel %vm3221, %v5106, %v4448
        %v5139 = vsel %vm3221, %v5107, %v4450
        %v5140 = vsel %vm3221, %v5108, %v4452
        %v5141 = vsel %vm3221, %v5109, %v4454
        %v5142 = vsel %vm3221, %v5110, %v4456
        %v5143 = vsel %vm3221, %v5111, %v4458
        %v5144 = vsel %vm3221, %v5112, %v4460
        %v5145 = vsel %vm3221, %v5113, %v4462
        %v5146 = vsel %vm3221, %v5114, %v4464
        %v5147 = vsel %vm3221, %v5115, %v4466
        %v5148 = vsel %vm3221, %v5116, %v4468
        %v5149 = vsel %vm3221, %v5117, %v4470
        %v5150 = vsel %vm3221, %v5118, %v4472
        %v5151 = vsel %vm3221, %v5119, %v4474
        %v5152 = vsel %vm3221, %v5120, %v4476
        %v5153 = vsel %vm3221, %v5121, %v4478
        %v5154 = vsel %vm3221, %v5122, %v4480
        %v5155 = vsel %vm3221, %v5123, %v4482
        %v5156 = vsel %vm3221, %v5124, %v4484
        %v5157 = vsel %vm3367, %v5125, %v4518
        %v5158 = vsel %vm3367, %v5126, %v4520
        %v5159 = vsel %vm3367, %v5127, %v4522
        %v5160 = vsel %vm3367, %v5128, %v4524
        %v5161 = vsel %vm3367, %v5129, %v4526
        %v5162 = vsel %vm3367, %v5130, %v4528
        %v5163 = vsel %vm3367, %v5131, %v4530
        %v5164 = vsel %vm3367, %v5132, %v4532
        %v5165 = vsel %vm3367, %v5133, %v4534
        %v5166 = vsel %vm3367, %v5134, %v4536
        %v5167 = vsel %vm3367, %v5135, %v4538
        %v5168 = vsel %vm3367, %v5136, %v4540
        %v5169 = vsel %vm3367, %v5137, %v4542
        %v5170 = vsel %vm3367, %v5138, %v4544
        %v5171 = vsel %vm3367, %v5139, %v4546
        %v5172 = vsel %vm3367, %v5140, %v4548
        %v5173 = vsel %vm3367, %v5141, %v4550
        %v5174 = vsel %vm3367, %v5142, %v4552
        %v5175 = vsel %vm3367, %v5143, %v4554
        %v5176 = vsel %vm3367, %v5144, %v4556
        %v5177 = vsel %vm3367, %v5145, %v4558
        %v5178 = vsel %vm3367, %v5146, %v4560
        %v5179 = vsel %vm3367, %v5147, %v4562
        %v5180 = vsel %vm3367, %v5148, %v4564
        %v5181 = vsel %vm3367, %v5149, %v4566
        %v5182 = vsel %vm3367, %v5150, %v4568
        %v5183 = vsel %vm3367, %v5151, %v4570
        %v5184 = vsel %vm3367, %v5152, %v4572
        %v5185 = vsel %vm3367, %v5153, %v4574
        %v5186 = vsel %vm3367, %v5154, %v4576
        %v5187 = vsel %vm3367, %v5155, %v4578
        %v5188 = vsel %vm3367, %v5156, %v4580
        %v5189 = vsel %vm3513, %v5157, %v4614
        %v5190 = vsel %vm3513, %v5158, %v4616
        %v5191 = vsel %vm3513, %v5159, %v4618
        %v5192 = vsel %vm3513, %v5160, %v4620
        %v5193 = vsel %vm3513, %v5161, %v4622
        %v5194 = vsel %vm3513, %v5162, %v4624
        %v5195 = vsel %vm3513, %v5163, %v4626
        %v5196 = vsel %vm3513, %v5164, %v4628
        %v5197 = vsel %vm3513, %v5165, %v4630
        %v5198 = vsel %vm3513, %v5166, %v4632
        %v5199 = vsel %vm3513, %v5167, %v4634
        %v5200 = vsel %vm3513, %v5168, %v4636
        %v5201 = vsel %vm3513, %v5169, %v4638
        %v5202 = vsel %vm3513, %v5170, %v4640
        %v5203 = vsel %vm3513, %v5171, %v4642
        %v5204 = vsel %vm3513, %v5172, %v4644
        %v5205 = vsel %vm3513, %v5173, %v4646
        %v5206 = vsel %vm3513, %v5174, %v4648
        %v5207 = vsel %vm3513, %v5175, %v4650
        %v5208 = vsel %vm3513, %v5176, %v4652
        %v5209 = vsel %vm3513, %v5177, %v4654
        %v5210 = vsel %vm3513, %v5178, %v4656
        %v5211 = vsel %vm3513, %v5179, %v4658
        %v5212 = vsel %vm3513, %v5180, %v4660
        %v5213 = vsel %vm3513, %v5181, %v4662
        %v5214 = vsel %vm3513, %v5182, %v4664
        %v5215 = vsel %vm3513, %v5183, %v4666
        %v5216 = vsel %vm3513, %v5184, %v4668
        %v5217 = vsel %vm3513, %v5185, %v4670
        %v5218 = vsel %vm3513, %v5186, %v4672
        %v5219 = vsel %vm3513, %v5187, %v4674
        %v5220 = vsel %vm3513, %v5188, %v4676
        %vm5221 = vcmask 326656
        %v5222 = vsel %vm5221, %v5189, %v4710
        %v5223 = vsel %vm5221, %v5190, %v4712
        %v5224 = vsel %vm5221, %v5191, %v4714
        %v5225 = vsel %vm5221, %v5192, %v4716
        %v5226 = vsel %vm5221, %v5193, %v4718
        %v5227 = vsel %vm5221, %v5194, %v4720
        %v5228 = vsel %vm5221, %v5195, %v4722
        %v5229 = vsel %vm5221, %v5196, %v4724
        %v5230 = vsel %vm5221, %v5197, %v4726
        %v5231 = vsel %vm5221, %v5198, %v4728
        %v5232 = vsel %vm5221, %v5199, %v4730
        %v5233 = vsel %vm5221, %v5200, %v4732
        %v5234 = vsel %vm5221, %v5201, %v4734
        %v5235 = vsel %vm5221, %v5202, %v4736
        %v5236 = vsel %vm5221, %v5203, %v4738
        %v5237 = vsel %vm5221, %v5204, %v4740
        %v5238 = vsel %vm5221, %v5205, %v4742
        %v5239 = vsel %vm5221, %v5206, %v4744
        %v5240 = vsel %vm5221, %v5207, %v4746
        %v5241 = vsel %vm5221, %v5208, %v4748
        %v5242 = vsel %vm5221, %v5209, %v4750
        %v5243 = vsel %vm5221, %v5210, %v4752
        %v5244 = vsel %vm5221, %v5211, %v4754
        %v5245 = vsel %vm5221, %v5212, %v4756
        %v5246 = vsel %vm5221, %v5213, %v4758
        %v5247 = vsel %vm5221, %v5214, %v4760
        %v5248 = vsel %vm5221, %v5215, %v4762
        %v5249 = vsel %vm5221, %v5216, %v4764
        %v5250 = vsel %vm5221, %v5217, %v4766
        %v5251 = vsel %vm5221, %v5218, %v4768
        %v5252 = vsel %vm5221, %v5219, %v4770
        %v5253 = vsel %vm5221, %v5220, %v4772
        %vm5254 = vcmask 392192
        %v5255 = vsel %vm5254, %v5222, %v4806
        %v5256 = vsel %vm5254, %v5223, %v4808
        %v5257 = vsel %vm5254, %v5224, %v4810
        %v5258 = vsel %vm5254, %v5225, %v4812
        %v5259 = vsel %vm5254, %v5226, %v4814
        %v5260 = vsel %vm5254, %v5227, %v4816
        %v5261 = vsel %vm5254, %v5228, %v4818
        %v5262 = vsel %vm5254, %v5229, %v4820
        %v5263 = vsel %vm5254, %v5230, %v4822
        %v5264 = vsel %vm5254, %v5231, %v4824
        %v5265 = vsel %vm5254, %v5232, %v4826
        %v5266 = vsel %vm5254, %v5233, %v4828
        %v5267 = vsel %vm5254, %v5234, %v4830
        %v5268 = vsel %vm5254, %v5235, %v4832
        %v5269 = vsel %vm5254, %v5236, %v4834
        %v5270 = vsel %vm5254, %v5237, %v4836
        %v5271 = vsel %vm5254, %v5238, %v4838
        %v5272 = vsel %vm5254, %v5239, %v4840
        %v5273 = vsel %vm5254, %v5240, %v4842
        %v5274 = vsel %vm5254, %v5241, %v4844
        %v5275 = vsel %vm5254, %v5242, %v4846
        %v5276 = vsel %vm5254, %v5243, %v4848
        %v5277 = vsel %vm5254, %v5244, %v4850
        %v5278 = vsel %vm5254, %v5245, %v4852
        %v5279 = vsel %vm5254, %v5246, %v4854
        %v5280 = vsel %vm5254, %v5247, %v4856
        %v5281 = vsel %vm5254, %v5248, %v4858
        %v5282 = vsel %vm5254, %v5249, %v4860
        %v5283 = vsel %vm5254, %v5250, %v4862
        %v5284 = vsel %vm5254, %v5251, %v4864
        %v5285 = vsel %vm5254, %v5252, %v4866
        %v5286 = vsel %vm5254, %v5253, %v4868
        %vm5287 = vcmask 457728
        %v5288 = vsel %vm5287, %v5255, %v4902
        %v5289 = vsel %vm5287, %v5256, %v4904
        %v5290 = vsel %vm5287, %v5257, %v4906
        %v5291 = vsel %vm5287, %v5258, %v4908
        %v5292 = vsel %vm5287, %v5259, %v4910
        %v5293 = vsel %vm5287, %v5260, %v4912
        %v5294 = vsel %vm5287, %v5261, %v4914
        %v5295 = vsel %vm5287, %v5262, %v4916
        %v5296 = vsel %vm5287, %v5263, %v4918
        %v5297 = vsel %vm5287, %v5264, %v4920
        %v5298 = vsel %vm5287, %v5265, %v4922
        %v5299 = vsel %vm5287, %v5266, %v4924
        %v5300 = vsel %vm5287, %v5267, %v4926
        %v5301 = vsel %vm5287, %v5268, %v4928
        %v5302 = vsel %vm5287, %v5269, %v4930
        %v5303 = vsel %vm5287, %v5270, %v4932
        %v5304 = vsel %vm5287, %v5271, %v4934
        %v5305 = vsel %vm5287, %v5272, %v4936
        %v5306 = vsel %vm5287, %v5273, %v4938
        %v5307 = vsel %vm5287, %v5274, %v4940
        %v5308 = vsel %vm5287, %v5275, %v4942
        %v5309 = vsel %vm5287, %v5276, %v4944
        %v5310 = vsel %vm5287, %v5277, %v4946
        %v5311 = vsel %vm5287, %v5278, %v4948
        %v5312 = vsel %vm5287, %v5279, %v4950
        %v5313 = vsel %vm5287, %v5280, %v4952
        %v5314 = vsel %vm5287, %v5281, %v4954
        %v5315 = vsel %vm5287, %v5282, %v4956
        %v5316 = vsel %vm5287, %v5283, %v4958
        %v5317 = vsel %vm5287, %v5284, %v4960
        %v5318 = vsel %vm5287, %v5285, %v4962
        %v5319 = vsel %vm5287, %v5286, %v4964
        %vm5320 = vcmask 523264
        %v5321 = vsel %vm5320, %v5288, %v4998
        %v5322 = vsel %vm5320, %v5289, %v5000
        %v5323 = vsel %vm5320, %v5290, %v5002
        %v5324 = vsel %vm5320, %v5291, %v5004
        %v5325 = vsel %vm5320, %v5292, %v5006
        %v5326 = vsel %vm5320, %v5293, %v5008
        %v5327 = vsel %vm5320, %v5294, %v5010
        %v5328 = vsel %vm5320, %v5295, %v5012
        %v5329 = vsel %vm5320, %v5296, %v5014
        %v5330 = vsel %vm5320, %v5297, %v5016
        %v5331 = vsel %vm5320, %v5298, %v5018
        %v5332 = vsel %vm5320, %v5299, %v5020
        %v5333 = vsel %vm5320, %v5300, %v5022
        %v5334 = vsel %vm5320, %v5301, %v5024
        %v5335 = vsel %vm5320, %v5302, %v5026
        %v5336 = vsel %vm5320, %v5303, %v5028
        %v5337 = vsel %vm5320, %v5304, %v5030
        %v5338 = vsel %vm5320, %v5305, %v5032
        %v5339 = vsel %vm5320, %v5306, %v5034
        %v5340 = vsel %vm5320, %v5307, %v5036
        %v5341 = vsel %vm5320, %v5308, %v5038
        %v5342 = vsel %vm5320, %v5309, %v5040
        %v5343 = vsel %vm5320, %v5310, %v5042
        %v5344 = vsel %vm5320, %v5311, %v5044
        %v5345 = vsel %vm5320, %v5312, %v5046
        %v5346 = vsel %vm5320, %v5313, %v5048
        %v5347 = vsel %vm5320, %v5314, %v5050
        %v5348 = vsel %vm5320, %v5315, %v5052
        %v5349 = vsel %vm5320, %v5316, %v5054
        %v5350 = vsel %vm5320, %v5317, %v5056
        %v5351 = vsel %vm5320, %v5318, %v5058
        %v5352 = vsel %vm5320, %v5319, %v5060
        %v5353 = vpack.c.bf16 %v5322, %v5321
        %v5354 = vpack.c.bf16 %v5324, %v5323
        %v5355 = vpack.c.bf16 %v5326, %v5325
        %v5356 = vpack.c.bf16 %v5328, %v5327
        %v5357 = vpack.c.bf16 %v5330, %v5329
        %v5358 = vpack.c.bf16 %v5332, %v5331
        %v5359 = vpack.c.bf16 %v5334, %v5333
        %v5360 = vpack.c.bf16 %v5336, %v5335
        %v5361 = vpack.c.bf16 %v5338, %v5337
        %v5362 = vpack.c.bf16 %v5340, %v5339
        %v5363 = vpack.c.bf16 %v5342, %v5341
        %v5364 = vpack.c.bf16 %v5344, %v5343
        %v5365 = vpack.c.bf16 %v5346, %v5345
        %v5366 = vpack.c.bf16 %v5348, %v5347
        %v5367 = vpack.c.bf16 %v5350, %v5349
        %v5368 = vpack.c.bf16 %v5352, %v5351
        %v5369 = vld [vmem:[%s4] sm:$0xf]
        %v5370 = vld [vmem:[%s4 + $0x4] sm:$0xf]
        %v5371 = vld [vmem:[%s4 + $0x8] sm:$0xf]
        %v5372 = vld [vmem:[%s4 + $0xc] sm:$0xf]
        %v5373 = vld [vmem:[%s4 + $0x10] sm:$0xf]
        %v5374 = vld [vmem:[%s4 + $0x14] sm:$0xf]
        %v5375 = vld [vmem:[%s4 + $0x18] sm:$0xf]
        %v5376 = vld [vmem:[%s4 + $0x1c] sm:$0xf]
        %v5377 = vld [vmem:[%s4 + $0x20] sm:$0xf]
        %v5387 = vunpack.c.l.b16 %v5369
        %v5388 = vunpack.c.l.b16 %v5370
        %v5389 = vunpack.c.l.b16 %v5371
        %v5390 = vunpack.c.l.b16 %v5372
        %v5391 = vunpack.c.l.b16 %v5373
        %v5392 = vunpack.c.l.b16 %v5374
        %v5393 = vunpack.c.l.b16 %v5375
        %v5394 = vunpack.c.l.b16 %v5376
        %v5395 = vunpack.c.l.b16 %v5377
        %v5396 = vpack.c.b16 %v5388, %v5387
        %v5397 = vpack.c.b16 %v5390, %v5389
        %v5398 = vpack.c.b16 %v5392, %v5391
        %v5399 = vpack.c.b16 %v5394, %v5393
        %v5400 = vpack.c.b16 %v5395, %v5395
        %vm5405 = vcmask 588800
        %v5407 = vsel %vm5405, %v5353, 0
        %v5410 = vsel %vm5405, %v5354, 0
        %v5413 = vsel %vm5405, %v5355, 0
        %v5416 = vsel %vm5405, %v5356, 0
        %v5419 = vsel %vm5405, %v5357, 0
        %v5422 = vsel %vm5405, %v5358, 0
        %v5425 = vsel %vm5405, %v5359, 0
        %v5428 = vsel %vm5405, %v5360, 0
        %v5431 = vsel %vm5405, %v5361, 0
        %v5434 = vsel %vm5405, %v5362, 0
        %v5437 = vsel %vm5405, %v5363, 0
        %v5440 = vsel %vm5405, %v5364, 0
        %v5443 = vsel %vm5405, %v5365, 0
        %v5446 = vsel %vm5405, %v5366, 0
        %v5449 = vsel %vm5405, %v5367, 0
        %v5452 = vsel %vm5405, %v5368, 0
        %vm5454 = vcmask 1043456
        %v5456 = vsel %vm5454, %v5400, 0
        %5458 = vmatpush.bf16.msra.mxu0 0
        %5459 = vmatpush.bf16.msra.mxu0 0
        %5460 = vmatpush.bf16.msra.mxu0 0
        %5461 = vmatpush.bf16.msra.mxu0 %v5456
        %5462 = vmatpush.bf16.msra.mxu0 %v5399
        %5463 = vmatpush.bf16.msra.mxu0 %v5398
        %5464 = vmatpush.bf16.msra.mxu0 %v5397
        %5465 = vmatpush.bf16.msra.mxu0 %v5396
        %5466 = vmatmul.bf16.gmra.mxu0 %v5407
        %v5467 = vpop.f32.mrf.mxu0
        %v5468 = vadd.f32 %v623, %v5467
        %v5469 = vpop.f32.mrf.mxu0
        %v5470 = vadd.f32 %v625, %v5469
        %5471 = vmatmul.bf16.gmra.mxu0 %v5410
        %v5472 = vpop.f32.mrf.mxu0
        %v5473 = vadd.f32 %v628, %v5472
        %v5474 = vpop.f32.mrf.mxu0
        %v5475 = vadd.f32 %v630, %v5474
        %5476 = vmatmul.bf16.gmra.mxu0 %v5413
        %v5477 = vpop.f32.mrf.mxu0
        %v5478 = vadd.f32 %v633, %v5477
        %v5479 = vpop.f32.mrf.mxu0
        %v5480 = vadd.f32 %v635, %v5479
        %5481 = vmatmul.bf16.gmra.mxu0 %v5416
        %v5482 = vpop.f32.mrf.mxu0
        %v5483 = vadd.f32 %v638, %v5482
        %v5484 = vpop.f32.mrf.mxu0
        %v5485 = vadd.f32 %v640, %v5484
        %5486 = vmatmul.bf16.gmra.mxu0 %v5419
        %v5487 = vpop.f32.mrf.mxu0
        %v5488 = vadd.f32 %v643, %v5487
        %v5489 = vpop.f32.mrf.mxu0
        %v5490 = vadd.f32 %v645, %v5489
        %5491 = vmatmul.bf16.gmra.mxu0 %v5422
        %v5492 = vpop.f32.mrf.mxu0
        %v5493 = vadd.f32 %v648, %v5492
        %v5494 = vpop.f32.mrf.mxu0
        %v5495 = vadd.f32 %v650, %v5494
        %5496 = vmatmul.bf16.gmra.mxu0 %v5425
        %v5497 = vpop.f32.mrf.mxu0
        %v5498 = vadd.f32 %v653, %v5497
        %v5499 = vpop.f32.mrf.mxu0
        %v5500 = vadd.f32 %v655, %v5499
        %5501 = vmatmul.bf16.gmra.mxu0 %v5428
        %v5502 = vpop.f32.mrf.mxu0
        %v5503 = vadd.f32 %v658, %v5502
        %v5504 = vpop.f32.mrf.mxu0
        %v5505 = vadd.f32 %v660, %v5504
        %5506 = vmatmul.bf16.gmra.mxu0 %v5431
        %v5507 = vpop.f32.mrf.mxu0
        %v5508 = vadd.f32 %v663, %v5507
        %v5509 = vpop.f32.mrf.mxu0
        %v5510 = vadd.f32 %v665, %v5509
        %5511 = vmatmul.bf16.gmra.mxu0 %v5434
        %v5512 = vpop.f32.mrf.mxu0
        %v5513 = vadd.f32 %v668, %v5512
        %v5514 = vpop.f32.mrf.mxu0
        %v5515 = vadd.f32 %v670, %v5514
        %5516 = vmatmul.bf16.gmra.mxu0 %v5437
        %v5517 = vpop.f32.mrf.mxu0
        %v5518 = vadd.f32 %v673, %v5517
        %v5519 = vpop.f32.mrf.mxu0
        %v5520 = vadd.f32 %v675, %v5519
        %5521 = vmatmul.bf16.gmra.mxu0 %v5440
        %v5522 = vpop.f32.mrf.mxu0
        %v5523 = vadd.f32 %v678, %v5522
        %v5524 = vpop.f32.mrf.mxu0
        %v5525 = vadd.f32 %v680, %v5524
        %5526 = vmatmul.bf16.gmra.mxu0 %v5443
        %v5527 = vpop.f32.mrf.mxu0
        %v5528 = vadd.f32 %v683, %v5527
        %v5529 = vpop.f32.mrf.mxu0
        %v5530 = vadd.f32 %v685, %v5529
        %5531 = vmatmul.bf16.gmra.mxu0 %v5446
        %v5532 = vpop.f32.mrf.mxu0
        %v5533 = vadd.f32 %v688, %v5532
        %v5534 = vpop.f32.mrf.mxu0
        %v5535 = vadd.f32 %v690, %v5534
        %5536 = vmatmul.bf16.gmra.mxu0 %v5449
        %v5537 = vpop.f32.mrf.mxu0
        %v5538 = vadd.f32 %v693, %v5537
        %v5539 = vpop.f32.mrf.mxu0
        %v5540 = vadd.f32 %v695, %v5539
        %5541 = vmatmul.bf16.gmra.mxu0 %v5452
        %v5542 = vpop.f32.mrf.mxu0
        %v5543 = vadd.f32 %v698, %v5542
        %v5544 = vpop.f32.mrf.mxu0
        %v5545 = vadd.f32 %v700, %v5544
        %5546 = vdwg.mxu0
        %v5547 = vld [vmem:[%s6] sm:$0x1]
        %v5549 = vperm.slane %v5547, 0
        %v5551 = vadd.f32 %v5468, %v5549
        %v5552 = vadd.f32 %v5470, %v5549
        %v5553 = vadd.f32 %v5473, %v5549
        %v5554 = vadd.f32 %v5475, %v5549
        %v5555 = vadd.f32 %v5478, %v5549
        %v5556 = vadd.f32 %v5480, %v5549
        %v5557 = vadd.f32 %v5483, %v5549
        %v5558 = vadd.f32 %v5485, %v5549
        %v5559 = vadd.f32 %v5488, %v5549
        %v5560 = vadd.f32 %v5490, %v5549
        %v5561 = vadd.f32 %v5493, %v5549
        %v5562 = vadd.f32 %v5495, %v5549
        %v5563 = vadd.f32 %v5498, %v5549
        %v5564 = vadd.f32 %v5500, %v5549
        %v5565 = vadd.f32 %v5503, %v5549
        %v5566 = vadd.f32 %v5505, %v5549
        %v5567 = vadd.f32 %v5508, %v5549
        %v5568 = vadd.f32 %v5510, %v5549
        %v5569 = vadd.f32 %v5513, %v5549
        %v5570 = vadd.f32 %v5515, %v5549
        %v5571 = vadd.f32 %v5518, %v5549
        %v5572 = vadd.f32 %v5520, %v5549
        %v5573 = vadd.f32 %v5523, %v5549
        %v5574 = vadd.f32 %v5525, %v5549
        %v5575 = vadd.f32 %v5528, %v5549
        %v5576 = vadd.f32 %v5530, %v5549
        %v5577 = vadd.f32 %v5533, %v5549
        %v5578 = vadd.f32 %v5535, %v5549
        %v5579 = vadd.f32 %v5538, %v5549
        %v5580 = vadd.f32 %v5540, %v5549
        %v5581 = vadd.f32 %v5543, %v5549
        %v5582 = vadd.f32 %v5545, %v5549
        %5583 = vst [vmem:[%s271] sm:$0xff] %v5551
        %5584 = vst [vmem:[%s271 + $0x8] sm:$0xff] %v5552
        %5585 = vst [vmem:[%s271 + $0x10] sm:$0xff] %v5553
        %5586 = vst [vmem:[%s271 + $0x18] sm:$0xff] %v5554
        %5587 = vst [vmem:[%s271 + $0x20] sm:$0xff] %v5555
        %5588 = vst [vmem:[%s271 + $0x28] sm:$0xff] %v5556
        %5589 = vst [vmem:[%s271 + $0x30] sm:$0xff] %v5557
        %5590 = vst [vmem:[%s271 + $0x38] sm:$0xff] %v5558
        %5591 = vst [vmem:[%s271 + $0x40] sm:$0xff] %v5559
        %5592 = vst [vmem:[%s271 + $0x48] sm:$0xff] %v5560
        %5593 = vst [vmem:[%s271 + $0x50] sm:$0xff] %v5561
        %5594 = vst [vmem:[%s271 + $0x58] sm:$0xff] %v5562
        %5595 = vst [vmem:[%s271 + $0x60] sm:$0xff] %v5563
        %5596 = vst [vmem:[%s271 + $0x68] sm:$0xff] %v5564
        %5597 = vst [vmem:[%s271 + $0x70] sm:$0xff] %v5565
        %5598 = vst [vmem:[%s271 + $0x78] sm:$0xff] %v5566
        %5599 = vst [vmem:[%s271 + $0x80] sm:$0xff] %v5567
        %5600 = vst [vmem:[%s271 + $0x88] sm:$0xff] %v5568
        %5601 = vst [vmem:[%s271 + $0x90] sm:$0xff] %v5569
        %5602 = vst [vmem:[%s271 + $0x98] sm:$0xff] %v5570
        %5603 = vst [vmem:[%s271 + $0xa0] sm:$0xff] %v5571
        %5604 = vst [vmem:[%s271 + $0xa8] sm:$0xff] %v5572
        %5605 = vst [vmem:[%s271 + $0xb0] sm:$0xff] %v5573
        %5606 = vst [vmem:[%s271 + $0xb8] sm:$0xff] %v5574
        %5607 = vst [vmem:[%s271 + $0xc0] sm:$0xff] %v5575
        %5608 = vst [vmem:[%s271 + $0xc8] sm:$0xff] %v5576
        %5609 = vst [vmem:[%s271 + $0xd0] sm:$0xff] %v5577
        %5610 = vst [vmem:[%s271 + $0xd8] sm:$0xff] %v5578
        %5611 = vst [vmem:[%s271 + $0xe0] sm:$0xff] %v5579
        %5612 = vst [vmem:[%s271 + $0xe8] sm:$0xff] %v5580
        %5613 = vst [vmem:[%s271 + $0xf0] sm:$0xff] %v5581
        %5614 = vst [vmem:[%s271 + $0xf8] sm:$0xff] %v5582
        %s5615 = sand.u32 %s181, 1
        %s5616 = scalar_lea.sflag [#allocation3], %s5615
        %s5617 = sand.u32 %s181, 1
        %s5618 = smul.addr %s5617, 256
        %s5619 = scalar_lea.vmem [#allocation2], %s5618
        // Predicated region
        $region49: #{tpu_custom_call.1} parent=47 // pred_check
          %p5620 = pneg %p191
        $region50: #{tpu_custom_call.1} parent=47 // pred_check_branch
          %5622 = sbr.rel (%p5620) target = $region52
        $region51: #{tpu_custom_call.1} parent=47 // pred_region
          %5624 = vsyncadd %s5616, 0
          %s5625 = smul.addr %s21, 32
          %s5626 = smul.addr %s5625, 8
          %s5627 = scalar_lea.hbm %s7, %s5626
          %s5628 = sshll.u32 %s5619, 4
          %s5629 = int_to_ptr.vmem [resolvable:$true] %s5628
          %s5630 = sshll.u32 %s5627, 4
          %s5631 = int_to_ptr.hbm [resolvable:$true] %s5630
          %5636 = dma.vmem_to_hbm [thread:$0]  %s5629, 4096, %s5631, %s5616, 128, 128, 8
        $region52: #{tpu_custom_call.1} parent=47 // pred_fallthru
          _
      $region48: #{tpu_custom_call.1} parent=5 // pred_fallthru
        _
      %p5637 = scmp.le.s32.totalorder 2, %s16
      // Predicated region
      $region53: #{tpu_custom_call.1} parent=5 // pred_check
        %p5638 = pneg %p5637
      $region54: #{tpu_custom_call.1} parent=5 // pred_check_branch
        %5640 = sbr.rel (%p5638) target = $region56
      $region55: #{tpu_custom_call.1} parent=5 // pred_region
        %s5641 = ssub.s32 %s16, 2
        // Predicated region
        $region57: #{tpu_custom_call.1} parent=55 // pred_check
          %p5642 = pneg %p197
        $region58: #{tpu_custom_call.1} parent=55 // pred_check_branch
          %5644 = sbr.rel (%p5642) target = $region60
        $region59: #{tpu_custom_call.1} parent=55 // pred_region
          %s5645 = sand.u32 %s182, 1
          %s5646 = scalar_lea.sflag [#allocation3], %s5645
          %s5647 = sand.u32 %s182, 1
          %s5648 = smul.addr %s5647, 256
          %s5649 = scalar_lea.vmem [#allocation2], %s5648
          %5651 = dma.done %s5646, 4096
        $region60: #{tpu_custom_call.1} parent=55 // pred_fallthru
          _
      $region56: #{tpu_custom_call.1} parent=5 // pred_fallthru
        _
    $region6: #{tpu_custom_call.1} parent=1 // loop_footer
      %s20 = sadd.s32 1, %s16
    $region7: #{tpu_custom_call.1} parent=1 // loop_footer_branch
      %15 = sbr.rel target = $region3
    $region8: #{tpu_custom_call.1} parent=1 // loop_exit
      _
    %5652 = vsyncpa [#allocation3], 1
    %s5653 = scalar_lea.sflag [#allocation3], 1
    %5654 = vsyncpa %s5653, 1

</llo_original>
